<compile_context>
chip_gen: v7x
topology: tpu7x:2x2x1
jax: 0.10.0
libtpu: 0.0.40
codegen_flags: <defaults>
</compile_context>

<pallas_src>
import functools

import numpy as np
import jax
import jax.numpy as jnp
from jax.experimental import pallas as pl
from jax.experimental.pallas import tpu as pltpu


# ----------------------------- small helpers --------------------------------


def _round_up(x, m):
    return ((x + m - 1) // m) * m


def _apply_act(x, act_name):
    if act_name == "relu":
        return jnp.maximum(x, 0.0)
    elif act_name == "tanh":
        return jnp.tanh(x)
    elif act_name == "sigmoid":
        return jax.nn.sigmoid(x)
    elif act_name == "leaky-relu":
        return jnp.where(x >= 0, x, 0.1 * x)   # slope 0.1, matching the reference
    else:
        raise ValueError("Provide a valid activation")


def _conv_block(B):
    """Images per conv grid step: fill the MXU M dim, keep >= 2 steps for v7x dual-TC."""
    if B >= 32:
        return 16        # conv1 M=1024, conv2 M=512 (256-aligned for v6e/v7x)
    if B >= 16:
        return 8         # conv1 M=512,  conv2 M=256
    return max(1, B // 2)  # tiny batches: keep two grid steps when possible


def _fc_tile(Bp):
    """FC head M tile: <= 128 (v5e-friendly), >= 2 grid steps when the batch allows."""
    if Bp >= 256:
        return 128
    if Bp >= 32:
        return _round_up((Bp + 1) // 2, 16)
    return _round_up(Bp, 8)


# -------- fused conv1 + act + pool + conv2 + act + pool (one pallas_call) ----


def _conv_stack_kernel(p1_ref, w1_ref, b1_ref, w2_ref, b2_ref, o_ref, *, n, act_name):
    """One block of n images per grid step.

    p1_ref : (n*64, 64)   bf16  conv1 pool-cell patches (rows = img,i2,j2 over a padded
                                8x8 cell grid; features = the 8x8 input window per cell)
    w1_ref : (64, 512)    bf16  packed conv1 weight; columns = (dh, dw, di, dj, c)
    b1_ref : (1, 512)     f32
    w2_ref : (1152, 256)  bf16  packed conv2 weight; K = (a, b, di, dj, ci), cols = (dh, dw, co)
    b2_ref : (1, 256)     f32
    o_ref  : (n, 4, 4, 64) bf16 pooled conv2 output (NHWC)
    """
    # --- conv1: one GEMM whose 512 columns carry 4 pool phases x 4 fold phases x 32 ch ---
    y1 = jnp.dot(p1_ref[...], w1_ref[...], preferred_element_type=jnp.float32)  # (n*64, 512)
    y1 = _apply_act(y1 + b1_ref[...], act_name)
    m = jnp.maximum(y1[:, :256], y1[:, 256:])            # max over pool phase dh
    x1 = jnp.maximum(m[:, :128], m[:, 128:])             # max over pool phase dw -> (n*64, 128)
    # x1 rows are (img, i2, j2) cells of the pooled 12x12 conv1 map (cell grid padded 6->8
    # each way); lanes are the "folded" channel layout (di, dj, c) conv2's weight expects.
    x1 = x1.astype(jnp.bfloat16).reshape(n, 64, 128)     # tile-aligned split (64 % 16 == 0)

    # --- conv2 im2col: tap (a, b) of the 3x3 cell window is a contiguous 32-row range ---
    # (valid outputs only read cells with i2,j2 <= 5; padded cells are never consumed)
    cols = []
    for a in range(3):
        for b in range(3):
            s = a * 8 + b
            cols.append(x1[:, s:s + 32, :])              # (n, 32, 128), full 128-lane blocks
    p2 = jnp.concatenate(cols, axis=-1)                  # (n, 32, 1152)
    p2 = p2.reshape(n * 32, 1152)                        # tile-aligned merge (32 % 16 == 0)

    # --- conv2 + bias + act + 2x2 max-pool over the 4 pool-phase column blocks ---
    y2 = jnp.dot(p2, w2_ref[...], preferred_element_type=jnp.float32)   # (n*32, 256)
    y2 = _apply_act(y2 + b2_ref[...], act_name)
    m2 = jnp.maximum(y2[:, :128], y2[:, 128:])
    pooled2 = jnp.maximum(m2[:, :64], m2[:, 64:])        # (n*32, 64)
    pooled2 = pooled2.reshape(n, 4, 8, 64)               # tile-aligned split (8 % 8 == 0)
    # rows are (img, i, jpad); jpad in 4..7 are padding lanes of the cell grid -> drop them
    o_ref[...] = pooled2[:, :, :4, :].astype(o_ref.dtype)


def conv_stack(p1, w1p, b1p, w2p, b2p, n_img, act_name):
    rows, k1 = p1.shape
    Bp = rows // 64
    grid = Bp // n_img
    kern = functools.partial(_conv_stack_kernel, n=n_img, act_name=act_name)
    return pl.pallas_call(
        kern,
        out_shape=jax.ShapeDtypeStruct((Bp, 4, 4, 64), jnp.bfloat16),
        grid=(grid,),
        in_specs=[
            pl.BlockSpec((n_img * 64, k1), lambda i: (i, 0)),
            pl.BlockSpec(w1p.shape, lambda i: (0, 0)),     # VMEM-resident across the grid
            pl.BlockSpec(b1p.shape, lambda i: (0, 0)),
            pl.BlockSpec(w2p.shape, lambda i: (0, 0)),
            pl.BlockSpec(b2p.shape, lambda i: (0, 0)),
        ],
        out_specs=pl.BlockSpec((n_img, 4, 4, 64), lambda i: (i, 0, 0, 0)),
        compiler_params=pltpu.CompilerParams(dimension_semantics=("parallel",)),
    )(p1, w1p, b1p, w2p, b2p)


def _conv1_patches(x_nchw):
    """(Bp,1,28,28) f32 -> (Bp*64, 64) bf16 conv1 pool-cell patches (tiny XLA glue).

    Row = (img, i2, j2) over an 8x8 cell grid (valid cells i2,j2 in 0..5; the rest are
    zero padding so every in-kernel reshape stays (8,128)-tile aligned).  Feature
    k = a*8 + b is x[4*i2 + a, 4*j2 + b]: the 8x8 input window that covers all 16 conv1
    taps whose pooled results belong to that 2x2 fold cell.
    """
    B = x_nchw.shape[0]
    xs = x_nchw[:, 0].astype(jnp.float32)                 # (B, 28, 28)
    taps = []
    for a in range(8):
        for b in range(8):
            taps.append(xs[:, a:a + 21:4, b:b + 21:4])    # (B, 6, 6): x[4*i2+a, 4*j2+b]
    p = jnp.stack(taps, axis=-1)                          # (B, 6, 6, 64)
    p = jnp.pad(p, ((0, 0), (0, 2), (0, 2), (0, 0)))      # (B, 8, 8, 64)
    return p.reshape(B * 64, 64).astype(jnp.bfloat16)


# ----------------------- fused fc1 -> dropout -> fc2 ------------------------


def _fc_head_kernel(h_ref, w1_ref, b1_ref, w2_ref, b2_ref, o_ref):
    h = h_ref[...]                                        # bf16 rows
    z1 = jnp.dot(h, w1_ref[...], preferred_element_type=jnp.float32) + b1_ref[...]
    # Reference forward: x = fc1(x); x = drop(x); x = fc2(x) -- no activation here.
    # TODO(synk): nn.Dropout(p=0.5) is identity in eval/inference mode; train-mode
    # stochastic masking is not implemented.
    z2 = jnp.dot(z1.astype(jnp.bfloat16), w2_ref[...],
                 preferred_element_type=jnp.float32) + b2_ref[...]
    o_ref[...] = z2


def fc_head(h, w1, b1, w2, b2, tm):
    """Fused fc1 -> (dropout: identity) -> fc2, weights VMEM-resident, fc2 N padded to 128."""
    Bf, d_in = h.shape
    d_hid = w1.shape[1]
    d_out = w2.shape[1]
    assert Bf % tm == 0
    return pl.pallas_call(
        _fc_head_kernel,
        out_shape=jax.ShapeDtypeStruct((Bf, d_out), jnp.float32),
        grid=(Bf // tm,),
        in_specs=[
            pl.BlockSpec((tm, d_in), lambda i: (i, 0)),
            pl.BlockSpec((d_in, d_hid), lambda i: (0, 0)),
            pl.BlockSpec((1, d_hid), lambda i: (0, 0)),
            pl.BlockSpec((d_in, d_out), lambda i: (0, 0)),
            pl.BlockSpec((1, d_out), lambda i: (0, 0)),
        ],
        out_specs=pl.BlockSpec((tm, d_out), lambda i: (i, 0)),
        compiler_params=pltpu.CompilerParams(dimension_semantics=("parallel",)),
    )(h, w1, b1, w2, b2)


# ------------------------------ parameters ----------------------------------


def _xavier_uniform(key, shape, fan_in, fan_out):
    bound = (6.0 / (fan_in + fan_out)) ** 0.5
    return jax.random.uniform(key, shape, jnp.float32, -bound, bound)


def _torch_bias(key, n, fan_in):
    bound = 1.0 / (fan_in ** 0.5)
    return jax.random.uniform(key, (n,), jnp.float32, -bound, bound)


def init_params(key):
    """Torch-layout params: conv (Cout,Cin,KH,KW), fc (out,in); xavier_uniform weights."""
    ks = jax.random.split(key, 8)
    return {
        "conv1_w": _xavier_uniform(ks[0], (32, 1, 5, 5), 1 * 25, 32 * 25),
        "conv1_b": _torch_bias(ks[4], 32, 1 * 25),
        "conv2_w": _xavier_uniform(ks[1], (64, 32, 5, 5), 32 * 25, 64 * 25),
        "conv2_b": _torch_bias(ks[5], 64, 32 * 25),
        "fc1_w": _xavier_uniform(ks[2], (1024, 1024), 1024, 1024),
        "fc1_b": _torch_bias(ks[6], 1024, 1024),
        "fc2_w": _xavier_uniform(ks[3], (10, 1024), 1024, 10),
        "fc2_b": _torch_bias(ks[7], 10, 1024),
    }


def _pack_conv1_weight(w):
    """(32, 1, 5, 5) torch conv1 weight -> (64, 512) pool-cell GEMM weight.

    Patch row k = a*8 + b indexes the 8x8 input window of one fold cell; output column
    (dh*8 + dw*4 + di*2 + dj)*32 + c is the conv1 result at output pixel
    (4*i2 + 2*di + dh, 4*j2 + 2*dj + dw), channel c.  Maxing over the (dh, dw) column
    blocks implements the 2x2 max-pool and leaves lanes in conv2's folded (di, dj, c)
    channel order.
    """
    cout = w.shape[0]
    wf = w.reshape(cout, 25)                               # (32, 25), index r*5 + s
    idx = np.zeros((64, 16), dtype=np.int32)
    for a in range(8):
        for b in range(8):
            for dh in range(2):
                for dw in range(2):
                    for di in range(2):
                        for dj in range(2):
                            r = a - 2 * di - dh
                            s = b - 2 * dj - dw
                            blk = ((dh * 2 + dw) * 2 + di) * 2 + dj
                            idx[a * 8 + b, blk] = r * 5 + s if (0 <= r < 5 and 0 <= s < 5) else 25
    wz = jnp.concatenate([wf, jnp.zeros((cout, 1), wf.dtype)], axis=1)   # (32, 26)
    packed = wz[:, idx]                                    # (32, 64, 16)
    return jnp.transpose(packed, (1, 2, 0)).reshape(64, 16 * cout)       # (64, 512)


def _pack_conv_pool_weight(w):
    """(Cout, Cin, 5, 5) torch conv weight -> (36*Cin, 4*Cout) fused conv+pool GEMM weight.

    Patch rows are indexed by (a, b, r, s, ci): (a, b) = 2x2-cell offset inside the 3x3
    folded window, (r, s) = position inside the cell.  Output column block p = dh*2 + dw
    holds the conv result at output pixel (2*i+dh, 2*j+dw), so the 2x2 max-pool becomes
    a max over the four column blocks.
    """
    cout, cin, kh, kw = w.shape
    zero = jnp.zeros((cin, cout), w.dtype)
    rows = []
    for a in range(3):
        for b in range(3):
            for r in range(2):
                for s in range(2):
                    cols = []
                    for dh in range(2):
                        for dw in range(2):
                            i = 2 * a + r - dh
                            j = 2 * b + s - dw
                            if 0 <= i < kh and 0 <= j < kw:
                                cols.append(jnp.transpose(w[:, :, i, j]))   # (Cin, Cout)
                            else:
                                cols.append(zero)
                    rows.append(jnp.concatenate(cols, axis=1))
    return jnp.concatenate(rows, axis=0)


def prepare_params(p):
    """One-time repack of torch-layout params into the kernel-friendly form."""
    # NHWC flatten index (h*4*64 + w*64 + c) -> torch NCHW flatten index (c*16 + h*4 + w)
    perm = jnp.array([c * 16 + h * 4 + w
                      for h in range(4) for w in range(4) for c in range(64)],
                     dtype=jnp.int32)
    return {
        "c1_w": _pack_conv1_weight(p["conv1_w"]).astype(jnp.bfloat16),      # (64, 512)
        "c1_b": jnp.tile(p["conv1_b"], 16).reshape(1, -1),                  # (1, 512)
        "c2_w": _pack_conv_pool_weight(p["conv2_w"]).astype(jnp.bfloat16),  # (1152, 256)
        "c2_b": jnp.tile(p["conv2_b"], 4).reshape(1, -1),                   # (1, 256)
        "fc1_w": jnp.transpose(p["fc1_w"])[perm, :].astype(jnp.bfloat16),   # (in, out), NHWC rows
        "fc1_b": p["fc1_b"].reshape(1, -1),
        # fc2 padded to N=128 so the output store is a full-lane vst; sliced to 10 in XLA.
        "fc2_w": jnp.pad(jnp.transpose(p["fc2_w"]), ((0, 0), (0, 118))).astype(jnp.bfloat16),
        "fc2_b": jnp.pad(p["fc2_b"], (0, 118)).reshape(1, -1),
    }


# --------------------------------- forward ----------------------------------


def net_forward(prep, x_nchw, act_name="relu"):
    B, C, H, W = x_nchw.shape
    assert (C, H, W) == (1, 28, 28), "Net expects MNIST-shaped (B,1,28,28) input"
    n_img = _conv_block(B)
    Bp = _round_up(B, n_img)
    x = x_nchw.astype(jnp.float32)
    if Bp != B:
        x = jnp.pad(x, ((0, Bp - B), (0, 0), (0, 0), (0, 0)))

    p1 = _conv1_patches(x)                                           # (Bp*64, 64) bf16
    co = conv_stack(p1, prep["c1_w"], prep["c1_b"],
                    prep["c2_w"], prep["c2_b"], n_img, act_name)     # (Bp, 4, 4, 64) bf16

    h = co.reshape(Bp, 1024)      # free reshape; fc1 rows pre-permuted to torch order
    tm = _fc_tile(Bp)
    Bf = _round_up(Bp, tm)
    if Bf != Bp:
        h = jnp.pad(h, ((0, Bf - Bp), (0, 0)))
    logits = fc_head(h, prep["fc1_w"], prep["fc1_b"],
                     prep["fc2_w"], prep["fc2_b"], tm)               # (Bf, 128) f32
    return logits[:B, :10]


def net_forward_reference(params, x_nchw, act_name="relu"):
    """Pure-XLA reference with torch semantics (f32) for correctness checking."""
    x = x_nchw.astype(jnp.float32)

    def conv(x, w, b):
        y = jax.lax.conv_general_dilated(x, w, (1, 1), "VALID",
                                         dimension_numbers=("NCHW", "OIHW", "NCHW"))
        return y + b.reshape(1, -1, 1, 1)

    def pool(x):
        return jax.lax.reduce_window(x, -jnp.inf, jax.lax.max,
                                     (1, 1, 2, 2), (1, 1, 2, 2), "VALID")

    x = pool(_apply_act(conv(x, params["conv1_w"], params["conv1_b"]), act_name))
    x = pool(_apply_act(conv(x, params["conv2_w"], params["conv2_b"]), act_name))
    x = x.reshape(x.shape[0], -1)                                    # torch .view(-1, 1024)
    x = x @ params["fc1_w"].T + params["fc1_b"]
    x = x @ params["fc2_w"].T + params["fc2_b"]
    return x


if __name__ == "__main__":
    key = jax.random.PRNGKey(0)
    pkey, xkey = jax.random.split(key)
    params = init_params(pkey)
    prep = prepare_params(params)

    # MNIST-shaped input (view(-1, 1024) requires 28x28 spatial), batch=2.
    x = jax.random.normal(xkey, (2, 1, 28, 28), dtype=jnp.float32)

    fwd = jax.jit(functools.partial(net_forward, act_name="relu"))
    out = jax.block_until_ready(fwd(prep, x))
    assert out.shape == (2, 10) and out.dtype == jnp.float32

    # Correctness check against the pure-XLA torch-semantics reference
    # (loose tolerance: the kernel path uses bf16 GEMM operands by design).
    ref = net_forward_reference(params, x, act_name="relu")
    err = float(jnp.max(jnp.abs(out - ref)))
    assert err < 1e-1, f"kernel/reference mismatch: max abs err {err}"

    print("KERNEL_OK")
</pallas_src>

<mosaic_0001>
module attributes {stable_mosaic.version = 11 : i64} {
  func.func @_conv_stack_kernel(%arg0: i32, %arg1: memref<64x64xbf16, #tpu.memory_space<vmem>>, %arg2: memref<64x512xbf16, #tpu.memory_space<vmem>>, %arg3: memref<1x512xf32, #tpu.memory_space<vmem>>, %arg4: memref<1152x256xbf16, #tpu.memory_space<vmem>>, %arg5: memref<1x256xf32, #tpu.memory_space<vmem>>, %arg6: memref<1x4x4x64xbf16, #tpu.memory_space<vmem>>) attributes {dimension_semantics = [#tpu.dimension_semantics<parallel>], iteration_bounds = array<i64: 2>, scalar_prefetch = 0 : i64, scratch_operands = 0 : i64, tpu.core_type = #tpu.core_type<tc>, window_params = [{transform_indices = @transform_0, window_bounds = array<i64: 64, 64>}, {pipeline_mode = #tpu.pipeline_mode<synchronous>, transform_indices = @transform_1, window_bounds = array<i64: 64, 512>}, {pipeline_mode = #tpu.pipeline_mode<synchronous>, transform_indices = @transform_2, window_bounds = array<i64: 1, 512>}, {pipeline_mode = #tpu.pipeline_mode<synchronous>, transform_indices = @transform_3, window_bounds = array<i64: 1152, 256>}, {pipeline_mode = #tpu.pipeline_mode<synchronous>, transform_indices = @transform_4, window_bounds = array<i64: 1, 256>}, {transform_indices = @transform_5, window_bounds = array<i64: 1, 4, 4, 64>}]} {
    %c0 = arith.constant 0 : index
    %c0_0 = arith.constant 0 : index
    %0 = vector.load %arg1[%c0, %c0_0] : memref<64x64xbf16, #tpu.memory_space<vmem>>, vector<64x64xbf16>
    %c0_1 = arith.constant 0 : index
    %c0_2 = arith.constant 0 : index
    %1 = vector.load %arg2[%c0_1, %c0_2] : memref<64x512xbf16, #tpu.memory_space<vmem>>, vector<64x512xbf16>
    %cst = arith.constant dense<0.000000e+00> : vector<64x512xf32>
    %2 = tpu.matmul %0, %1, %cst {dimension_numbers = #tpu.dot_dimension_numbers<[1], [0], [0], [1], [0, 0, 1, 1], [], []>} : vector<64x64xbf16>, vector<64x512xbf16>, vector<64x512xf32> -> vector<64x512xf32>
    %c0_3 = arith.constant 0 : index
    %c0_4 = arith.constant 0 : index
    %3 = vector.load %arg3[%c0_3, %c0_4] : memref<1x512xf32, #tpu.memory_space<vmem>>, vector<1x512xf32>
    %4 = vector.broadcast %3 : vector<1x512xf32> to vector<64x512xf32>
    %5 = arith.addf %2, %4 : vector<64x512xf32>
    %cst_5 = arith.constant 0.000000e+00 : f32
    %6 = vector.broadcast %cst_5 : f32 to vector<64x512xf32>
    %7 = arith.maximumf %5, %6 : vector<64x512xf32>
    %8 = vector.extract_strided_slice %7 {offsets = [0, 0], sizes = [64, 256], strides = [1, 1]} : vector<64x512xf32> to vector<64x256xf32>
    %9 = vector.extract_strided_slice %7 {offsets = [0, 256], sizes = [64, 256], strides = [1, 1]} : vector<64x512xf32> to vector<64x256xf32>
    %10 = arith.maximumf %8, %9 : vector<64x256xf32>
    %11 = vector.extract_strided_slice %10 {offsets = [0, 0], sizes = [64, 128], strides = [1, 1]} : vector<64x256xf32> to vector<64x128xf32>
    %12 = vector.extract_strided_slice %10 {offsets = [0, 128], sizes = [64, 128], strides = [1, 1]} : vector<64x256xf32> to vector<64x128xf32>
    %13 = arith.maximumf %11, %12 : vector<64x128xf32>
    %14 = arith.truncf %13 : vector<64x128xf32> to vector<64x128xbf16>
    %15 = vector.shape_cast %14 : vector<64x128xbf16> to vector<1x64x128xbf16>
    %16 = vector.extract_strided_slice %15 {offsets = [0, 0, 0], sizes = [1, 32, 128], strides = [1, 1, 1]} : vector<1x64x128xbf16> to vector<1x32x128xbf16>
    %17 = vector.extract_strided_slice %15 {offsets = [0, 1, 0], sizes = [1, 32, 128], strides = [1, 1, 1]} : vector<1x64x128xbf16> to vector<1x32x128xbf16>
    %18 = vector.extract_strided_slice %15 {offsets = [0, 2, 0], sizes = [1, 32, 128], strides = [1, 1, 1]} : vector<1x64x128xbf16> to vector<1x32x128xbf16>
    %19 = vector.extract_strided_slice %15 {offsets = [0, 8, 0], sizes = [1, 32, 128], strides = [1, 1, 1]} : vector<1x64x128xbf16> to vector<1x32x128xbf16>
    %20 = vector.extract_strided_slice %15 {offsets = [0, 9, 0], sizes = [1, 32, 128], strides = [1, 1, 1]} : vector<1x64x128xbf16> to vector<1x32x128xbf16>
    %21 = vector.extract_strided_slice %15 {offsets = [0, 10, 0], sizes = [1, 32, 128], strides = [1, 1, 1]} : vector<1x64x128xbf16> to vector<1x32x128xbf16>
    %22 = vector.extract_strided_slice %15 {offsets = [0, 16, 0], sizes = [1, 32, 128], strides = [1, 1, 1]} : vector<1x64x128xbf16> to vector<1x32x128xbf16>
    %23 = vector.extract_strided_slice %15 {offsets = [0, 17, 0], sizes = [1, 32, 128], strides = [1, 1, 1]} : vector<1x64x128xbf16> to vector<1x32x128xbf16>
    %24 = vector.extract_strided_slice %15 {offsets = [0, 18, 0], sizes = [1, 32, 128], strides = [1, 1, 1]} : vector<1x64x128xbf16> to vector<1x32x128xbf16>
    %25 = tpu.concatenate %16, %17, %18, %19, %20, %21, %22, %23, %24 in 2 : vector<1x32x128xbf16>, vector<1x32x128xbf16>, vector<1x32x128xbf16>, vector<1x32x128xbf16>, vector<1x32x128xbf16>, vector<1x32x128xbf16>, vector<1x32x128xbf16>, vector<1x32x128xbf16>, vector<1x32x128xbf16> -> vector<1x32x1152xbf16>
    %26 = vector.shape_cast %25 : vector<1x32x1152xbf16> to vector<32x1152xbf16>
    %c0_6 = arith.constant 0 : index
    %c0_7 = arith.constant 0 : index
    %27 = vector.load %arg4[%c0_6, %c0_7] : memref<1152x256xbf16, #tpu.memory_space<vmem>>, vector<1152x256xbf16>
    %cst_8 = arith.constant dense<0.000000e+00> : vector<32x256xf32>
    %28 = tpu.matmul %26, %27, %cst_8 {dimension_numbers = #tpu.dot_dimension_numbers<[1], [0], [0], [1], [0, 0, 1, 1], [], []>} : vector<32x1152xbf16>, vector<1152x256xbf16>, vector<32x256xf32> -> vector<32x256xf32>
    %c0_9 = arith.constant 0 : index
    %c0_10 = arith.constant 0 : index
    %29 = vector.load %arg5[%c0_9, %c0_10] : memref<1x256xf32, #tpu.memory_space<vmem>>, vector<1x256xf32>
    %30 = vector.broadcast %29 : vector<1x256xf32> to vector<32x256xf32>
    %31 = arith.addf %28, %30 : vector<32x256xf32>
    %cst_11 = arith.constant 0.000000e+00 : f32
    %32 = vector.broadcast %cst_11 : f32 to vector<32x256xf32>
    %33 = arith.maximumf %31, %32 : vector<32x256xf32>
    %34 = vector.extract_strided_slice %33 {offsets = [0, 0], sizes = [32, 128], strides = [1, 1]} : vector<32x256xf32> to vector<32x128xf32>
    %35 = vector.extract_strided_slice %33 {offsets = [0, 128], sizes = [32, 128], strides = [1, 1]} : vector<32x256xf32> to vector<32x128xf32>
    %36 = arith.maximumf %34, %35 : vector<32x128xf32>
    %37 = vector.extract_strided_slice %36 {offsets = [0, 0], sizes = [32, 64], strides = [1, 1]} : vector<32x128xf32> to vector<32x64xf32>
    %38 = vector.extract_strided_slice %36 {offsets = [0, 64], sizes = [32, 64], strides = [1, 1]} : vector<32x128xf32> to vector<32x64xf32>
    %39 = arith.maximumf %37, %38 : vector<32x64xf32>
    %40 = vector.shape_cast %39 : vector<32x64xf32> to vector<1x4x8x64xf32>
    %41 = vector.extract_strided_slice %40 {offsets = [0, 0, 0, 0], sizes = [1, 4, 4, 64], strides = [1, 1, 1, 1]} : vector<1x4x8x64xf32> to vector<1x4x4x64xf32>
    %42 = arith.truncf %41 : vector<1x4x4x64xf32> to vector<1x4x4x64xbf16>
    %c0_12 = arith.constant 0 : index
    %c0_13 = arith.constant 0 : index
    %c0_14 = arith.constant 0 : index
    %c0_15 = arith.constant 0 : index
    %43 = vector.load %arg6[%c0_12, %c0_13, %c0_14, %c0_15] : memref<1x4x4x64xbf16, #tpu.memory_space<vmem>>, vector<1x4x4x64xbf16>
    tpu.vector_store %arg6[%c0_12, %c0_13, %c0_14, %c0_15], %42 {strides = array<i32>} : memref<1x4x4x64xbf16, #tpu.memory_space<vmem>>, vector<1x4x4x64xbf16>,
    return
  }
  func.func @transform_0(%arg0: i32) -> (i32, i32) {
    %c0_i32 = arith.constant 0 : i32
    %c0_i32_0 = arith.constant 0 : i32
    return %arg0, %c0_i32 : i32, i32
  }
  func.func @transform_1(%arg0: i32) -> (i32, i32) {
    %c0_i32 = arith.constant 0 : i32
    %c0_i32_0 = arith.constant 0 : i32
    %c0_i32_1 = arith.constant 0 : i32
    return %c0_i32, %c0_i32_0 : i32, i32
  }
  func.func @transform_2(%arg0: i32) -> (i32, i32) {
    %c0_i32 = arith.constant 0 : i32
    %c0_i32_0 = arith.constant 0 : i32
    %c0_i32_1 = arith.constant 0 : i32
    return %c0_i32, %c0_i32_0 : i32, i32
  }
  func.func @transform_3(%arg0: i32) -> (i32, i32) {
    %c0_i32 = arith.constant 0 : i32
    %c0_i32_0 = arith.constant 0 : i32
    %c0_i32_1 = arith.constant 0 : i32
    return %c0_i32, %c0_i32_0 : i32, i32
  }
  func.func @transform_4(%arg0: i32) -> (i32, i32) {
    %c0_i32 = arith.constant 0 : i32
    %c0_i32_0 = arith.constant 0 : i32
    %c0_i32_1 = arith.constant 0 : i32
    return %c0_i32, %c0_i32_0 : i32, i32
  }
  func.func @transform_5(%arg0: i32) -> (i32, i32, i32, i32) {
    %c0_i32 = arith.constant 0 : i32
    %c0_i32_0 = arith.constant 0 : i32
    %c0_i32_1 = arith.constant 0 : i32
    %c0_i32_2 = arith.constant 0 : i32
    return %arg0, %c0_i32, %c0_i32_0, %c0_i32_1 : i32, i32, i32, i32
  }
}

module attributes {stable_mosaic.version = 11 : i64} {
  func.func @_fc_head_kernel(%arg0: i32, %arg1: memref<8x1024xbf16, #tpu.memory_space<vmem>>, %arg2: memref<1024x1024xbf16, #tpu.memory_space<vmem>>, %arg3: memref<1x1024xf32, #tpu.memory_space<vmem>>, %arg4: memref<1024x128xbf16, #tpu.memory_space<vmem>>, %arg5: memref<1x128xf32, #tpu.memory_space<vmem>>, %arg6: memref<8x128xf32, #tpu.memory_space<vmem>>) attributes {dimension_semantics = [#tpu.dimension_semantics<parallel>], iteration_bounds = array<i64: 1>, scalar_prefetch = 0 : i64, scratch_operands = 0 : i64, tpu.core_type = #tpu.core_type<tc>, window_params = [{transform_indices = @transform_0, window_bounds = array<i64: 8, 1024>}, {pipeline_mode = #tpu.pipeline_mode<synchronous>, transform_indices = @transform_1, window_bounds = array<i64: 1024, 1024>}, {pipeline_mode = #tpu.pipeline_mode<synchronous>, transform_indices = @transform_2, window_bounds = array<i64: 1, 1024>}, {pipeline_mode = #tpu.pipeline_mode<synchronous>, transform_indices = @transform_3, window_bounds = array<i64: 1024, 128>}, {pipeline_mode = #tpu.pipeline_mode<synchronous>, transform_indices = @transform_4, window_bounds = array<i64: 1, 128>}, {transform_indices = @transform_5, window_bounds = array<i64: 8, 128>}]} {
    %c0 = arith.constant 0 : index
    %c0_0 = arith.constant 0 : index
    %0 = vector.load %arg1[%c0, %c0_0] : memref<8x1024xbf16, #tpu.memory_space<vmem>>, vector<8x1024xbf16>
    %c0_1 = arith.constant 0 : index
    %c0_2 = arith.constant 0 : index
    %1 = vector.load %arg2[%c0_1, %c0_2] : memref<1024x1024xbf16, #tpu.memory_space<vmem>>, vector<1024x1024xbf16>
    %cst = arith.constant dense<0.000000e+00> : vector<8x1024xf32>
    %2 = tpu.matmul %0, %1, %cst {dimension_numbers = #tpu.dot_dimension_numbers<[1], [0], [0], [1], [0, 0, 1, 1], [], []>} : vector<8x1024xbf16>, vector<1024x1024xbf16>, vector<8x1024xf32> -> vector<8x1024xf32>
    %c0_3 = arith.constant 0 : index
    %c0_4 = arith.constant 0 : index
    %3 = vector.load %arg3[%c0_3, %c0_4] : memref<1x1024xf32, #tpu.memory_space<vmem>>, vector<1x1024xf32>
    %4 = vector.broadcast %3 : vector<1x1024xf32> to vector<8x1024xf32>
    %5 = arith.addf %2, %4 : vector<8x1024xf32>
    %6 = arith.truncf %5 : vector<8x1024xf32> to vector<8x1024xbf16>
    %c0_5 = arith.constant 0 : index
    %c0_6 = arith.constant 0 : index
    %7 = vector.load %arg4[%c0_5, %c0_6] : memref<1024x128xbf16, #tpu.memory_space<vmem>>, vector<1024x128xbf16>
    %cst_7 = arith.constant dense<0.000000e+00> : vector<8x128xf32>
    %8 = tpu.matmul %6, %7, %cst_7 {dimension_numbers = #tpu.dot_dimension_numbers<[1], [0], [0], [1], [0, 0, 1, 1], [], []>} : vector<8x1024xbf16>, vector<1024x128xbf16>, vector<8x128xf32> -> vector<8x128xf32>
    %c0_8 = arith.constant 0 : index
    %c0_9 = arith.constant 0 : index
    %9 = vector.load %arg5[%c0_8, %c0_9] : memref<1x128xf32, #tpu.memory_space<vmem>>, vector<1x128xf32>
    %10 = vector.broadcast %9 : vector<1x128xf32> to vector<8x128xf32>
    %11 = arith.addf %8, %10 : vector<8x128xf32>
    %c0_10 = arith.constant 0 : index
    %c0_11 = arith.constant 0 : index
    %12 = vector.load %arg6[%c0_10, %c0_11] : memref<8x128xf32, #tpu.memory_space<vmem>>, vector<8x128xf32>
    tpu.vector_store %arg6[%c0_10, %c0_11], %11 {strides = array<i32>} : memref<8x128xf32, #tpu.memory_space<vmem>>, vector<8x128xf32>,
    return
  }
  func.func @transform_0(%arg0: i32) -> (i32, i32) {
    %c0_i32 = arith.constant 0 : i32
    %c0_i32_0 = arith.constant 0 : i32
    return %arg0, %c0_i32 : i32, i32
  }
  func.func @transform_1(%arg0: i32) -> (i32, i32) {
    %c0_i32 = arith.constant 0 : i32
    %c0_i32_0 = arith.constant 0 : i32
    %c0_i32_1 = arith.constant 0 : i32
    return %c0_i32, %c0_i32_0 : i32, i32
  }
  func.func @transform_2(%arg0: i32) -> (i32, i32) {
    %c0_i32 = arith.constant 0 : i32
    %c0_i32_0 = arith.constant 0 : i32
    %c0_i32_1 = arith.constant 0 : i32
    return %c0_i32, %c0_i32_0 : i32, i32
  }
  func.func @transform_3(%arg0: i32) -> (i32, i32) {
    %c0_i32 = arith.constant 0 : i32
    %c0_i32_0 = arith.constant 0 : i32
    %c0_i32_1 = arith.constant 0 : i32
    return %c0_i32, %c0_i32_0 : i32, i32
  }
  func.func @transform_4(%arg0: i32) -> (i32, i32) {
    %c0_i32 = arith.constant 0 : i32
    %c0_i32_0 = arith.constant 0 : i32
    %c0_i32_1 = arith.constant 0 : i32
    return %c0_i32, %c0_i32_0 : i32, i32
  }
  func.func @transform_5(%arg0: i32) -> (i32, i32) {
    %c0_i32 = arith.constant 0 : i32
    %c0_i32_0 = arith.constant 0 : i32
    return %arg0, %c0_i32 : i32, i32
  }
}

</mosaic_0001>

<llo_original>
// kernel: net_forward.2
$region0: #{net_forward.2}
  #allocation0 [shape = 'u32[]', space=smem, size = 0x4, offset = 0x4, fixed_abs, tag = 'smem constant byte address 0x4 - core index']
  #allocation1 [shape = 'u32[144,128]{1,0:T(1,128)}', space=vmem, size = 0x12000, scoped, tag = 'internal scratch']
  %s0 = inlined_call_operand.vmem [shape: bf16[128,64], index: 0, kind: input, shape index: {}]
  %s1 = inlined_call_operand.vmem [shape: bf16[64,512], index: 1, kind: input, shape index: {}]
  %s2 = inlined_call_operand.vmem [shape: f32[1,512], index: 2, kind: input, shape index: {}]
  %s3 = inlined_call_operand.vmem [shape: bf16[1152,256], index: 3, kind: input, shape index: {}]
  %s4 = inlined_call_operand.vmem [shape: f32[1,256], index: 4, kind: input, shape index: {}]
  %s5 = inlined_call_operand.vmem [shape: bf16[2,4,4,64], index: 5, kind: output, shape index: {}]
  %s6 = sld [smem:[#allocation0]]
  $region53: #{net_forward.2} parent=0
    _
  %s8 = ssub.s32 1, %s6
  %s9 = scalar_select 0, %s8, %s6
  loop: start=0, step=1, limit=4
  $region2: #{net_forward.2} parent=0 // loop_pre_header
    _
  $region3: #{net_forward.2} parent=0 // loop_header
    %s11 = sphi 0, %s15
    %p12 = scmp.ge.s32.totalorder %s11, 4
    %s21 = sphi 0, %s23
    %s24 = sphi 0, %s21
    %s25 = sphi 0, %s24
    %s41 = sphi 0, %s25
    %s45 = sphi 0, %s45
    %s47 = sphi 0, %s45
    %s48 = sphi 0, %s47
    %s62 = sphi 0, %s48
    %s66 = sphi 0, %s66
    %s68 = sphi 0, %s66
    %s69 = sphi 0, %s68
    %s83 = sphi 0, %s69
    %s87 = sphi 0, %s87
    %s89 = sphi 0, %s87
    %s90 = sphi 0, %s89
    %s104 = sphi 0, %s90
    %s108 = sphi 0, %s108
    %s110 = sphi 0, %s108
    %s111 = sphi 0, %s110
    %s125 = sphi 0, %s111
    %s131 = sphi 0, %s133
    %s134 = sphi 0, %s131
    %s135 = sphi 0, %s134
    %s151 = sphi 0, %s135
  $region4: #{net_forward.2} parent=0 // loop_header_branch
    %14 = sbr.rel (%p12) target = $region8
  $region5: #{net_forward.2} parent=0 // loop_body
    %s16 = ssub.s32 %s11, 1
    %s17 = ssub.s32 %s11, 2
    %s18 = sadd.s32 %s11, 1
    %s19 = ssub.s32 %s11, %s18
    %p20 = scmp.eq.s32.totalorder %s19, 0
    %s22 = sadd.s32 %s21, 1
    %s23 = scalar_select %p20, %s21, %s22
    %p26 = pneg %p20
    %p27 = scmp.eq.s32.totalorder %s11, 1
    %p28 = por %p26, %p27
    %p29 = scmp.ne.s32.totalorder %s21, %s24
    %p30 = scmp.eq.s32.totalorder %s11, 0
    %p31 = por %p29, %p30
    %p32 = scmp.ne.s32.totalorder %s21, %s24
    %p33 = scmp.eq.s32.totalorder %s16, 1
    %p34 = por %p32, %p33
    %p35 = scmp.ne.s32.totalorder %s24, %s25
    %p36 = scmp.eq.s32.totalorder %s16, 0
    %p37 = por %p35, %p36
    %p38 = scmp.ne.s32.totalorder %s24, %s25
    %p39 = scmp.eq.s32.totalorder %s17, 1
    %p40 = por %p38, %p39
    %p42 = scmp.ne.s32.totalorder %s25, %s41
    %p43 = scmp.eq.s32.totalorder %s17, 0
    %p44 = por %p42, %p43
    %s46 = sadd.s32 %s45, 1
    %p49 = scmp.eq.s32.totalorder %s11, 1
    %p50 = scmp.ne.s32.totalorder %s45, %s47
    %p51 = scmp.eq.s32.totalorder %s11, 0
    %p52 = por %p50, %p51
    %p53 = scmp.ne.s32.totalorder %s45, %s47
    %p54 = scmp.eq.s32.totalorder %s16, 1
    %p55 = por %p53, %p54
    %p56 = scmp.ne.s32.totalorder %s47, %s48
    %p57 = scmp.eq.s32.totalorder %s16, 0
    %p58 = por %p56, %p57
    %p59 = scmp.ne.s32.totalorder %s47, %s48
    %p60 = scmp.eq.s32.totalorder %s17, 1
    %p61 = por %p59, %p60
    %p63 = scmp.ne.s32.totalorder %s48, %s62
    %p64 = scmp.eq.s32.totalorder %s17, 0
    %p65 = por %p63, %p64
    %s67 = sadd.s32 %s66, 1
    %p70 = scmp.eq.s32.totalorder %s11, 1
    %p71 = scmp.ne.s32.totalorder %s66, %s68
    %p72 = scmp.eq.s32.totalorder %s11, 0
    %p73 = por %p71, %p72
    %p74 = scmp.ne.s32.totalorder %s66, %s68
    %p75 = scmp.eq.s32.totalorder %s16, 1
    %p76 = por %p74, %p75
    %p77 = scmp.ne.s32.totalorder %s68, %s69
    %p78 = scmp.eq.s32.totalorder %s16, 0
    %p79 = por %p77, %p78
    %p80 = scmp.ne.s32.totalorder %s68, %s69
    %p81 = scmp.eq.s32.totalorder %s17, 1
    %p82 = por %p80, %p81
    %p84 = scmp.ne.s32.totalorder %s69, %s83
    %p85 = scmp.eq.s32.totalorder %s17, 0
    %p86 = por %p84, %p85
    %s88 = sadd.s32 %s87, 1
    %p91 = scmp.eq.s32.totalorder %s11, 1
    %p92 = scmp.ne.s32.totalorder %s87, %s89
    %p93 = scmp.eq.s32.totalorder %s11, 0
    %p94 = por %p92, %p93
    %p95 = scmp.ne.s32.totalorder %s87, %s89
    %p96 = scmp.eq.s32.totalorder %s16, 1
    %p97 = por %p95, %p96
    %p98 = scmp.ne.s32.totalorder %s89, %s90
    %p99 = scmp.eq.s32.totalorder %s16, 0
    %p100 = por %p98, %p99
    %p101 = scmp.ne.s32.totalorder %s89, %s90
    %p102 = scmp.eq.s32.totalorder %s17, 1
    %p103 = por %p101, %p102
    %p105 = scmp.ne.s32.totalorder %s90, %s104
    %p106 = scmp.eq.s32.totalorder %s17, 0
    %p107 = por %p105, %p106
    %s109 = sadd.s32 %s108, 1
    %p112 = scmp.eq.s32.totalorder %s11, 1
    %p113 = scmp.ne.s32.totalorder %s108, %s110
    %p114 = scmp.eq.s32.totalorder %s11, 0
    %p115 = por %p113, %p114
    %p116 = scmp.ne.s32.totalorder %s108, %s110
    %p117 = scmp.eq.s32.totalorder %s16, 1
    %p118 = por %p116, %p117
    %p119 = scmp.ne.s32.totalorder %s110, %s111
    %p120 = scmp.eq.s32.totalorder %s16, 0
    %p121 = por %p119, %p120
    %p122 = scmp.ne.s32.totalorder %s110, %s111
    %p123 = scmp.eq.s32.totalorder %s17, 1
    %p124 = por %p122, %p123
    %p126 = scmp.ne.s32.totalorder %s111, %s125
    %p127 = scmp.eq.s32.totalorder %s17, 0
    %p128 = por %p126, %p127
    %s129 = ssub.s32 %s11, %s18
    %p130 = scmp.eq.s32.totalorder %s129, 0
    %s132 = sadd.s32 %s131, 1
    %s133 = scalar_select %p130, %s131, %s132
    %p136 = pneg %p130
    %p137 = scmp.eq.s32.totalorder %s11, 1
    %p138 = por %p136, %p137
    %p139 = scmp.ne.s32.totalorder %s131, %s134
    %p140 = scmp.eq.s32.totalorder %s11, 0
    %p141 = por %p139, %p140
    %p142 = scmp.ne.s32.totalorder %s131, %s134
    %p143 = scmp.eq.s32.totalorder %s16, 1
    %p144 = por %p142, %p143
    %p145 = scmp.ne.s32.totalorder %s134, %s135
    %p146 = scmp.eq.s32.totalorder %s16, 0
    %p147 = por %p145, %p146
    %p148 = scmp.ne.s32.totalorder %s134, %s135
    %p149 = scmp.eq.s32.totalorder %s17, 1
    %p150 = por %p148, %p149
    %p152 = scmp.ne.s32.totalorder %s135, %s151
    %p153 = scmp.eq.s32.totalorder %s17, 0
    %p154 = por %p152, %p153
    %p155 = scmp.le.s32.totalorder 1, %s11
    %p156 = scmp.lt.s32.totalorder %s11, 3
    %p157 = pnand %p155, %p156
    %p158 = pneg %p157
    // Predicated region
    $region9: #{net_forward.2} parent=5 // pred_check
      _
    $region10: #{net_forward.2} parent=5 // pred_check_branch
      %160 = sbr.rel (%p157) target = $region12
    $region11: #{net_forward.2} parent=5 // pred_region
      %s161 = ssub.s32 %s11, 1
      // Predicated region
      $region13: #{net_forward.2} parent=11 // pred_check
        %p162 = pneg %p58
      $region14: #{net_forward.2} parent=11 // pred_check_branch
        %164 = sbr.rel (%p162) target = $region16
      $region15: #{net_forward.2} parent=11 // pred_region
        _
      $region16: #{net_forward.2} parent=11 // pred_fallthru
        _
      // Predicated region
      $region17: #{net_forward.2} parent=11 // pred_check
        %p165 = pneg %p79
      $region18: #{net_forward.2} parent=11 // pred_check_branch
        %167 = sbr.rel (%p165) target = $region20
      $region19: #{net_forward.2} parent=11 // pred_region
        _
      $region20: #{net_forward.2} parent=11 // pred_fallthru
        _
      // Predicated region
      $region21: #{net_forward.2} parent=11 // pred_check
        %p168 = pneg %p100
      $region22: #{net_forward.2} parent=11 // pred_check_branch
        %170 = sbr.rel (%p168) target = $region24
      $region23: #{net_forward.2} parent=11 // pred_region
        _
      $region24: #{net_forward.2} parent=11 // pred_fallthru
        _
      // Predicated region
      $region25: #{net_forward.2} parent=11 // pred_check
        %p171 = pneg %p121
      $region26: #{net_forward.2} parent=11 // pred_check_branch
        %173 = sbr.rel (%p171) target = $region28
      $region27: #{net_forward.2} parent=11 // pred_region
        _
      $region28: #{net_forward.2} parent=11 // pred_fallthru
        _
    $region12: #{net_forward.2} parent=5 // pred_fallthru
      _
    %p174 = scmp.lt.s32.totalorder %s11, 2
    // Predicated region
    $region29: #{net_forward.2} parent=5 // pred_check
      %p175 = pneg %p174
    $region30: #{net_forward.2} parent=5 // pred_check_branch
      %177 = sbr.rel (%p175) target = $region32
    $region31: #{net_forward.2} parent=5 // pred_region
      // Predicated region
      $region33: #{net_forward.2} parent=31 // pred_check
        %p178 = pneg %p31
      $region34: #{net_forward.2} parent=31 // pred_check_branch
        %180 = sbr.rel (%p178) target = $region36
      $region35: #{net_forward.2} parent=31 // pred_region
        %s181 = smul.u32 8, %s11
        %p182 = scmp.lt.s32.totalorder %s181, 15
        %s183 = scalar_select %p182, %s181, 15
        %s184 = smul.addr %s183, 4
        %s185 = scalar_lea.vmem %s0, %s184
        %s186 = smul.u32 8, %s11
      $region36: #{net_forward.2} parent=31 // pred_fallthru
        _
    $region32: #{net_forward.2} parent=5 // pred_fallthru
      _
    %p187 = scmp.le.s32.totalorder 1, %s11
    %p188 = scmp.lt.s32.totalorder %s11, 3
    %p189 = pnand %p187, %p188
    %p190 = pneg %p189
    // Predicated region
    $region37: #{net_forward.2} parent=5 // pred_check
      _
    $region38: #{net_forward.2} parent=5 // pred_check_branch
      %192 = sbr.rel (%p189) target = $region40
    $region39: #{net_forward.2} parent=5 // pred_region
      %s193 = ssub.s32 %s11, 1
      %s194 = smul.u32 8, %s16
      %p195 = scmp.lt.s32.totalorder %s194, 15
      %s196 = scalar_select %p195, %s194, 15
      %s197 = smul.addr %s196, 4
      %s198 = scalar_lea.vmem %s0, %s197
      %p199 = pneg %p37
      %p200 = pneg %p34
      %p201 = pneg %p58
      %p202 = pneg %p55
      %p203 = pneg %p79
      %p204 = pneg %p76
      %p205 = pneg %p100
      %p206 = pneg %p97
      %p207 = pneg %p121
      %p208 = pneg %p118
      %p209 = pneg %p147
      %p210 = pneg %p144
      %p211 = scmp.lt.s32.totalorder %s16, 1
      %s212 = scalar_select %p211, %s16, 1
      %s213 = smul.addr %s212, 4
      %s214 = smul.addr %s213, 2
      %s215 = scalar_lea.vmem %s5, %s214
      %s216 = smul.u32 8, %s16
      %p217 = scmp.lt.s32.totalorder %s216, 15
      %s218 = scalar_select %p217, %s216, 15
      %s219 = smul.addr %s218, 4
      %s220 = scalar_lea.vmem %s0, %s219
      %s221 = smul.u32 8, %s16
      %p222 = scmp.lt.s32.totalorder %s16, 1
      %s223 = scalar_select %p222, %s16, 1
      %s224 = smul.addr %s223, 4
      %s225 = smul.addr %s224, 2
      %s226 = scalar_lea.vmem %s5, %s225
      %v228 = vld [vmem:[%s220] sm:$0xf]
      %v229 = vld [vmem:[%s220 + $0x4] sm:$0xf]
      %v230 = vld [vmem:[%s220 + $0x8] sm:$0xf]
      %v231 = vld [vmem:[%s220 + $0xc] sm:$0xf]
      %v232 = vld [vmem:[%s220 + $0x10] sm:$0xf]
      %v233 = vld [vmem:[%s220 + $0x14] sm:$0xf]
      %v234 = vld [vmem:[%s220 + $0x18] sm:$0xf]
      %v235 = vld [vmem:[%s220 + $0x1c] sm:$0xf]
      %v236 = vld [vmem:[%s1] sm:$0xff]
      %v237 = vld [vmem:[%s1 + $0x8] sm:$0xff]
      %v238 = vld [vmem:[%s1 + $0x10] sm:$0xff]
      %v239 = vld [vmem:[%s1 + $0x18] sm:$0xff]
      %v240 = vld [vmem:[%s1 + $0x20] sm:$0xff]
      %v241 = vld [vmem:[%s1 + $0x28] sm:$0xff]
      %v242 = vld [vmem:[%s1 + $0x30] sm:$0xff]
      %v243 = vld [vmem:[%s1 + $0x38] sm:$0xff]
      %v244 = vld [vmem:[%s1 + $0x40] sm:$0xff]
      %v245 = vld [vmem:[%s1 + $0x48] sm:$0xff]
      %v246 = vld [vmem:[%s1 + $0x50] sm:$0xff]
      %v247 = vld [vmem:[%s1 + $0x58] sm:$0xff]
      %v248 = vld [vmem:[%s1 + $0x60] sm:$0xff]
      %v249 = vld [vmem:[%s1 + $0x68] sm:$0xff]
      %v250 = vld [vmem:[%s1 + $0x70] sm:$0xff]
      %v251 = vld [vmem:[%s1 + $0x78] sm:$0xff]
      %v252 = vld [vmem:[%s2] sm:$0xf]
      %v254 = vlaneseq
      %v255 = vshrl.u32 %v254, 7
      %v256 = vsub.s32 0, %v255
      %v257 = vrot.slane %v252, %v256
      %v258 = vlaneseq
      %v259 = vshrl.u32 %v258, 7
      %v260 = vsub.s32 1, %v259
      %v261 = vrot.slane %v252, %v260
      %v262 = vlaneseq
      %v263 = vshrl.u32 %v262, 7
      %v264 = vsub.s32 2, %v263
      %v265 = vrot.slane %v252, %v264
      %v266 = vlaneseq
      %v267 = vshrl.u32 %v266, 7
      %v268 = vsub.s32 3, %v267
      %v269 = vrot.slane %v252, %v268
      %v282 = vunpack.c.l.b16 %v228
      %v283 = vunpack.c.l.b16 %v229
      %v284 = vunpack.c.l.b16 %v230
      %v285 = vunpack.c.l.b16 %v231
      %v286 = vunpack.c.l.b16 %v232
      %v287 = vunpack.c.l.b16 %v233
      %v288 = vunpack.c.l.b16 %v234
      %v289 = vunpack.c.l.b16 %v235
      %v290 = vpack.c.b16 %v283, %v282
      %v291 = vpack.c.b16 %v285, %v284
      %v292 = vpack.c.b16 %v287, %v286
      %v293 = vpack.c.b16 %v289, %v288
      %v310 = vunpack.c.l.b16 %v236
      %v311 = vunpack.c.h.b16 %v236
      %v312 = vunpack.c.l.b16 %v237
      %v313 = vunpack.c.h.b16 %v237
      %v314 = vunpack.c.l.b16 %v238
      %v315 = vunpack.c.h.b16 %v238
      %v316 = vunpack.c.l.b16 %v239
      %v317 = vunpack.c.h.b16 %v239
      %v318 = vunpack.c.l.b16 %v240
      %v319 = vunpack.c.h.b16 %v240
      %v320 = vunpack.c.l.b16 %v241
      %v321 = vunpack.c.h.b16 %v241
      %v322 = vunpack.c.l.b16 %v242
      %v323 = vunpack.c.h.b16 %v242
      %v324 = vunpack.c.l.b16 %v243
      %v325 = vunpack.c.h.b16 %v243
      %v326 = vunpack.c.l.b16 %v244
      %v327 = vunpack.c.h.b16 %v244
      %v328 = vunpack.c.l.b16 %v245
      %v329 = vunpack.c.h.b16 %v245
      %v330 = vunpack.c.l.b16 %v246
      %v331 = vunpack.c.h.b16 %v246
      %v332 = vunpack.c.l.b16 %v247
      %v333 = vunpack.c.h.b16 %v247
      %v334 = vunpack.c.l.b16 %v248
      %v335 = vunpack.c.h.b16 %v248
      %v336 = vunpack.c.l.b16 %v249
      %v337 = vunpack.c.h.b16 %v249
      %v338 = vunpack.c.l.b16 %v250
      %v339 = vunpack.c.h.b16 %v250
      %v340 = vunpack.c.l.b16 %v251
      %v341 = vunpack.c.h.b16 %v251
      %v342 = vpack.c.b16 %v314, %v310
      %v343 = vpack.c.b16 %v315, %v311
      %v344 = vpack.c.b16 %v316, %v312
      %v345 = vpack.c.b16 %v317, %v313
      %v346 = vpack.c.b16 %v322, %v318
      %v347 = vpack.c.b16 %v323, %v319
      %v348 = vpack.c.b16 %v324, %v320
      %v349 = vpack.c.b16 %v325, %v321
      %v350 = vpack.c.b16 %v330, %v326
      %v351 = vpack.c.b16 %v331, %v327
      %v352 = vpack.c.b16 %v332, %v328
      %v353 = vpack.c.b16 %v333, %v329
      %v354 = vpack.c.b16 %v338, %v334
      %v355 = vpack.c.b16 %v339, %v335
      %v356 = vpack.c.b16 %v340, %v336
      %v357 = vpack.c.b16 %v341, %v337
      %vm374 = vcmask 523264
      %v376 = vsel %vm374, %v290, 0
      %v379 = vsel %vm374, %v291, 0
      %v382 = vsel %vm374, %v292, 0
      %v385 = vsel %vm374, %v293, 0
      %387 = vmatprep.subr.bf16.mxu0 %v343
      %388 = vmatpush1.bf16.msra.mxu0 %v342
      %389 = vmatprep.subr.bf16.mxu0 %v347
      %390 = vmatpush1.bf16.msra.mxu0 %v346
      %391 = vmatprep.subr.bf16.mxu0 %v351
      %392 = vmatpush1.bf16.msra.mxu0 %v350
      %393 = vmatprep.subr.bf16.mxu0 %v355
      %394 = vmatpush1.bf16.msra.mxu0 %v354
      %395 = vmatprep.subr.bf16.mxu0 0
      %396 = vmatpush1.bf16.msra.mxu0 0
      %397 = vmatprep.subr.bf16.mxu0 0
      %398 = vmatpush1.bf16.msra.mxu0 0
      %399 = vmatprep.subr.bf16.mxu0 0
      %400 = vmatpush1.bf16.msra.mxu0 0
      %401 = vmatprep.subr.bf16.mxu0 0
      %402 = vmatpush1.bf16.msra.mxu0 0
      %403 = vmatprep.subr.bf16.mxu0 0
      %404 = vmatpush1.bf16.msra.mxu0 0
      %405 = vmatprep.subr.bf16.mxu0 0
      %406 = vmatpush1.bf16.msra.mxu0 0
      %407 = vmatprep.subr.bf16.mxu0 0
      %408 = vmatpush1.bf16.msra.mxu0 0
      %409 = vmatprep.subr.bf16.mxu0 0
      %410 = vmatpush1.bf16.msra.mxu0 0
      %411 = vmatprep.subr.bf16.mxu0 0
      %412 = vmatpush1.bf16.msra.mxu0 0
      %413 = vmatprep.subr.bf16.mxu0 0
      %414 = vmatpush1.bf16.msra.mxu0 0
      %415 = vmatprep.subr.bf16.mxu0 0
      %416 = vmatpush1.bf16.msra.mxu0 0
      %417 = vmatprep.subr.bf16.mxu0 0
      %418 = vmatpush1.bf16.msra.mxu0 0
      %419 = vmatprep.mubr.bf16.mxu0 0
      %420 = vmatmul.mubr.bf16.gmra.mrb[0].mxu0 %v376
      %v421 = vpop.f32.mrb[0].mxu0
      %v422 = vadd.f32 %v257, %v421
      %v423 = vpop.f32.mrb[0].mxu0
      %v424 = vadd.f32 %v261, %v423
      %v425 = vpop.f32.mrb[0].mxu0
      %v426 = vadd.f32 %v257, %v425
      %v427 = vpop.f32.mrb[0].mxu0
      %v428 = vadd.f32 %v261, %v427
      %429 = vmatprep.mubr.bf16.mxu0 0
      %430 = vmatmul.mubr.bf16.gmra.mrb[0].mxu0 %v379
      %v431 = vpop.f32.mrb[0].mxu0
      %v432 = vadd.f32 %v257, %v431
      %v433 = vpop.f32.mrb[0].mxu0
      %v434 = vadd.f32 %v261, %v433
      %v435 = vpop.f32.mrb[0].mxu0
      %v436 = vadd.f32 %v257, %v435
      %v437 = vpop.f32.mrb[0].mxu0
      %v438 = vadd.f32 %v261, %v437
      %439 = vmatprep.mubr.bf16.mxu0 0
      %440 = vmatmul.mubr.bf16.gmra.mrb[0].mxu0 %v382
      %v441 = vpop.f32.mrb[0].mxu0
      %v442 = vadd.f32 %v257, %v441
      %v443 = vpop.f32.mrb[0].mxu0
      %v444 = vadd.f32 %v261, %v443
      %v445 = vpop.f32.mrb[0].mxu0
      %v446 = vadd.f32 %v257, %v445
      %v447 = vpop.f32.mrb[0].mxu0
      %v448 = vadd.f32 %v261, %v447
      %449 = vmatprep.mubr.bf16.mxu0 0
      %450 = vmatmul.mubr.bf16.gmra.mrb[0].mxu0 %v385
      %v451 = vpop.f32.mrb[0].mxu0
      %v452 = vadd.f32 %v257, %v451
      %v453 = vpop.f32.mrb[0].mxu0
      %v454 = vadd.f32 %v261, %v453
      %v455 = vpop.f32.mrb[0].mxu0
      %v456 = vadd.f32 %v257, %v455
      %v457 = vpop.f32.mrb[0].mxu0
      %v458 = vadd.f32 %v261, %v457
      %459 = vdwg.mxu0
      %460 = vmatprep.subr.bf16.mxu0 %v345
      %461 = vmatpush1.bf16.msra.mxu0 %v344
      %462 = vmatprep.subr.bf16.mxu0 %v349
      %463 = vmatpush1.bf16.msra.mxu0 %v348
      %464 = vmatprep.subr.bf16.mxu0 %v353
      %465 = vmatpush1.bf16.msra.mxu0 %v352
      %466 = vmatprep.subr.bf16.mxu0 %v357
      %467 = vmatpush1.bf16.msra.mxu0 %v356
      %468 = vmatprep.subr.bf16.mxu0 0
      %469 = vmatpush1.bf16.msra.mxu0 0
      %470 = vmatprep.subr.bf16.mxu0 0
      %471 = vmatpush1.bf16.msra.mxu0 0
      %472 = vmatprep.subr.bf16.mxu0 0
      %473 = vmatpush1.bf16.msra.mxu0 0
      %474 = vmatprep.subr.bf16.mxu0 0
      %475 = vmatpush1.bf16.msra.mxu0 0
      %476 = vmatprep.subr.bf16.mxu0 0
      %477 = vmatpush1.bf16.msra.mxu0 0
      %478 = vmatprep.subr.bf16.mxu0 0
      %479 = vmatpush1.bf16.msra.mxu0 0
      %480 = vmatprep.subr.bf16.mxu0 0
      %481 = vmatpush1.bf16.msra.mxu0 0
      %482 = vmatprep.subr.bf16.mxu0 0
      %483 = vmatpush1.bf16.msra.mxu0 0
      %484 = vmatprep.subr.bf16.mxu0 0
      %485 = vmatpush1.bf16.msra.mxu0 0
      %486 = vmatprep.subr.bf16.mxu0 0
      %487 = vmatpush1.bf16.msra.mxu0 0
      %488 = vmatprep.subr.bf16.mxu0 0
      %489 = vmatpush1.bf16.msra.mxu0 0
      %490 = vmatprep.subr.bf16.mxu0 0
      %491 = vmatpush1.bf16.msra.mxu0 0
      %492 = vmatprep.mubr.bf16.mxu0 0
      %493 = vmatmul.mubr.bf16.gmra.mrb[0].mxu0 %v376
      %v494 = vpop.f32.mrb[0].mxu0
      %v495 = vadd.f32 %v265, %v494
      %v496 = vpop.f32.mrb[0].mxu0
      %v497 = vadd.f32 %v269, %v496
      %v498 = vpop.f32.mrb[0].mxu0
      %v499 = vadd.f32 %v265, %v498
      %v500 = vpop.f32.mrb[0].mxu0
      %v501 = vadd.f32 %v269, %v500
      %502 = vmatprep.mubr.bf16.mxu0 0
      %503 = vmatmul.mubr.bf16.gmra.mrb[0].mxu0 %v379
      %v504 = vpop.f32.mrb[0].mxu0
      %v505 = vadd.f32 %v265, %v504
      %v506 = vpop.f32.mrb[0].mxu0
      %v507 = vadd.f32 %v269, %v506
      %v508 = vpop.f32.mrb[0].mxu0
      %v509 = vadd.f32 %v265, %v508
      %v510 = vpop.f32.mrb[0].mxu0
      %v511 = vadd.f32 %v269, %v510
      %512 = vmatprep.mubr.bf16.mxu0 0
      %513 = vmatmul.mubr.bf16.gmra.mrb[0].mxu0 %v382
      %v514 = vpop.f32.mrb[0].mxu0
      %v515 = vadd.f32 %v265, %v514
      %v516 = vpop.f32.mrb[0].mxu0
      %v517 = vadd.f32 %v269, %v516
      %v518 = vpop.f32.mrb[0].mxu0
      %v519 = vadd.f32 %v265, %v518
      %v520 = vpop.f32.mrb[0].mxu0
      %v521 = vadd.f32 %v269, %v520
      %522 = vmatprep.mubr.bf16.mxu0 0
      %523 = vmatmul.mubr.bf16.gmra.mrb[0].mxu0 %v385
      %v524 = vpop.f32.mrb[0].mxu0
      %v525 = vadd.f32 %v265, %v524
      %v526 = vpop.f32.mrb[0].mxu0
      %v527 = vadd.f32 %v269, %v526
      %v528 = vpop.f32.mrb[0].mxu0
      %v529 = vadd.f32 %v265, %v528
      %v530 = vpop.f32.mrb[0].mxu0
      %v531 = vadd.f32 %v269, %v530
      %532 = vdwg.mxu0
      %v533 = vmax.f32 %v422, 0.0
      %v534 = vmax.f32 %v424, 0.0
      %v535 = vmax.f32 %v495, 0.0
      %v536 = vmax.f32 %v497, 0.0
      %v537 = vmax.f32 %v426, 0.0
      %v538 = vmax.f32 %v428, 0.0
      %v539 = vmax.f32 %v499, 0.0
      %v540 = vmax.f32 %v501, 0.0
      %v541 = vmax.f32 %v432, 0.0
      %v542 = vmax.f32 %v434, 0.0
      %v543 = vmax.f32 %v505, 0.0
      %v544 = vmax.f32 %v507, 0.0
      %v545 = vmax.f32 %v436, 0.0
      %v546 = vmax.f32 %v438, 0.0
      %v547 = vmax.f32 %v509, 0.0
      %v548 = vmax.f32 %v511, 0.0
      %v549 = vmax.f32 %v442, 0.0
      %v550 = vmax.f32 %v444, 0.0
      %v551 = vmax.f32 %v515, 0.0
      %v552 = vmax.f32 %v517, 0.0
      %v553 = vmax.f32 %v446, 0.0
      %v554 = vmax.f32 %v448, 0.0
      %v555 = vmax.f32 %v519, 0.0
      %v556 = vmax.f32 %v521, 0.0
      %v557 = vmax.f32 %v452, 0.0
      %v558 = vmax.f32 %v454, 0.0
      %v559 = vmax.f32 %v525, 0.0
      %v560 = vmax.f32 %v527, 0.0
      %v561 = vmax.f32 %v456, 0.0
      %v562 = vmax.f32 %v458, 0.0
      %v563 = vmax.f32 %v529, 0.0
      %v564 = vmax.f32 %v531, 0.0
      %v565 = vmax.f32 %v533, %v535
      %v566 = vmax.f32 %v534, %v536
      %v567 = vmax.f32 %v537, %v539
      %v568 = vmax.f32 %v538, %v540
      %v569 = vmax.f32 %v541, %v543
      %v570 = vmax.f32 %v542, %v544
      %v571 = vmax.f32 %v545, %v547
      %v572 = vmax.f32 %v546, %v548
      %v573 = vmax.f32 %v549, %v551
      %v574 = vmax.f32 %v550, %v552
      %v575 = vmax.f32 %v553, %v555
      %v576 = vmax.f32 %v554, %v556
      %v577 = vmax.f32 %v557, %v559
      %v578 = vmax.f32 %v558, %v560
      %v579 = vmax.f32 %v561, %v563
      %v580 = vmax.f32 %v562, %v564
      %v581 = vmax.f32 %v565, %v566
      %v582 = vmax.f32 %v567, %v568
      %v583 = vmax.f32 %v569, %v570
      %v584 = vmax.f32 %v571, %v572
      %v585 = vmax.f32 %v573, %v574
      %v586 = vmax.f32 %v575, %v576
      %v587 = vmax.f32 %v577, %v578
      %v588 = vmax.f32 %v579, %v580
      %v589 = vpack.c.bf16 %v582, %v581
      %v590 = vpack.c.bf16 %v584, %v583
      %v591 = vpack.c.bf16 %v586, %v585
      %v592 = vpack.c.bf16 %v588, %v587
      %vm593 = vsmask.f32 7424
      %v595 = vshrl.u32 %v589, 16
      %v597 = vshll.u32 %v589, 16
      %v599 = vrot.slane %v597, 1
      %v600 = vor.u32 %v595, %v599
      %v602 = vshll.u32 %v590, 16
      %v604 = vrot.slane %v602, 1
      %v605 = vsel %vm593, %v600, %v604
      %v606 = vshrl.u32 %v590, 16
      %v608 = vor.u32 %v606, %v604
      %v610 = vshll.u32 %v591, 16
      %v612 = vrot.slane %v610, 1
      %v613 = vsel %vm593, %v608, %v612
      %vm619 = vcmask 1046528
      %v620 = vrot.slane %v589, 1
      %v621 = vrot.slane %v590, 1
      %v622 = vsel %vm619, %v620, %v621
      %v623 = vrot.slane %v591, 1
      %v624 = vsel %vm619, %v621, %v623
      %vm627 = vcmask 1043456
      %v628 = vrot.slane %v589, 4
      %v629 = vrot.slane %v590, 4
      %v630 = vsel %vm627, %v628, %v629
      %v631 = vrot.slane %v591, 4
      %v632 = vsel %vm627, %v629, %v631
      %vm635 = vsmask.f32 3328
      %v636 = vrot.slane %v595, 4
      %v637 = vrot.slane %v597, 5
      %v638 = vor.u32 %v636, %v637
      %v639 = vrot.slane %v606, 4
      %v640 = vrot.slane %v602, 5
      %v641 = vor.u32 %v639, %v640
      %v642 = vsel %vm635, %v638, %v641
      %v643 = vshrl.u32 %v591, 16
      %v645 = vrot.slane %v643, 4
      %v646 = vrot.slane %v610, 5
      %v647 = vor.u32 %v645, %v646
      %v648 = vsel %vm635, %v641, %v647
      %vm651 = vcmask 1042432
      %v652 = vrot.slane %v589, 5
      %v653 = vrot.slane %v590, 5
      %v654 = vsel %vm651, %v652, %v653
      %v655 = vrot.slane %v591, 5
      %v656 = vsel %vm651, %v653, %v655
      %v659 = vor.u32 %v643, %v612
      %v661 = vshll.u32 %v592, 16
      %v663 = vrot.slane %v661, 1
      %v664 = vsel %vm593, %v659, %v663
      %v667 = vrot.slane %v592, 1
      %v668 = vsel %vm619, %v623, %v667
      %v670 = vld [vmem:[%s3] sm:$0xff]
      %v671 = vld [vmem:[%s3 + $0x8] sm:$0xff]
      %v672 = vld [vmem:[%s3 + $0x10] sm:$0xff]
      %v673 = vld [vmem:[%s3 + $0x18] sm:$0xff]
      %v674 = vld [vmem:[%s3 + $0x20] sm:$0xff]
      %v675 = vld [vmem:[%s3 + $0x28] sm:$0xff]
      %v676 = vld [vmem:[%s3 + $0x30] sm:$0xff]
      %v677 = vld [vmem:[%s3 + $0x38] sm:$0xff]
      %v678 = vld [vmem:[%s3 + $0x40] sm:$0xff]
      %v679 = vld [vmem:[%s3 + $0x48] sm:$0xff]
      %v680 = vld [vmem:[%s3 + $0x50] sm:$0xff]
      %v681 = vld [vmem:[%s3 + $0x58] sm:$0xff]
      %v682 = vld [vmem:[%s3 + $0x60] sm:$0xff]
      %v683 = vld [vmem:[%s3 + $0x68] sm:$0xff]
      %v684 = vld [vmem:[%s3 + $0x70] sm:$0xff]
      %v685 = vld [vmem:[%s3 + $0x78] sm:$0xff]
      %v686 = vld [vmem:[%s3 + $0x80] sm:$0xff]
      %v687 = vld [vmem:[%s3 + $0x88] sm:$0xff]
      %v688 = vld [vmem:[%s3 + $0x90] sm:$0xff]
      %v689 = vld [vmem:[%s3 + $0x98] sm:$0xff]
      %v690 = vld [vmem:[%s3 + $0xa0] sm:$0xff]
      %v691 = vld [vmem:[%s3 + $0xa8] sm:$0xff]
      %v692 = vld [vmem:[%s3 + $0xb0] sm:$0xff]
      %v693 = vld [vmem:[%s3 + $0xb8] sm:$0xff]
      %v694 = vld [vmem:[%s3 + $0xc0] sm:$0xff]
      %v695 = vld [vmem:[%s3 + $0xc8] sm:$0xff]
      %v696 = vld [vmem:[%s3 + $0xd0] sm:$0xff]
      %v697 = vld [vmem:[%s3 + $0xd8] sm:$0xff]
      %v698 = vld [vmem:[%s3 + $0xe0] sm:$0xff]
      %v699 = vld [vmem:[%s3 + $0xe8] sm:$0xff]
      %v700 = vld [vmem:[%s3 + $0xf0] sm:$0xff]
      %v701 = vld [vmem:[%s3 + $0xf8] sm:$0xff]
      %v702 = vld [vmem:[%s3 + $0x100] sm:$0xff]
      %v703 = vld [vmem:[%s3 + $0x108] sm:$0xff]
      %v704 = vld [vmem:[%s3 + $0x110] sm:$0xff]
      %v705 = vld [vmem:[%s3 + $0x118] sm:$0xff]
      %v706 = vld [vmem:[%s3 + $0x120] sm:$0xff]
      %v707 = vld [vmem:[%s3 + $0x128] sm:$0xff]
      %v708 = vld [vmem:[%s3 + $0x130] sm:$0xff]
      %v709 = vld [vmem:[%s3 + $0x138] sm:$0xff]
      %v710 = vld [vmem:[%s3 + $0x140] sm:$0xff]
      %v711 = vld [vmem:[%s3 + $0x148] sm:$0xff]
      %v712 = vld [vmem:[%s3 + $0x150] sm:$0xff]
      %v713 = vld [vmem:[%s3 + $0x158] sm:$0xff]
      %v714 = vld [vmem:[%s3 + $0x160] sm:$0xff]
      %v715 = vld [vmem:[%s3 + $0x168] sm:$0xff]
      %v716 = vld [vmem:[%s3 + $0x170] sm:$0xff]
      %v717 = vld [vmem:[%s3 + $0x178] sm:$0xff]
      %v718 = vld [vmem:[%s3 + $0x180] sm:$0xff]
      %v719 = vld [vmem:[%s3 + $0x188] sm:$0xff]
      %v720 = vld [vmem:[%s3 + $0x190] sm:$0xff]
      %v721 = vld [vmem:[%s3 + $0x198] sm:$0xff]
      %v722 = vld [vmem:[%s3 + $0x1a0] sm:$0xff]
      %v723 = vld [vmem:[%s3 + $0x1a8] sm:$0xff]
      %v724 = vld [vmem:[%s3 + $0x1b0] sm:$0xff]
      %v725 = vld [vmem:[%s3 + $0x1b8] sm:$0xff]
      %v726 = vld [vmem:[%s3 + $0x1c0] sm:$0xff]
      %v727 = vld [vmem:[%s3 + $0x1c8] sm:$0xff]
      %v728 = vld [vmem:[%s3 + $0x1d0] sm:$0xff]
      %v729 = vld [vmem:[%s3 + $0x1d8] sm:$0xff]
      %v730 = vld [vmem:[%s3 + $0x1e0] sm:$0xff]
      %v731 = vld [vmem:[%s3 + $0x1e8] sm:$0xff]
      %v732 = vld [vmem:[%s3 + $0x1f0] sm:$0xff]
      %v733 = vld [vmem:[%s3 + $0x1f8] sm:$0xff]
      %v734 = vld [vmem:[%s3 + $0x200] sm:$0xff]
      %v735 = vld [vmem:[%s3 + $0x208] sm:$0xff]
      %v736 = vld [vmem:[%s3 + $0x210] sm:$0xff]
      %v737 = vld [vmem:[%s3 + $0x218] sm:$0xff]
      %v738 = vld [vmem:[%s3 + $0x220] sm:$0xff]
      %v739 = vld [vmem:[%s3 + $0x228] sm:$0xff]
      %v740 = vld [vmem:[%s3 + $0x230] sm:$0xff]
      %v741 = vld [vmem:[%s3 + $0x238] sm:$0xff]
      %v742 = vld [vmem:[%s3 + $0x240] sm:$0xff]
      %v743 = vld [vmem:[%s3 + $0x248] sm:$0xff]
      %v744 = vld [vmem:[%s3 + $0x250] sm:$0xff]
      %v745 = vld [vmem:[%s3 + $0x258] sm:$0xff]
      %v746 = vld [vmem:[%s3 + $0x260] sm:$0xff]
      %v747 = vld [vmem:[%s3 + $0x268] sm:$0xff]
      %v748 = vld [vmem:[%s3 + $0x270] sm:$0xff]
      %v749 = vld [vmem:[%s3 + $0x278] sm:$0xff]
      %v750 = vld [vmem:[%s3 + $0x280] sm:$0xff]
      %v751 = vld [vmem:[%s3 + $0x288] sm:$0xff]
      %v752 = vld [vmem:[%s3 + $0x290] sm:$0xff]
      %v753 = vld [vmem:[%s3 + $0x298] sm:$0xff]
      %v754 = vld [vmem:[%s3 + $0x2a0] sm:$0xff]
      %v755 = vld [vmem:[%s3 + $0x2a8] sm:$0xff]
      %v756 = vld [vmem:[%s3 + $0x2b0] sm:$0xff]
      %v757 = vld [vmem:[%s3 + $0x2b8] sm:$0xff]
      %v758 = vld [vmem:[%s3 + $0x2c0] sm:$0xff]
      %v759 = vld [vmem:[%s3 + $0x2c8] sm:$0xff]
      %v760 = vld [vmem:[%s3 + $0x2d0] sm:$0xff]
      %v761 = vld [vmem:[%s3 + $0x2d8] sm:$0xff]
      %v762 = vld [vmem:[%s3 + $0x2e0] sm:$0xff]
      %v763 = vld [vmem:[%s3 + $0x2e8] sm:$0xff]
      %v764 = vld [vmem:[%s3 + $0x2f0] sm:$0xff]
      %v765 = vld [vmem:[%s3 + $0x2f8] sm:$0xff]
      %v766 = vld [vmem:[%s3 + $0x300] sm:$0xff]
      %v767 = vld [vmem:[%s3 + $0x308] sm:$0xff]
      %v768 = vld [vmem:[%s3 + $0x310] sm:$0xff]
      %v769 = vld [vmem:[%s3 + $0x318] sm:$0xff]
      %v770 = vld [vmem:[%s3 + $0x320] sm:$0xff]
      %v771 = vld [vmem:[%s3 + $0x328] sm:$0xff]
      %v772 = vld [vmem:[%s3 + $0x330] sm:$0xff]
      %v773 = vld [vmem:[%s3 + $0x338] sm:$0xff]
      %v774 = vld [vmem:[%s3 + $0x340] sm:$0xff]
      %v775 = vld [vmem:[%s3 + $0x348] sm:$0xff]
      %v776 = vld [vmem:[%s3 + $0x350] sm:$0xff]
      %v777 = vld [vmem:[%s3 + $0x358] sm:$0xff]
      %v778 = vld [vmem:[%s3 + $0x360] sm:$0xff]
      %v779 = vld [vmem:[%s3 + $0x368] sm:$0xff]
      %v780 = vld [vmem:[%s3 + $0x370] sm:$0xff]
      %v781 = vld [vmem:[%s3 + $0x378] sm:$0xff]
      %v782 = vld [vmem:[%s3 + $0x380] sm:$0xff]
      %v783 = vld [vmem:[%s3 + $0x388] sm:$0xff]
      %v784 = vld [vmem:[%s3 + $0x390] sm:$0xff]
      %v785 = vld [vmem:[%s3 + $0x398] sm:$0xff]
      %v786 = vld [vmem:[%s3 + $0x3a0] sm:$0xff]
      %v787 = vld [vmem:[%s3 + $0x3a8] sm:$0xff]
      %v788 = vld [vmem:[%s3 + $0x3b0] sm:$0xff]
      %v789 = vld [vmem:[%s3 + $0x3b8] sm:$0xff]
      %v790 = vld [vmem:[%s3 + $0x3c0] sm:$0xff]
      %v791 = vld [vmem:[%s3 + $0x3c8] sm:$0xff]
      %v792 = vld [vmem:[%s3 + $0x3d0] sm:$0xff]
      %v793 = vld [vmem:[%s3 + $0x3d8] sm:$0xff]
      %v794 = vld [vmem:[%s3 + $0x3e0] sm:$0xff]
      %v795 = vld [vmem:[%s3 + $0x3e8] sm:$0xff]
      %v796 = vld [vmem:[%s3 + $0x3f0] sm:$0xff]
      %v797 = vld [vmem:[%s3 + $0x3f8] sm:$0xff]
      %v798 = vld [vmem:[%s3 + $0x400] sm:$0xff]
      %v799 = vld [vmem:[%s3 + $0x408] sm:$0xff]
      %v800 = vld [vmem:[%s3 + $0x410] sm:$0xff]
      %v801 = vld [vmem:[%s3 + $0x418] sm:$0xff]
      %v802 = vld [vmem:[%s3 + $0x420] sm:$0xff]
      %v803 = vld [vmem:[%s3 + $0x428] sm:$0xff]
      %v804 = vld [vmem:[%s3 + $0x430] sm:$0xff]
      %v805 = vld [vmem:[%s3 + $0x438] sm:$0xff]
      %v806 = vld [vmem:[%s3 + $0x440] sm:$0xff]
      %v807 = vld [vmem:[%s3 + $0x448] sm:$0xff]
      %v808 = vld [vmem:[%s3 + $0x450] sm:$0xff]
      %v809 = vld [vmem:[%s3 + $0x458] sm:$0xff]
      %v810 = vld [vmem:[%s3 + $0x460] sm:$0xff]
      %v811 = vld [vmem:[%s3 + $0x468] sm:$0xff]
      %v812 = vld [vmem:[%s3 + $0x470] sm:$0xff]
      %v813 = vld [vmem:[%s3 + $0x478] sm:$0xff]
      %v814 = vld [vmem:[%s4] sm:$0x3]
      %v816 = vlaneseq
      %v817 = vshrl.u32 %v816, 7
      %v818 = vsub.s32 0, %v817
      %v819 = vrot.slane %v814, %v818
      %v820 = vlaneseq
      %v821 = vshrl.u32 %v820, 7
      %v822 = vsub.s32 1, %v821
      %v823 = vrot.slane %v814, %v822
      %v970 = vunpack.c.l.b16 %v670
      %v971 = vunpack.c.h.b16 %v670
      %v972 = vunpack.c.l.b16 %v671
      %v973 = vunpack.c.h.b16 %v671
      %v974 = vunpack.c.l.b16 %v672
      %v975 = vunpack.c.h.b16 %v672
      %v976 = vunpack.c.l.b16 %v673
      %v977 = vunpack.c.h.b16 %v673
      %v978 = vunpack.c.l.b16 %v674
      %v979 = vunpack.c.h.b16 %v674
      %v980 = vunpack.c.l.b16 %v675
      %v981 = vunpack.c.h.b16 %v675
      %v982 = vunpack.c.l.b16 %v676
      %v983 = vunpack.c.h.b16 %v676
      %v984 = vunpack.c.l.b16 %v677
      %v985 = vunpack.c.h.b16 %v677
      %v986 = vunpack.c.l.b16 %v678
      %v987 = vunpack.c.h.b16 %v678
      %v988 = vunpack.c.l.b16 %v679
      %v989 = vunpack.c.h.b16 %v679
      %v990 = vunpack.c.l.b16 %v680
      %v991 = vunpack.c.h.b16 %v680
      %v992 = vunpack.c.l.b16 %v681
      %v993 = vunpack.c.h.b16 %v681
      %v994 = vunpack.c.l.b16 %v682
      %v995 = vunpack.c.h.b16 %v682
      %v996 = vunpack.c.l.b16 %v683
      %v997 = vunpack.c.h.b16 %v683
      %v998 = vunpack.c.l.b16 %v684
      %v999 = vunpack.c.h.b16 %v684
      %v1000 = vunpack.c.l.b16 %v685
      %v1001 = vunpack.c.h.b16 %v685
      %v1002 = vunpack.c.l.b16 %v686
      %v1003 = vunpack.c.h.b16 %v686
      %v1004 = vunpack.c.l.b16 %v687
      %v1005 = vunpack.c.h.b16 %v687
      %v1006 = vunpack.c.l.b16 %v688
      %v1007 = vunpack.c.h.b16 %v688
      %v1008 = vunpack.c.l.b16 %v689
      %v1009 = vunpack.c.h.b16 %v689
      %v1010 = vunpack.c.l.b16 %v690
      %v1011 = vunpack.c.h.b16 %v690
      %v1012 = vunpack.c.l.b16 %v691
      %v1013 = vunpack.c.h.b16 %v691
      %v1014 = vunpack.c.l.b16 %v692
      %v1015 = vunpack.c.h.b16 %v692
      %v1016 = vunpack.c.l.b16 %v693
      %v1017 = vunpack.c.h.b16 %v693
      %v1018 = vunpack.c.l.b16 %v694
      %v1019 = vunpack.c.h.b16 %v694
      %v1020 = vunpack.c.l.b16 %v695
      %v1021 = vunpack.c.h.b16 %v695
      %v1022 = vunpack.c.l.b16 %v696
      %v1023 = vunpack.c.h.b16 %v696
      %v1024 = vunpack.c.l.b16 %v697
      %v1025 = vunpack.c.h.b16 %v697
      %v1026 = vunpack.c.l.b16 %v698
      %v1027 = vunpack.c.h.b16 %v698
      %v1028 = vunpack.c.l.b16 %v699
      %v1029 = vunpack.c.h.b16 %v699
      %v1030 = vunpack.c.l.b16 %v700
      %v1031 = vunpack.c.h.b16 %v700
      %v1032 = vunpack.c.l.b16 %v701
      %v1033 = vunpack.c.h.b16 %v701
      %v1034 = vunpack.c.l.b16 %v702
      %v1035 = vunpack.c.h.b16 %v702
      %v1036 = vunpack.c.l.b16 %v703
      %v1037 = vunpack.c.h.b16 %v703
      %v1038 = vunpack.c.l.b16 %v704
      %v1039 = vunpack.c.h.b16 %v704
      %v1040 = vunpack.c.l.b16 %v705
      %v1041 = vunpack.c.h.b16 %v705
      %v1042 = vunpack.c.l.b16 %v706
      %v1043 = vunpack.c.h.b16 %v706
      %v1044 = vunpack.c.l.b16 %v707
      %v1045 = vunpack.c.h.b16 %v707
      %v1046 = vunpack.c.l.b16 %v708
      %v1047 = vunpack.c.h.b16 %v708
      %v1048 = vunpack.c.l.b16 %v709
      %v1049 = vunpack.c.h.b16 %v709
      %v1050 = vunpack.c.l.b16 %v710
      %v1051 = vunpack.c.h.b16 %v710
      %v1052 = vunpack.c.l.b16 %v711
      %v1053 = vunpack.c.h.b16 %v711
      %v1054 = vunpack.c.l.b16 %v712
      %v1055 = vunpack.c.h.b16 %v712
      %v1056 = vunpack.c.l.b16 %v713
      %v1057 = vunpack.c.h.b16 %v713
      %v1058 = vunpack.c.l.b16 %v714
      %v1059 = vunpack.c.h.b16 %v714
      %v1060 = vunpack.c.l.b16 %v715
      %v1061 = vunpack.c.h.b16 %v715
      %v1062 = vunpack.c.l.b16 %v716
      %v1063 = vunpack.c.h.b16 %v716
      %v1064 = vunpack.c.l.b16 %v717
      %v1065 = vunpack.c.h.b16 %v717
      %v1066 = vunpack.c.l.b16 %v718
      %v1067 = vunpack.c.h.b16 %v718
      %v1068 = vunpack.c.l.b16 %v719
      %v1069 = vunpack.c.h.b16 %v719
      %v1070 = vunpack.c.l.b16 %v720
      %v1071 = vunpack.c.h.b16 %v720
      %v1072 = vunpack.c.l.b16 %v721
      %v1073 = vunpack.c.h.b16 %v721
      %v1074 = vunpack.c.l.b16 %v722
      %v1075 = vunpack.c.h.b16 %v722
      %v1076 = vunpack.c.l.b16 %v723
      %v1077 = vunpack.c.h.b16 %v723
      %v1078 = vunpack.c.l.b16 %v724
      %v1079 = vunpack.c.h.b16 %v724
      %v1080 = vunpack.c.l.b16 %v725
      %v1081 = vunpack.c.h.b16 %v725
      %v1082 = vunpack.c.l.b16 %v726
      %v1083 = vunpack.c.h.b16 %v726
      %v1084 = vunpack.c.l.b16 %v727
      %v1085 = vunpack.c.h.b16 %v727
      %v1086 = vunpack.c.l.b16 %v728
      %v1087 = vunpack.c.h.b16 %v728
      %v1088 = vunpack.c.l.b16 %v729
      %v1089 = vunpack.c.h.b16 %v729
      %v1090 = vunpack.c.l.b16 %v730
      %v1091 = vunpack.c.h.b16 %v730
      %v1092 = vunpack.c.l.b16 %v731
      %v1093 = vunpack.c.h.b16 %v731
      %v1094 = vunpack.c.l.b16 %v732
      %v1095 = vunpack.c.h.b16 %v732
      %v1096 = vunpack.c.l.b16 %v733
      %v1097 = vunpack.c.h.b16 %v733
      %v1098 = vunpack.c.l.b16 %v734
      %v1099 = vunpack.c.h.b16 %v734
      %v1100 = vunpack.c.l.b16 %v735
      %v1101 = vunpack.c.h.b16 %v735
      %v1102 = vunpack.c.l.b16 %v736
      %v1103 = vunpack.c.h.b16 %v736
      %v1104 = vunpack.c.l.b16 %v737
      %v1105 = vunpack.c.h.b16 %v737
      %v1106 = vunpack.c.l.b16 %v738
      %v1107 = vunpack.c.h.b16 %v738
      %v1108 = vunpack.c.l.b16 %v739
      %v1109 = vunpack.c.h.b16 %v739
      %v1110 = vunpack.c.l.b16 %v740
      %v1111 = vunpack.c.h.b16 %v740
      %v1112 = vunpack.c.l.b16 %v741
      %v1113 = vunpack.c.h.b16 %v741
      %v1114 = vunpack.c.l.b16 %v742
      %v1115 = vunpack.c.h.b16 %v742
      %v1116 = vunpack.c.l.b16 %v743
      %v1117 = vunpack.c.h.b16 %v743
      %v1118 = vunpack.c.l.b16 %v744
      %v1119 = vunpack.c.h.b16 %v744
      %v1120 = vunpack.c.l.b16 %v745
      %v1121 = vunpack.c.h.b16 %v745
      %v1122 = vunpack.c.l.b16 %v746
      %v1123 = vunpack.c.h.b16 %v746
      %v1124 = vunpack.c.l.b16 %v747
      %v1125 = vunpack.c.h.b16 %v747
      %v1126 = vunpack.c.l.b16 %v748
      %v1127 = vunpack.c.h.b16 %v748
      %v1128 = vunpack.c.l.b16 %v749
      %v1129 = vunpack.c.h.b16 %v749
      %v1130 = vunpack.c.l.b16 %v750
      %v1131 = vunpack.c.h.b16 %v750
      %v1132 = vunpack.c.l.b16 %v751
      %v1133 = vunpack.c.h.b16 %v751
      %v1134 = vunpack.c.l.b16 %v752
      %v1135 = vunpack.c.h.b16 %v752
      %v1136 = vunpack.c.l.b16 %v753
      %v1137 = vunpack.c.h.b16 %v753
      %v1138 = vunpack.c.l.b16 %v754
      %v1139 = vunpack.c.h.b16 %v754
      %v1140 = vunpack.c.l.b16 %v755
      %v1141 = vunpack.c.h.b16 %v755
      %v1142 = vunpack.c.l.b16 %v756
      %v1143 = vunpack.c.h.b16 %v756
      %v1144 = vunpack.c.l.b16 %v757
      %v1145 = vunpack.c.h.b16 %v757
      %v1146 = vunpack.c.l.b16 %v758
      %v1147 = vunpack.c.h.b16 %v758
      %v1148 = vunpack.c.l.b16 %v759
      %v1149 = vunpack.c.h.b16 %v759
      %v1150 = vunpack.c.l.b16 %v760
      %v1151 = vunpack.c.h.b16 %v760
      %v1152 = vunpack.c.l.b16 %v761
      %v1153 = vunpack.c.h.b16 %v761
      %v1154 = vunpack.c.l.b16 %v762
      %v1155 = vunpack.c.h.b16 %v762
      %v1156 = vunpack.c.l.b16 %v763
      %v1157 = vunpack.c.h.b16 %v763
      %v1158 = vunpack.c.l.b16 %v764
      %v1159 = vunpack.c.h.b16 %v764
      %v1160 = vunpack.c.l.b16 %v765
      %v1161 = vunpack.c.h.b16 %v765
      %v1162 = vunpack.c.l.b16 %v766
      %v1163 = vunpack.c.h.b16 %v766
      %v1164 = vunpack.c.l.b16 %v767
      %v1165 = vunpack.c.h.b16 %v767
      %v1166 = vunpack.c.l.b16 %v768
      %v1167 = vunpack.c.h.b16 %v768
      %v1168 = vunpack.c.l.b16 %v769
      %v1169 = vunpack.c.h.b16 %v769
      %v1170 = vunpack.c.l.b16 %v770
      %v1171 = vunpack.c.h.b16 %v770
      %v1172 = vunpack.c.l.b16 %v771
      %v1173 = vunpack.c.h.b16 %v771
      %v1174 = vunpack.c.l.b16 %v772
      %v1175 = vunpack.c.h.b16 %v772
      %v1176 = vunpack.c.l.b16 %v773
      %v1177 = vunpack.c.h.b16 %v773
      %v1178 = vunpack.c.l.b16 %v774
      %v1179 = vunpack.c.h.b16 %v774
      %v1180 = vunpack.c.l.b16 %v775
      %v1181 = vunpack.c.h.b16 %v775
      %v1182 = vunpack.c.l.b16 %v776
      %v1183 = vunpack.c.h.b16 %v776
      %v1184 = vunpack.c.l.b16 %v777
      %v1185 = vunpack.c.h.b16 %v777
      %v1186 = vunpack.c.l.b16 %v778
      %v1187 = vunpack.c.h.b16 %v778
      %v1188 = vunpack.c.l.b16 %v779
      %v1189 = vunpack.c.h.b16 %v779
      %v1190 = vunpack.c.l.b16 %v780
      %v1191 = vunpack.c.h.b16 %v780
      %v1192 = vunpack.c.l.b16 %v781
      %v1193 = vunpack.c.h.b16 %v781
      %v1194 = vunpack.c.l.b16 %v782
      %v1195 = vunpack.c.h.b16 %v782
      %v1196 = vunpack.c.l.b16 %v783
      %v1197 = vunpack.c.h.b16 %v783
      %v1198 = vunpack.c.l.b16 %v784
      %v1199 = vunpack.c.h.b16 %v784
      %v1200 = vunpack.c.l.b16 %v785
      %v1201 = vunpack.c.h.b16 %v785
      %v1202 = vunpack.c.l.b16 %v786
      %v1203 = vunpack.c.h.b16 %v786
      %v1204 = vunpack.c.l.b16 %v787
      %v1205 = vunpack.c.h.b16 %v787
      %v1206 = vunpack.c.l.b16 %v788
      %v1207 = vunpack.c.h.b16 %v788
      %v1208 = vunpack.c.l.b16 %v789
      %v1209 = vunpack.c.h.b16 %v789
      %v1210 = vunpack.c.l.b16 %v790
      %v1211 = vunpack.c.h.b16 %v790
      %v1212 = vunpack.c.l.b16 %v791
      %v1213 = vunpack.c.h.b16 %v791
      %v1214 = vunpack.c.l.b16 %v792
      %v1215 = vunpack.c.h.b16 %v792
      %v1216 = vunpack.c.l.b16 %v793
      %v1217 = vunpack.c.h.b16 %v793
      %v1218 = vunpack.c.l.b16 %v794
      %v1219 = vunpack.c.h.b16 %v794
      %v1220 = vunpack.c.l.b16 %v795
      %v1221 = vunpack.c.h.b16 %v795
      %v1222 = vunpack.c.l.b16 %v796
      %v1223 = vunpack.c.h.b16 %v796
      %v1224 = vunpack.c.l.b16 %v797
      %v1225 = vunpack.c.h.b16 %v797
      %v1226 = vunpack.c.l.b16 %v798
      %v1227 = vunpack.c.h.b16 %v798
      %v1228 = vunpack.c.l.b16 %v799
      %v1229 = vunpack.c.h.b16 %v799
      %v1230 = vunpack.c.l.b16 %v800
      %v1231 = vunpack.c.h.b16 %v800
      %v1232 = vunpack.c.l.b16 %v801
      %v1233 = vunpack.c.h.b16 %v801
      %v1234 = vunpack.c.l.b16 %v802
      %v1235 = vunpack.c.h.b16 %v802
      %v1236 = vunpack.c.l.b16 %v803
      %v1237 = vunpack.c.h.b16 %v803
      %v1238 = vunpack.c.l.b16 %v804
      %v1239 = vunpack.c.h.b16 %v804
      %v1240 = vunpack.c.l.b16 %v805
      %v1241 = vunpack.c.h.b16 %v805
      %v1242 = vunpack.c.l.b16 %v806
      %v1243 = vunpack.c.h.b16 %v806
      %v1244 = vunpack.c.l.b16 %v807
      %v1245 = vunpack.c.h.b16 %v807
      %v1246 = vunpack.c.l.b16 %v808
      %v1247 = vunpack.c.h.b16 %v808
      %v1248 = vunpack.c.l.b16 %v809
      %v1249 = vunpack.c.h.b16 %v809
      %v1250 = vunpack.c.l.b16 %v810
      %v1251 = vunpack.c.h.b16 %v810
      %v1252 = vunpack.c.l.b16 %v811
      %v1253 = vunpack.c.h.b16 %v811
      %v1254 = vunpack.c.l.b16 %v812
      %v1255 = vunpack.c.h.b16 %v812
      %v1256 = vunpack.c.l.b16 %v813
      %v1257 = vunpack.c.h.b16 %v813
      %v1258 = vpack.c.b16 %v972, %v970
      %v1259 = vpack.c.b16 %v973, %v971
      %v1260 = vpack.c.b16 %v976, %v974
      %v1261 = vpack.c.b16 %v977, %v975
      %v1262 = vpack.c.b16 %v980, %v978
      %v1263 = vpack.c.b16 %v981, %v979
      %v1264 = vpack.c.b16 %v984, %v982
      %v1265 = vpack.c.b16 %v985, %v983
      %v1266 = vpack.c.b16 %v988, %v986
      %v1267 = vpack.c.b16 %v989, %v987
      %v1268 = vpack.c.b16 %v992, %v990
      %v1269 = vpack.c.b16 %v993, %v991
      %v1270 = vpack.c.b16 %v996, %v994
      %v1271 = vpack.c.b16 %v997, %v995
      %v1272 = vpack.c.b16 %v1000, %v998
      %v1273 = vpack.c.b16 %v1001, %v999
      %v1274 = vpack.c.b16 %v1004, %v1002
      %v1275 = vpack.c.b16 %v1005, %v1003
      %v1276 = vpack.c.b16 %v1008, %v1006
      %v1277 = vpack.c.b16 %v1009, %v1007
      %v1278 = vpack.c.b16 %v1012, %v1010
      %v1279 = vpack.c.b16 %v1013, %v1011
      %v1280 = vpack.c.b16 %v1016, %v1014
      %v1281 = vpack.c.b16 %v1017, %v1015
      %v1282 = vpack.c.b16 %v1020, %v1018
      %v1283 = vpack.c.b16 %v1021, %v1019
      %v1284 = vpack.c.b16 %v1024, %v1022
      %v1285 = vpack.c.b16 %v1025, %v1023
      %v1286 = vpack.c.b16 %v1028, %v1026
      %v1287 = vpack.c.b16 %v1029, %v1027
      %v1288 = vpack.c.b16 %v1032, %v1030
      %v1289 = vpack.c.b16 %v1033, %v1031
      %v1290 = vpack.c.b16 %v1036, %v1034
      %v1291 = vpack.c.b16 %v1037, %v1035
      %v1292 = vpack.c.b16 %v1040, %v1038
      %v1293 = vpack.c.b16 %v1041, %v1039
      %v1294 = vpack.c.b16 %v1044, %v1042
      %v1295 = vpack.c.b16 %v1045, %v1043
      %v1296 = vpack.c.b16 %v1048, %v1046
      %v1297 = vpack.c.b16 %v1049, %v1047
      %v1298 = vpack.c.b16 %v1052, %v1050
      %v1299 = vpack.c.b16 %v1053, %v1051
      %v1300 = vpack.c.b16 %v1056, %v1054
      %v1301 = vpack.c.b16 %v1057, %v1055
      %v1302 = vpack.c.b16 %v1060, %v1058
      %v1303 = vpack.c.b16 %v1061, %v1059
      %v1304 = vpack.c.b16 %v1064, %v1062
      %v1305 = vpack.c.b16 %v1065, %v1063
      %v1306 = vpack.c.b16 %v1068, %v1066
      %v1307 = vpack.c.b16 %v1069, %v1067
      %v1308 = vpack.c.b16 %v1072, %v1070
      %v1309 = vpack.c.b16 %v1073, %v1071
      %v1310 = vpack.c.b16 %v1076, %v1074
      %v1311 = vpack.c.b16 %v1077, %v1075
      %v1312 = vpack.c.b16 %v1080, %v1078
      %v1313 = vpack.c.b16 %v1081, %v1079
      %v1314 = vpack.c.b16 %v1084, %v1082
      %v1315 = vpack.c.b16 %v1085, %v1083
      %v1316 = vpack.c.b16 %v1088, %v1086
      %v1317 = vpack.c.b16 %v1089, %v1087
      %v1318 = vpack.c.b16 %v1092, %v1090
      %v1319 = vpack.c.b16 %v1093, %v1091
      %v1320 = vpack.c.b16 %v1096, %v1094
      %v1321 = vpack.c.b16 %v1097, %v1095
      %v1322 = vpack.c.b16 %v1100, %v1098
      %v1323 = vpack.c.b16 %v1101, %v1099
      %v1324 = vpack.c.b16 %v1104, %v1102
      %v1325 = vpack.c.b16 %v1105, %v1103
      %v1326 = vpack.c.b16 %v1108, %v1106
      %v1327 = vpack.c.b16 %v1109, %v1107
      %v1328 = vpack.c.b16 %v1112, %v1110
      %v1329 = vpack.c.b16 %v1113, %v1111
      %v1330 = vpack.c.b16 %v1116, %v1114
      %v1331 = vpack.c.b16 %v1117, %v1115
      %v1332 = vpack.c.b16 %v1120, %v1118
      %v1333 = vpack.c.b16 %v1121, %v1119
      %v1334 = vpack.c.b16 %v1124, %v1122
      %v1335 = vpack.c.b16 %v1125, %v1123
      %v1336 = vpack.c.b16 %v1128, %v1126
      %v1337 = vpack.c.b16 %v1129, %v1127
      %v1338 = vpack.c.b16 %v1132, %v1130
      %v1339 = vpack.c.b16 %v1133, %v1131
      %v1340 = vpack.c.b16 %v1136, %v1134
      %v1341 = vpack.c.b16 %v1137, %v1135
      %v1342 = vpack.c.b16 %v1140, %v1138
      %v1343 = vpack.c.b16 %v1141, %v1139
      %v1344 = vpack.c.b16 %v1144, %v1142
      %v1345 = vpack.c.b16 %v1145, %v1143
      %v1346 = vpack.c.b16 %v1148, %v1146
      %v1347 = vpack.c.b16 %v1149, %v1147
      %v1348 = vpack.c.b16 %v1152, %v1150
      %v1349 = vpack.c.b16 %v1153, %v1151
      %v1350 = vpack.c.b16 %v1156, %v1154
      %v1351 = vpack.c.b16 %v1157, %v1155
      %v1352 = vpack.c.b16 %v1160, %v1158
      %v1353 = vpack.c.b16 %v1161, %v1159
      %v1354 = vpack.c.b16 %v1164, %v1162
      %v1355 = vpack.c.b16 %v1165, %v1163
      %v1356 = vpack.c.b16 %v1168, %v1166
      %v1357 = vpack.c.b16 %v1169, %v1167
      %v1358 = vpack.c.b16 %v1172, %v1170
      %v1359 = vpack.c.b16 %v1173, %v1171
      %v1360 = vpack.c.b16 %v1176, %v1174
      %v1361 = vpack.c.b16 %v1177, %v1175
      %v1362 = vpack.c.b16 %v1180, %v1178
      %v1363 = vpack.c.b16 %v1181, %v1179
      %v1364 = vpack.c.b16 %v1184, %v1182
      %v1365 = vpack.c.b16 %v1185, %v1183
      %v1366 = vpack.c.b16 %v1188, %v1186
      %v1367 = vpack.c.b16 %v1189, %v1187
      %v1368 = vpack.c.b16 %v1192, %v1190
      %v1369 = vpack.c.b16 %v1193, %v1191
      %v1370 = vpack.c.b16 %v1196, %v1194
      %v1371 = vpack.c.b16 %v1197, %v1195
      %v1372 = vpack.c.b16 %v1200, %v1198
      %v1373 = vpack.c.b16 %v1201, %v1199
      %v1374 = vpack.c.b16 %v1204, %v1202
      %v1375 = vpack.c.b16 %v1205, %v1203
      %v1376 = vpack.c.b16 %v1208, %v1206
      %v1377 = vpack.c.b16 %v1209, %v1207
      %v1378 = vpack.c.b16 %v1212, %v1210
      %v1379 = vpack.c.b16 %v1213, %v1211
      %v1380 = vpack.c.b16 %v1216, %v1214
      %v1381 = vpack.c.b16 %v1217, %v1215
      %v1382 = vpack.c.b16 %v1220, %v1218
      %v1383 = vpack.c.b16 %v1221, %v1219
      %v1384 = vpack.c.b16 %v1224, %v1222
      %v1385 = vpack.c.b16 %v1225, %v1223
      %v1386 = vpack.c.b16 %v1228, %v1226
      %v1387 = vpack.c.b16 %v1229, %v1227
      %v1388 = vpack.c.b16 %v1232, %v1230
      %v1389 = vpack.c.b16 %v1233, %v1231
      %v1390 = vpack.c.b16 %v1236, %v1234
      %v1391 = vpack.c.b16 %v1237, %v1235
      %v1392 = vpack.c.b16 %v1240, %v1238
      %v1393 = vpack.c.b16 %v1241, %v1239
      %v1394 = vpack.c.b16 %v1244, %v1242
      %v1395 = vpack.c.b16 %v1245, %v1243
      %v1396 = vpack.c.b16 %v1248, %v1246
      %v1397 = vpack.c.b16 %v1249, %v1247
      %v1398 = vpack.c.b16 %v1252, %v1250
      %v1399 = vpack.c.b16 %v1253, %v1251
      %v1400 = vpack.c.b16 %v1256, %v1254
      %v1401 = vpack.c.b16 %v1257, %v1255
      %1546 = vmatprep.subr.bf16.mxu0 %v1259
      %1547 = vmatpush1.bf16.msra.mxu0 %v1258
      %1548 = vmatprep.subr.bf16.mxu0 %v1261
      %1549 = vmatpush1.bf16.msra.mxu0 %v1260
      %1550 = vmatprep.subr.bf16.mxu0 %v1263
      %1551 = vmatpush1.bf16.msra.mxu0 %v1262
      %1552 = vmatprep.subr.bf16.mxu0 %v1265
      %1553 = vmatpush1.bf16.msra.mxu0 %v1264
      %1554 = vmatprep.subr.bf16.mxu0 %v1267
      %1555 = vmatpush1.bf16.msra.mxu0 %v1266
      %1556 = vmatprep.subr.bf16.mxu0 %v1269
      %1557 = vmatpush1.bf16.msra.mxu0 %v1268
      %1558 = vmatprep.subr.bf16.mxu0 %v1271
      %1559 = vmatpush1.bf16.msra.mxu0 %v1270
      %1560 = vmatprep.subr.bf16.mxu0 %v1273
      %1561 = vmatpush1.bf16.msra.mxu0 %v1272
      %1562 = vmatprep.subr.bf16.mxu0 %v1275
      %1563 = vmatpush1.bf16.msra.mxu0 %v1274
      %1564 = vmatprep.subr.bf16.mxu0 %v1277
      %1565 = vmatpush1.bf16.msra.mxu0 %v1276
      %1566 = vmatprep.subr.bf16.mxu0 %v1279
      %1567 = vmatpush1.bf16.msra.mxu0 %v1278
      %1568 = vmatprep.subr.bf16.mxu0 %v1281
      %1569 = vmatpush1.bf16.msra.mxu0 %v1280
      %1570 = vmatprep.subr.bf16.mxu0 %v1283
      %1571 = vmatpush1.bf16.msra.mxu0 %v1282
      %1572 = vmatprep.subr.bf16.mxu0 %v1285
      %1573 = vmatpush1.bf16.msra.mxu0 %v1284
      %1574 = vmatprep.subr.bf16.mxu0 %v1287
      %1575 = vmatpush1.bf16.msra.mxu0 %v1286
      %1576 = vmatprep.subr.bf16.mxu0 %v1289
      %1577 = vmatpush1.bf16.msra.mxu0 %v1288
      %1578 = vmatprep.mubr.bf16.mxu0 %v605
      %1579 = vmatmul.mubr.bf16.gmra.mrb[0].mxu0 %v589
      %v1580 = vpop.f32.mrb[0].mxu0
      %v1581 = vadd.f32 %v819, %v1580
      %v1582 = vpop.f32.mrb[0].mxu0
      %v1583 = vadd.f32 %v823, %v1582
      %v1584 = vpop.f32.mrb[0].mxu0
      %v1585 = vadd.f32 %v819, %v1584
      %v1586 = vpop.f32.mrb[0].mxu0
      %v1587 = vadd.f32 %v823, %v1586
      %1588 = vmatprep.mubr.bf16.mxu0 %v613
      %1589 = vmatmul.mubr.bf16.gmra.mrb[0].mxu0 %v590
      %v1590 = vpop.f32.mrb[0].mxu0
      %v1591 = vadd.f32 %v819, %v1590
      %v1592 = vpop.f32.mrb[0].mxu0
      %v1593 = vadd.f32 %v823, %v1592
      %v1594 = vpop.f32.mrb[0].mxu0
      %v1595 = vadd.f32 %v819, %v1594
      %v1596 = vpop.f32.mrb[0].mxu0
      %v1597 = vadd.f32 %v823, %v1596
      %1598 = vdwg.mxu0
      %1599 = vmatprep.subr.bf16.mxu0 %v1291
      %1600 = vmatpush1.bf16.msra.mxu0 %v1290
      %1601 = vmatprep.subr.bf16.mxu0 %v1293
      %1602 = vmatpush1.bf16.msra.mxu0 %v1292
      %1603 = vmatprep.subr.bf16.mxu0 %v1295
      %1604 = vmatpush1.bf16.msra.mxu0 %v1294
      %1605 = vmatprep.subr.bf16.mxu0 %v1297
      %1606 = vmatpush1.bf16.msra.mxu0 %v1296
      %1607 = vmatprep.subr.bf16.mxu0 %v1299
      %1608 = vmatpush1.bf16.msra.mxu0 %v1298
      %1609 = vmatprep.subr.bf16.mxu0 %v1301
      %1610 = vmatpush1.bf16.msra.mxu0 %v1300
      %1611 = vmatprep.subr.bf16.mxu0 %v1303
      %1612 = vmatpush1.bf16.msra.mxu0 %v1302
      %1613 = vmatprep.subr.bf16.mxu0 %v1305
      %1614 = vmatpush1.bf16.msra.mxu0 %v1304
      %1615 = vmatprep.subr.bf16.mxu0 %v1307
      %1616 = vmatpush1.bf16.msra.mxu0 %v1306
      %1617 = vmatprep.subr.bf16.mxu0 %v1309
      %1618 = vmatpush1.bf16.msra.mxu0 %v1308
      %1619 = vmatprep.subr.bf16.mxu0 %v1311
      %1620 = vmatpush1.bf16.msra.mxu0 %v1310
      %1621 = vmatprep.subr.bf16.mxu0 %v1313
      %1622 = vmatpush1.bf16.msra.mxu0 %v1312
      %1623 = vmatprep.subr.bf16.mxu0 %v1315
      %1624 = vmatpush1.bf16.msra.mxu0 %v1314
      %1625 = vmatprep.subr.bf16.mxu0 %v1317
      %1626 = vmatpush1.bf16.msra.mxu0 %v1316
      %1627 = vmatprep.subr.bf16.mxu0 %v1319
      %1628 = vmatpush1.bf16.msra.mxu0 %v1318
      %1629 = vmatprep.subr.bf16.mxu0 %v1321
      %1630 = vmatpush1.bf16.msra.mxu0 %v1320
      %1631 = vmatprep.mubr.bf16.mxu0 %v630
      %1632 = vmatmul.mubr.bf16.gmra.mrb[0].mxu0 %v622
      %v1633 = vpop.f32.mrb[0].mxu0
      %v1634 = vadd.f32 %v1581, %v1633
      %v1635 = vpop.f32.mrb[0].mxu0
      %v1636 = vadd.f32 %v1583, %v1635
      %v1637 = vpop.f32.mrb[0].mxu0
      %v1638 = vadd.f32 %v1585, %v1637
      %v1639 = vpop.f32.mrb[0].mxu0
      %v1640 = vadd.f32 %v1587, %v1639
      %1641 = vmatprep.mubr.bf16.mxu0 %v632
      %1642 = vmatmul.mubr.bf16.gmra.mrb[0].mxu0 %v624
      %v1643 = vpop.f32.mrb[0].mxu0
      %v1644 = vadd.f32 %v1591, %v1643
      %v1645 = vpop.f32.mrb[0].mxu0
      %v1646 = vadd.f32 %v1593, %v1645
      %v1647 = vpop.f32.mrb[0].mxu0
      %v1648 = vadd.f32 %v1595, %v1647
      %v1649 = vpop.f32.mrb[0].mxu0
      %v1650 = vadd.f32 %v1597, %v1649
      %1651 = vdwg.mxu0
      %1652 = vmatprep.subr.bf16.mxu0 %v1323
      %1653 = vmatpush1.bf16.msra.mxu0 %v1322
      %1654 = vmatprep.subr.bf16.mxu0 %v1325
      %1655 = vmatpush1.bf16.msra.mxu0 %v1324
      %1656 = vmatprep.subr.bf16.mxu0 %v1327
      %1657 = vmatpush1.bf16.msra.mxu0 %v1326
      %1658 = vmatprep.subr.bf16.mxu0 %v1329
      %1659 = vmatpush1.bf16.msra.mxu0 %v1328
      %1660 = vmatprep.subr.bf16.mxu0 %v1331
      %1661 = vmatpush1.bf16.msra.mxu0 %v1330
      %1662 = vmatprep.subr.bf16.mxu0 %v1333
      %1663 = vmatpush1.bf16.msra.mxu0 %v1332
      %1664 = vmatprep.subr.bf16.mxu0 %v1335
      %1665 = vmatpush1.bf16.msra.mxu0 %v1334
      %1666 = vmatprep.subr.bf16.mxu0 %v1337
      %1667 = vmatpush1.bf16.msra.mxu0 %v1336
      %1668 = vmatprep.subr.bf16.mxu0 %v1339
      %1669 = vmatpush1.bf16.msra.mxu0 %v1338
      %1670 = vmatprep.subr.bf16.mxu0 %v1341
      %1671 = vmatpush1.bf16.msra.mxu0 %v1340
      %1672 = vmatprep.subr.bf16.mxu0 %v1343
      %1673 = vmatpush1.bf16.msra.mxu0 %v1342
      %1674 = vmatprep.subr.bf16.mxu0 %v1345
      %1675 = vmatpush1.bf16.msra.mxu0 %v1344
      %1676 = vmatprep.subr.bf16.mxu0 %v1347
      %1677 = vmatpush1.bf16.msra.mxu0 %v1346
      %1678 = vmatprep.subr.bf16.mxu0 %v1349
      %1679 = vmatpush1.bf16.msra.mxu0 %v1348
      %1680 = vmatprep.subr.bf16.mxu0 %v1351
      %1681 = vmatpush1.bf16.msra.mxu0 %v1350
      %1682 = vmatprep.subr.bf16.mxu0 %v1353
      %1683 = vmatpush1.bf16.msra.mxu0 %v1352
      %1684 = vmatprep.mubr.bf16.mxu0 %v654
      %1685 = vmatmul.mubr.bf16.gmra.mrb[0].mxu0 %v642
      %v1686 = vpop.f32.mrb[0].mxu0
      %v1687 = vadd.f32 %v1634, %v1686
      %v1688 = vpop.f32.mrb[0].mxu0
      %v1689 = vadd.f32 %v1636, %v1688
      %v1690 = vpop.f32.mrb[0].mxu0
      %v1691 = vadd.f32 %v1638, %v1690
      %v1692 = vpop.f32.mrb[0].mxu0
      %v1693 = vadd.f32 %v1640, %v1692
      %1694 = vmatprep.mubr.bf16.mxu0 %v656
      %1695 = vmatmul.mubr.bf16.gmra.mrb[0].mxu0 %v648
      %v1696 = vpop.f32.mrb[0].mxu0
      %v1697 = vadd.f32 %v1644, %v1696
      %v1698 = vpop.f32.mrb[0].mxu0
      %v1699 = vadd.f32 %v1646, %v1698
      %v1700 = vpop.f32.mrb[0].mxu0
      %v1701 = vadd.f32 %v1648, %v1700
      %v1702 = vpop.f32.mrb[0].mxu0
      %v1703 = vadd.f32 %v1650, %v1702
      %1704 = vdwg.mxu0
      %1705 = vmatprep.subr.bf16.mxu0 %v1355
      %1706 = vmatpush1.bf16.msra.mxu0 %v1354
      %1707 = vmatprep.subr.bf16.mxu0 %v1357
      %1708 = vmatpush1.bf16.msra.mxu0 %v1356
      %1709 = vmatprep.subr.bf16.mxu0 %v1359
      %1710 = vmatpush1.bf16.msra.mxu0 %v1358
      %1711 = vmatprep.subr.bf16.mxu0 %v1361
      %1712 = vmatpush1.bf16.msra.mxu0 %v1360
      %1713 = vmatprep.subr.bf16.mxu0 %v1363
      %1714 = vmatpush1.bf16.msra.mxu0 %v1362
      %1715 = vmatprep.subr.bf16.mxu0 %v1365
      %1716 = vmatpush1.bf16.msra.mxu0 %v1364
      %1717 = vmatprep.subr.bf16.mxu0 %v1367
      %1718 = vmatpush1.bf16.msra.mxu0 %v1366
      %1719 = vmatprep.subr.bf16.mxu0 %v1369
      %1720 = vmatpush1.bf16.msra.mxu0 %v1368
      %1721 = vmatprep.subr.bf16.mxu0 %v1371
      %1722 = vmatpush1.bf16.msra.mxu0 %v1370
      %1723 = vmatprep.subr.bf16.mxu0 %v1373
      %1724 = vmatpush1.bf16.msra.mxu0 %v1372
      %1725 = vmatprep.subr.bf16.mxu0 %v1375
      %1726 = vmatpush1.bf16.msra.mxu0 %v1374
      %1727 = vmatprep.subr.bf16.mxu0 %v1377
      %1728 = vmatpush1.bf16.msra.mxu0 %v1376
      %1729 = vmatprep.subr.bf16.mxu0 %v1379
      %1730 = vmatpush1.bf16.msra.mxu0 %v1378
      %1731 = vmatprep.subr.bf16.mxu0 %v1381
      %1732 = vmatpush1.bf16.msra.mxu0 %v1380
      %1733 = vmatprep.subr.bf16.mxu0 %v1383
      %1734 = vmatpush1.bf16.msra.mxu0 %v1382
      %1735 = vmatprep.subr.bf16.mxu0 %v1385
      %1736 = vmatpush1.bf16.msra.mxu0 %v1384
      %1737 = vmatprep.mubr.bf16.mxu0 %v613
      %1738 = vmatmul.mubr.bf16.gmra.mrb[0].mxu0 %v590
      %v1739 = vpop.f32.mrb[0].mxu0
      %v1740 = vadd.f32 %v1687, %v1739
      %v1741 = vpop.f32.mrb[0].mxu0
      %v1742 = vadd.f32 %v1689, %v1741
      %v1743 = vpop.f32.mrb[0].mxu0
      %v1744 = vadd.f32 %v1691, %v1743
      %v1745 = vpop.f32.mrb[0].mxu0
      %v1746 = vadd.f32 %v1693, %v1745
      %1747 = vmatprep.mubr.bf16.mxu0 %v664
      %1748 = vmatmul.mubr.bf16.gmra.mrb[0].mxu0 %v591
      %v1749 = vpop.f32.mrb[0].mxu0
      %v1750 = vadd.f32 %v1697, %v1749
      %v1751 = vpop.f32.mrb[0].mxu0
      %v1752 = vadd.f32 %v1699, %v1751
      %v1753 = vpop.f32.mrb[0].mxu0
      %v1754 = vadd.f32 %v1701, %v1753
      %v1755 = vpop.f32.mrb[0].mxu0
      %v1756 = vadd.f32 %v1703, %v1755
      %1757 = vdwg.mxu0
      %1758 = vmatprep.subr.bf16.mxu0 %v1387
      %1759 = vmatpush1.bf16.msra.mxu0 %v1386
      %1760 = vmatprep.subr.bf16.mxu0 %v1389
      %1761 = vmatpush1.bf16.msra.mxu0 %v1388
      %1762 = vmatprep.subr.bf16.mxu0 %v1391
      %1763 = vmatpush1.bf16.msra.mxu0 %v1390
      %1764 = vmatprep.subr.bf16.mxu0 %v1393
      %1765 = vmatpush1.bf16.msra.mxu0 %v1392
      %1766 = vmatprep.subr.bf16.mxu0 %v1395
      %1767 = vmatpush1.bf16.msra.mxu0 %v1394
      %1768 = vmatprep.subr.bf16.mxu0 %v1397
      %1769 = vmatpush1.bf16.msra.mxu0 %v1396
      %1770 = vmatprep.subr.bf16.mxu0 %v1399
      %1771 = vmatpush1.bf16.msra.mxu0 %v1398
      %1772 = vmatprep.subr.bf16.mxu0 %v1401
      %1773 = vmatpush1.bf16.msra.mxu0 %v1400
      %1774 = vmatprep.subr.bf16.mxu0 0
      %1775 = vmatpush1.bf16.msra.mxu0 0
      %1776 = vmatprep.subr.bf16.mxu0 0
      %1777 = vmatpush1.bf16.msra.mxu0 0
      %1778 = vmatprep.subr.bf16.mxu0 0
      %1779 = vmatpush1.bf16.msra.mxu0 0
      %1780 = vmatprep.subr.bf16.mxu0 0
      %1781 = vmatpush1.bf16.msra.mxu0 0
      %1782 = vmatprep.subr.bf16.mxu0 0
      %1783 = vmatpush1.bf16.msra.mxu0 0
      %1784 = vmatprep.subr.bf16.mxu0 0
      %1785 = vmatpush1.bf16.msra.mxu0 0
      %1786 = vmatprep.subr.bf16.mxu0 0
      %1787 = vmatpush1.bf16.msra.mxu0 0
      %1788 = vmatprep.subr.bf16.mxu0 0
      %1789 = vmatpush1.bf16.msra.mxu0 0
      %1790 = vmatprep.mubr.bf16.mxu0 0
      %1791 = vmatmul.mubr.bf16.gmra.mrb[0].mxu0 %v624
      %v1792 = vpop.f32.mrb[0].mxu0
      %v1793 = vadd.f32 %v1740, %v1792
      %v1794 = vpop.f32.mrb[0].mxu0
      %v1795 = vadd.f32 %v1742, %v1794
      %v1796 = vpop.f32.mrb[0].mxu0
      %v1797 = vadd.f32 %v1744, %v1796
      %v1798 = vpop.f32.mrb[0].mxu0
      %v1799 = vadd.f32 %v1746, %v1798
      %1800 = vmatprep.mubr.bf16.mxu0 0
      %1801 = vmatmul.mubr.bf16.gmra.mrb[0].mxu0 %v668
      %v1802 = vpop.f32.mrb[0].mxu0
      %v1803 = vadd.f32 %v1750, %v1802
      %v1804 = vpop.f32.mrb[0].mxu0
      %v1805 = vadd.f32 %v1752, %v1804
      %v1806 = vpop.f32.mrb[0].mxu0
      %v1807 = vadd.f32 %v1754, %v1806
      %v1808 = vpop.f32.mrb[0].mxu0
      %v1809 = vadd.f32 %v1756, %v1808
      %1810 = vdwg.mxu0
      %v1811 = vmax.f32 %v1793, 0.0
      %v1812 = vmax.f32 %v1795, 0.0
      %v1813 = vmax.f32 %v1797, 0.0
      %v1814 = vmax.f32 %v1799, 0.0
      %v1815 = vmax.f32 %v1803, 0.0
      %v1816 = vmax.f32 %v1805, 0.0
      %v1817 = vmax.f32 %v1807, 0.0
      %v1818 = vmax.f32 %v1809, 0.0
      %v1819 = vmax.f32 %v1811, %v1812
      %v1820 = vmax.f32 %v1813, %v1814
      %v1821 = vmax.f32 %v1815, %v1816
      %v1822 = vmax.f32 %v1817, %v1818
      %1827 = vrot.lane.b32.xlu0 %v1819, 64
      %v1828 = vpop.permute.xlu0 %1827
      %1829 = vrot.lane.b32.xlu0 %v1820, 64
      %v1830 = vpop.permute.xlu0 %1829
      %1831 = vrot.lane.b32.xlu0 %v1821, 64
      %v1832 = vpop.permute.xlu0 %1831
      %1833 = vrot.lane.b32.xlu0 %v1822, 64
      %v1834 = vpop.permute.xlu0 %1833
      %v1839 = vmax.f32 %v1819, %v1828
      %v1840 = vmax.f32 %v1820, %v1830
      %v1841 = vmax.f32 %v1821, %v1832
      %v1842 = vmax.f32 %v1822, %v1834
      %v1843 = vpack.c.bf16 %v1839, %v1839
      %v1844 = vpack.c.bf16 %v1840, %v1840
      %v1845 = vpack.c.bf16 %v1841, %v1841
      %v1846 = vpack.c.bf16 %v1842, %v1842
      %vm1847 = vcmask 517120
      %1848 = vst.msk [vmem:[%s226] sm:$0x3] %vm1847, %v1843
      %1849 = vst.msk [vmem:[%s226 + $0x2] sm:$0x3] %vm1847, %v1844
      %1850 = vst.msk [vmem:[%s226 + $0x4] sm:$0x3] %vm1847, %v1845
      %1851 = vst.msk [vmem:[%s226 + $0x6] sm:$0x3] %vm1847, %v1846
      %p1852 = scmp.lt.s32.totalorder %s16, 1
      %s1853 = scalar_select %p1852, %s16, 1
      %s1854 = smul.addr %s1853, 4
      %s1855 = smul.addr %s1854, 2
      %s1856 = scalar_lea.vmem %s5, %s1855
      // Predicated region
      $region41: #{net_forward.2} parent=39 // pred_check
        %p1857 = pneg %p144
      $region42: #{net_forward.2} parent=39 // pred_check_branch
        %1859 = sbr.rel (%p1857) target = $region44
      $region43: #{net_forward.2} parent=39 // pred_region
        _
      $region44: #{net_forward.2} parent=39 // pred_fallthru
        _
    $region40: #{net_forward.2} parent=5 // pred_fallthru
      _
    %p1860 = scmp.le.s32.totalorder 2, %s11
    // Predicated region
    $region45: #{net_forward.2} parent=5 // pred_check
      %p1861 = pneg %p1860
    $region46: #{net_forward.2} parent=5 // pred_check_branch
      %1863 = sbr.rel (%p1861) target = $region48
    $region47: #{net_forward.2} parent=5 // pred_region
      %s1864 = ssub.s32 %s11, 2
      // Predicated region
      $region49: #{net_forward.2} parent=47 // pred_check
        %p1865 = pneg %p150
      $region50: #{net_forward.2} parent=47 // pred_check_branch
        %1867 = sbr.rel (%p1865) target = $region52
      $region51: #{net_forward.2} parent=47 // pred_region
        %p1868 = scmp.lt.s32.totalorder %s17, 1
        %s1869 = scalar_select %p1868, %s17, 1
        %s1870 = smul.addr %s1869, 4
        %s1871 = smul.addr %s1870, 2
        %s1872 = scalar_lea.vmem %s5, %s1871
      $region52: #{net_forward.2} parent=47 // pred_fallthru
        _
    $region48: #{net_forward.2} parent=5 // pred_fallthru
      _
  $region6: #{net_forward.2} parent=0 // loop_footer
    %s15 = sadd.s32 1, %s11
  $region7: #{net_forward.2} parent=0 // loop_footer_branch
    %10 = sbr.rel target = $region3
  $region8: #{net_forward.2} parent=0 // loop_exit
    _

// kernel: net_forward.3
$region0: #{net_forward.3}
  #allocation0 [shape = 'u32[]', space=smem, size = 0x4, offset = 0x4, fixed_abs, tag = 'smem constant byte address 0x4 - core index']
  #allocation1 [shape = 'u32[144,128]{1,0:T(1,128)}', space=vmem, size = 0x12000, scoped, tag = 'internal scratch']
  %s0 = inlined_call_operand.vmem [shape: bf16[8,1024], index: 0, kind: input, shape index: {}]
  %s1 = inlined_call_operand.vmem [shape: bf16[1024,1024], index: 1, kind: input, shape index: {}]
  %s2 = inlined_call_operand.vmem [shape: f32[1,1024], index: 2, kind: input, shape index: {}]
  %s3 = inlined_call_operand.vmem [shape: bf16[1024,128], index: 3, kind: input, shape index: {}]
  %s4 = inlined_call_operand.vmem [shape: f32[1,128], index: 4, kind: input, shape index: {}]
  %s5 = inlined_call_operand.vmem [shape: f32[8,128], index: 5, kind: output, shape index: {}]
  %s6 = sld [smem:[#allocation0]]
  $region30: #{net_forward.3} parent=0
    _
  %s8 = ssub.s32 1, %s6
  %s9 = scalar_select 0, %s8, %s6
  // Predicated region
  $region2: #{net_forward.3} parent=0 // pred_check
    _
  $region3: #{net_forward.3} parent=0 // pred_check_branch
    %11 = sbr.rel (0) target = $region5
  $region4: #{net_forward.3} parent=0 // pred_region
    _
  $region5: #{net_forward.3} parent=0 // pred_fallthru
    _
  // Predicated region
  $region6: #{net_forward.3} parent=0 // pred_check
    _
  $region7: #{net_forward.3} parent=0 // pred_check_branch
    %13 = sbr.rel (0) target = $region9
  $region8: #{net_forward.3} parent=0 // pred_region
    _
  $region9: #{net_forward.3} parent=0 // pred_fallthru
    _
  // Predicated region
  $region10: #{net_forward.3} parent=0 // pred_check
    _
  $region11: #{net_forward.3} parent=0 // pred_check_branch
    %15 = sbr.rel (0) target = $region13
  $region12: #{net_forward.3} parent=0 // pred_region
    _
  $region13: #{net_forward.3} parent=0 // pred_fallthru
    _
  // Predicated region
  $region14: #{net_forward.3} parent=0 // pred_check
    _
  $region15: #{net_forward.3} parent=0 // pred_check_branch
    %17 = sbr.rel (0) target = $region17
  $region16: #{net_forward.3} parent=0 // pred_region
    _
  $region17: #{net_forward.3} parent=0 // pred_fallthru
    _
  // Predicated region
  $region18: #{net_forward.3} parent=0 // pred_check
    _
  $region19: #{net_forward.3} parent=0 // pred_check_branch
    %19 = sbr.rel (0) target = $region21
  $region20: #{net_forward.3} parent=0 // pred_region
    _
  $region21: #{net_forward.3} parent=0 // pred_fallthru
    _
  %v21 = vld [vmem:[%s0] sm:$0xff]
  %v22 = vld [vmem:[%s0 + $0x8] sm:$0xff]
  %v23 = vld [vmem:[%s0 + $0x10] sm:$0xff]
  %v24 = vld [vmem:[%s0 + $0x18] sm:$0xff]
  %v25 = vld [vmem:[%s1] sm:$0xff]
  %v26 = vld [vmem:[%s1 + $0x8] sm:$0xff]
  %v27 = vld [vmem:[%s1 + $0x10] sm:$0xff]
  %v28 = vld [vmem:[%s1 + $0x18] sm:$0xff]
  %v29 = vld [vmem:[%s1 + $0x20] sm:$0xff]
  %v30 = vld [vmem:[%s1 + $0x28] sm:$0xff]
  %v31 = vld [vmem:[%s1 + $0x30] sm:$0xff]
  %v32 = vld [vmem:[%s1 + $0x38] sm:$0xff]
  %v33 = vld [vmem:[%s1 + $0x40] sm:$0xff]
  %v34 = vld [vmem:[%s1 + $0x48] sm:$0xff]
  %v35 = vld [vmem:[%s1 + $0x50] sm:$0xff]
  %v36 = vld [vmem:[%s1 + $0x58] sm:$0xff]
  %v37 = vld [vmem:[%s1 + $0x60] sm:$0xff]
  %v38 = vld [vmem:[%s1 + $0x68] sm:$0xff]
  %v39 = vld [vmem:[%s1 + $0x70] sm:$0xff]
  %v40 = vld [vmem:[%s1 + $0x78] sm:$0xff]
  %v41 = vld [vmem:[%s1 + $0x80] sm:$0xff]
  %v42 = vld [vmem:[%s1 + $0x88] sm:$0xff]
  %v43 = vld [vmem:[%s1 + $0x90] sm:$0xff]
  %v44 = vld [vmem:[%s1 + $0x98] sm:$0xff]
  %v45 = vld [vmem:[%s1 + $0xa0] sm:$0xff]
  %v46 = vld [vmem:[%s1 + $0xa8] sm:$0xff]
  %v47 = vld [vmem:[%s1 + $0xb0] sm:$0xff]
  %v48 = vld [vmem:[%s1 + $0xb8] sm:$0xff]
  %v49 = vld [vmem:[%s1 + $0xc0] sm:$0xff]
  %v50 = vld [vmem:[%s1 + $0xc8] sm:$0xff]
  %v51 = vld [vmem:[%s1 + $0xd0] sm:$0xff]
  %v52 = vld [vmem:[%s1 + $0xd8] sm:$0xff]
  %v53 = vld [vmem:[%s1 + $0xe0] sm:$0xff]
  %v54 = vld [vmem:[%s1 + $0xe8] sm:$0xff]
  %v55 = vld [vmem:[%s1 + $0xf0] sm:$0xff]
  %v56 = vld [vmem:[%s1 + $0xf8] sm:$0xff]
  %v57 = vld [vmem:[%s1 + $0x100] sm:$0xff]
  %v58 = vld [vmem:[%s1 + $0x108] sm:$0xff]
  %v59 = vld [vmem:[%s1 + $0x110] sm:$0xff]
  %v60 = vld [vmem:[%s1 + $0x118] sm:$0xff]
  %v61 = vld [vmem:[%s1 + $0x120] sm:$0xff]
  %v62 = vld [vmem:[%s1 + $0x128] sm:$0xff]
  %v63 = vld [vmem:[%s1 + $0x130] sm:$0xff]
  %v64 = vld [vmem:[%s1 + $0x138] sm:$0xff]
  %v65 = vld [vmem:[%s1 + $0x140] sm:$0xff]
  %v66 = vld [vmem:[%s1 + $0x148] sm:$0xff]
  %v67 = vld [vmem:[%s1 + $0x150] sm:$0xff]
  %v68 = vld [vmem:[%s1 + $0x158] sm:$0xff]
  %v69 = vld [vmem:[%s1 + $0x160] sm:$0xff]
  %v70 = vld [vmem:[%s1 + $0x168] sm:$0xff]
  %v71 = vld [vmem:[%s1 + $0x170] sm:$0xff]
  %v72 = vld [vmem:[%s1 + $0x178] sm:$0xff]
  %v73 = vld [vmem:[%s1 + $0x180] sm:$0xff]
  %v74 = vld [vmem:[%s1 + $0x188] sm:$0xff]
  %v75 = vld [vmem:[%s1 + $0x190] sm:$0xff]
  %v76 = vld [vmem:[%s1 + $0x198] sm:$0xff]
  %v77 = vld [vmem:[%s1 + $0x1a0] sm:$0xff]
  %v78 = vld [vmem:[%s1 + $0x1a8] sm:$0xff]
  %v79 = vld [vmem:[%s1 + $0x1b0] sm:$0xff]
  %v80 = vld [vmem:[%s1 + $0x1b8] sm:$0xff]
  %v81 = vld [vmem:[%s1 + $0x1c0] sm:$0xff]
  %v82 = vld [vmem:[%s1 + $0x1c8] sm:$0xff]
  %v83 = vld [vmem:[%s1 + $0x1d0] sm:$0xff]
  %v84 = vld [vmem:[%s1 + $0x1d8] sm:$0xff]
  %v85 = vld [vmem:[%s1 + $0x1e0] sm:$0xff]
  %v86 = vld [vmem:[%s1 + $0x1e8] sm:$0xff]
  %v87 = vld [vmem:[%s1 + $0x1f0] sm:$0xff]
  %v88 = vld [vmem:[%s1 + $0x1f8] sm:$0xff]
  %v89 = vld [vmem:[%s1 + $0x200] sm:$0xff]
  %v90 = vld [vmem:[%s1 + $0x208] sm:$0xff]
  %v91 = vld [vmem:[%s1 + $0x210] sm:$0xff]
  %v92 = vld [vmem:[%s1 + $0x218] sm:$0xff]
  %v93 = vld [vmem:[%s1 + $0x220] sm:$0xff]
  %v94 = vld [vmem:[%s1 + $0x228] sm:$0xff]
  %v95 = vld [vmem:[%s1 + $0x230] sm:$0xff]
  %v96 = vld [vmem:[%s1 + $0x238] sm:$0xff]
  %v97 = vld [vmem:[%s1 + $0x240] sm:$0xff]
  %v98 = vld [vmem:[%s1 + $0x248] sm:$0xff]
  %v99 = vld [vmem:[%s1 + $0x250] sm:$0xff]
  %v100 = vld [vmem:[%s1 + $0x258] sm:$0xff]
  %v101 = vld [vmem:[%s1 + $0x260] sm:$0xff]
  %v102 = vld [vmem:[%s1 + $0x268] sm:$0xff]
  %v103 = vld [vmem:[%s1 + $0x270] sm:$0xff]
  %v104 = vld [vmem:[%s1 + $0x278] sm:$0xff]
  %v105 = vld [vmem:[%s1 + $0x280] sm:$0xff]
  %v106 = vld [vmem:[%s1 + $0x288] sm:$0xff]
  %v107 = vld [vmem:[%s1 + $0x290] sm:$0xff]
  %v108 = vld [vmem:[%s1 + $0x298] sm:$0xff]
  %v109 = vld [vmem:[%s1 + $0x2a0] sm:$0xff]
  %v110 = vld [vmem:[%s1 + $0x2a8] sm:$0xff]
  %v111 = vld [vmem:[%s1 + $0x2b0] sm:$0xff]
  %v112 = vld [vmem:[%s1 + $0x2b8] sm:$0xff]
  %v113 = vld [vmem:[%s1 + $0x2c0] sm:$0xff]
  %v114 = vld [vmem:[%s1 + $0x2c8] sm:$0xff]
  %v115 = vld [vmem:[%s1 + $0x2d0] sm:$0xff]
  %v116 = vld [vmem:[%s1 + $0x2d8] sm:$0xff]
  %v117 = vld [vmem:[%s1 + $0x2e0] sm:$0xff]
  %v118 = vld [vmem:[%s1 + $0x2e8] sm:$0xff]
  %v119 = vld [vmem:[%s1 + $0x2f0] sm:$0xff]
  %v120 = vld [vmem:[%s1 + $0x2f8] sm:$0xff]
  %v121 = vld [vmem:[%s1 + $0x300] sm:$0xff]
  %v122 = vld [vmem:[%s1 + $0x308] sm:$0xff]
  %v123 = vld [vmem:[%s1 + $0x310] sm:$0xff]
  %v124 = vld [vmem:[%s1 + $0x318] sm:$0xff]
  %v125 = vld [vmem:[%s1 + $0x320] sm:$0xff]
  %v126 = vld [vmem:[%s1 + $0x328] sm:$0xff]
  %v127 = vld [vmem:[%s1 + $0x330] sm:$0xff]
  %v128 = vld [vmem:[%s1 + $0x338] sm:$0xff]
  %v129 = vld [vmem:[%s1 + $0x340] sm:$0xff]
  %v130 = vld [vmem:[%s1 + $0x348] sm:$0xff]
  %v131 = vld [vmem:[%s1 + $0x350] sm:$0xff]
  %v132 = vld [vmem:[%s1 + $0x358] sm:$0xff]
  %v133 = vld [vmem:[%s1 + $0x360] sm:$0xff]
  %v134 = vld [vmem:[%s1 + $0x368] sm:$0xff]
  %v135 = vld [vmem:[%s1 + $0x370] sm:$0xff]
  %v136 = vld [vmem:[%s1 + $0x378] sm:$0xff]
  %v137 = vld [vmem:[%s1 + $0x380] sm:$0xff]
  %v138 = vld [vmem:[%s1 + $0x388] sm:$0xff]
  %v139 = vld [vmem:[%s1 + $0x390] sm:$0xff]
  %v140 = vld [vmem:[%s1 + $0x398] sm:$0xff]
  %v141 = vld [vmem:[%s1 + $0x3a0] sm:$0xff]
  %v142 = vld [vmem:[%s1 + $0x3a8] sm:$0xff]
  %v143 = vld [vmem:[%s1 + $0x3b0] sm:$0xff]
  %v144 = vld [vmem:[%s1 + $0x3b8] sm:$0xff]
  %v145 = vld [vmem:[%s1 + $0x3c0] sm:$0xff]
  %v146 = vld [vmem:[%s1 + $0x3c8] sm:$0xff]
  %v147 = vld [vmem:[%s1 + $0x3d0] sm:$0xff]
  %v148 = vld [vmem:[%s1 + $0x3d8] sm:$0xff]
  %v149 = vld [vmem:[%s1 + $0x3e0] sm:$0xff]
  %v150 = vld [vmem:[%s1 + $0x3e8] sm:$0xff]
  %v151 = vld [vmem:[%s1 + $0x3f0] sm:$0xff]
  %v152 = vld [vmem:[%s1 + $0x3f8] sm:$0xff]
  %v153 = vld [vmem:[%s1 + $0x400] sm:$0xff]
  %v154 = vld [vmem:[%s1 + $0x408] sm:$0xff]
  %v155 = vld [vmem:[%s1 + $0x410] sm:$0xff]
  %v156 = vld [vmem:[%s1 + $0x418] sm:$0xff]
  %v157 = vld [vmem:[%s1 + $0x420] sm:$0xff]
  %v158 = vld [vmem:[%s1 + $0x428] sm:$0xff]
  %v159 = vld [vmem:[%s1 + $0x430] sm:$0xff]
  %v160 = vld [vmem:[%s1 + $0x438] sm:$0xff]
  %v161 = vld [vmem:[%s1 + $0x440] sm:$0xff]
  %v162 = vld [vmem:[%s1 + $0x448] sm:$0xff]
  %v163 = vld [vmem:[%s1 + $0x450] sm:$0xff]
  %v164 = vld [vmem:[%s1 + $0x458] sm:$0xff]
  %v165 = vld [vmem:[%s1 + $0x460] sm:$0xff]
  %v166 = vld [vmem:[%s1 + $0x468] sm:$0xff]
  %v167 = vld [vmem:[%s1 + $0x470] sm:$0xff]
  %v168 = vld [vmem:[%s1 + $0x478] sm:$0xff]
  %v169 = vld [vmem:[%s1 + $0x480] sm:$0xff]
  %v170 = vld [vmem:[%s1 + $0x488] sm:$0xff]
  %v171 = vld [vmem:[%s1 + $0x490] sm:$0xff]
  %v172 = vld [vmem:[%s1 + $0x498] sm:$0xff]
  %v173 = vld [vmem:[%s1 + $0x4a0] sm:$0xff]
  %v174 = vld [vmem:[%s1 + $0x4a8] sm:$0xff]
  %v175 = vld [vmem:[%s1 + $0x4b0] sm:$0xff]
  %v176 = vld [vmem:[%s1 + $0x4b8] sm:$0xff]
  %v177 = vld [vmem:[%s1 + $0x4c0] sm:$0xff]
  %v178 = vld [vmem:[%s1 + $0x4c8] sm:$0xff]
  %v179 = vld [vmem:[%s1 + $0x4d0] sm:$0xff]
  %v180 = vld [vmem:[%s1 + $0x4d8] sm:$0xff]
  %v181 = vld [vmem:[%s1 + $0x4e0] sm:$0xff]
  %v182 = vld [vmem:[%s1 + $0x4e8] sm:$0xff]
  %v183 = vld [vmem:[%s1 + $0x4f0] sm:$0xff]
  %v184 = vld [vmem:[%s1 + $0x4f8] sm:$0xff]
  %v185 = vld [vmem:[%s1 + $0x500] sm:$0xff]
  %v186 = vld [vmem:[%s1 + $0x508] sm:$0xff]
  %v187 = vld [vmem:[%s1 + $0x510] sm:$0xff]
  %v188 = vld [vmem:[%s1 + $0x518] sm:$0xff]
  %v189 = vld [vmem:[%s1 + $0x520] sm:$0xff]
  %v190 = vld [vmem:[%s1 + $0x528] sm:$0xff]
  %v191 = vld [vmem:[%s1 + $0x530] sm:$0xff]
  %v192 = vld [vmem:[%s1 + $0x538] sm:$0xff]
  %v193 = vld [vmem:[%s1 + $0x540] sm:$0xff]
  %v194 = vld [vmem:[%s1 + $0x548] sm:$0xff]
  %v195 = vld [vmem:[%s1 + $0x550] sm:$0xff]
  %v196 = vld [vmem:[%s1 + $0x558] sm:$0xff]
  %v197 = vld [vmem:[%s1 + $0x560] sm:$0xff]
  %v198 = vld [vmem:[%s1 + $0x568] sm:$0xff]
  %v199 = vld [vmem:[%s1 + $0x570] sm:$0xff]
  %v200 = vld [vmem:[%s1 + $0x578] sm:$0xff]
  %v201 = vld [vmem:[%s1 + $0x580] sm:$0xff]
  %v202 = vld [vmem:[%s1 + $0x588] sm:$0xff]
  %v203 = vld [vmem:[%s1 + $0x590] sm:$0xff]
  %v204 = vld [vmem:[%s1 + $0x598] sm:$0xff]
  %v205 = vld [vmem:[%s1 + $0x5a0] sm:$0xff]
  %v206 = vld [vmem:[%s1 + $0x5a8] sm:$0xff]
  %v207 = vld [vmem:[%s1 + $0x5b0] sm:$0xff]
  %v208 = vld [vmem:[%s1 + $0x5b8] sm:$0xff]
  %v209 = vld [vmem:[%s1 + $0x5c0] sm:$0xff]
  %v210 = vld [vmem:[%s1 + $0x5c8] sm:$0xff]
  %v211 = vld [vmem:[%s1 + $0x5d0] sm:$0xff]
  %v212 = vld [vmem:[%s1 + $0x5d8] sm:$0xff]
  %v213 = vld [vmem:[%s1 + $0x5e0] sm:$0xff]
  %v214 = vld [vmem:[%s1 + $0x5e8] sm:$0xff]
  %v215 = vld [vmem:[%s1 + $0x5f0] sm:$0xff]
  %v216 = vld [vmem:[%s1 + $0x5f8] sm:$0xff]
  %v217 = vld [vmem:[%s1 + $0x600] sm:$0xff]
  %v218 = vld [vmem:[%s1 + $0x608] sm:$0xff]
  %v219 = vld [vmem:[%s1 + $0x610] sm:$0xff]
  %v220 = vld [vmem:[%s1 + $0x618] sm:$0xff]
  %v221 = vld [vmem:[%s1 + $0x620] sm:$0xff]
  %v222 = vld [vmem:[%s1 + $0x628] sm:$0xff]
  %v223 = vld [vmem:[%s1 + $0x630] sm:$0xff]
  %v224 = vld [vmem:[%s1 + $0x638] sm:$0xff]
  %v225 = vld [vmem:[%s1 + $0x640] sm:$0xff]
  %v226 = vld [vmem:[%s1 + $0x648] sm:$0xff]
  %v227 = vld [vmem:[%s1 + $0x650] sm:$0xff]
  %v228 = vld [vmem:[%s1 + $0x658] sm:$0xff]
  %v229 = vld [vmem:[%s1 + $0x660] sm:$0xff]
  %v230 = vld [vmem:[%s1 + $0x668] sm:$0xff]
  %v231 = vld [vmem:[%s1 + $0x670] sm:$0xff]
  %v232 = vld [vmem:[%s1 + $0x678] sm:$0xff]
  %v233 = vld [vmem:[%s1 + $0x680] sm:$0xff]
  %v234 = vld [vmem:[%s1 + $0x688] sm:$0xff]
  %v235 = vld [vmem:[%s1 + $0x690] sm:$0xff]
  %v236 = vld [vmem:[%s1 + $0x698] sm:$0xff]
  %v237 = vld [vmem:[%s1 + $0x6a0] sm:$0xff]
  %v238 = vld [vmem:[%s1 + $0x6a8] sm:$0xff]
  %v239 = vld [vmem:[%s1 + $0x6b0] sm:$0xff]
  %v240 = vld [vmem:[%s1 + $0x6b8] sm:$0xff]
  %v241 = vld [vmem:[%s1 + $0x6c0] sm:$0xff]
  %v242 = vld [vmem:[%s1 + $0x6c8] sm:$0xff]
  %v243 = vld [vmem:[%s1 + $0x6d0] sm:$0xff]
  %v244 = vld [vmem:[%s1 + $0x6d8] sm:$0xff]
  %v245 = vld [vmem:[%s1 + $0x6e0] sm:$0xff]
  %v246 = vld [vmem:[%s1 + $0x6e8] sm:$0xff]
  %v247 = vld [vmem:[%s1 + $0x6f0] sm:$0xff]
  %v248 = vld [vmem:[%s1 + $0x6f8] sm:$0xff]
  %v249 = vld [vmem:[%s1 + $0x700] sm:$0xff]
  %v250 = vld [vmem:[%s1 + $0x708] sm:$0xff]
  %v251 = vld [vmem:[%s1 + $0x710] sm:$0xff]
  %v252 = vld [vmem:[%s1 + $0x718] sm:$0xff]
  %v253 = vld [vmem:[%s1 + $0x720] sm:$0xff]
  %v254 = vld [vmem:[%s1 + $0x728] sm:$0xff]
  %v255 = vld [vmem:[%s1 + $0x730] sm:$0xff]
  %v256 = vld [vmem:[%s1 + $0x738] sm:$0xff]
  %v257 = vld [vmem:[%s1 + $0x740] sm:$0xff]
  %v258 = vld [vmem:[%s1 + $0x748] sm:$0xff]
  %v259 = vld [vmem:[%s1 + $0x750] sm:$0xff]
  %v260 = vld [vmem:[%s1 + $0x758] sm:$0xff]
  %v261 = vld [vmem:[%s1 + $0x760] sm:$0xff]
  %v262 = vld [vmem:[%s1 + $0x768] sm:$0xff]
  %v263 = vld [vmem:[%s1 + $0x770] sm:$0xff]
  %v264 = vld [vmem:[%s1 + $0x778] sm:$0xff]
  %v265 = vld [vmem:[%s1 + $0x780] sm:$0xff]
  %v266 = vld [vmem:[%s1 + $0x788] sm:$0xff]
  %v267 = vld [vmem:[%s1 + $0x790] sm:$0xff]
  %v268 = vld [vmem:[%s1 + $0x798] sm:$0xff]
  %v269 = vld [vmem:[%s1 + $0x7a0] sm:$0xff]
  %v270 = vld [vmem:[%s1 + $0x7a8] sm:$0xff]
  %v271 = vld [vmem:[%s1 + $0x7b0] sm:$0xff]
  %v272 = vld [vmem:[%s1 + $0x7b8] sm:$0xff]
  %v273 = vld [vmem:[%s1 + $0x7c0] sm:$0xff]
  %v274 = vld [vmem:[%s1 + $0x7c8] sm:$0xff]
  %v275 = vld [vmem:[%s1 + $0x7d0] sm:$0xff]
  %v276 = vld [vmem:[%s1 + $0x7d8] sm:$0xff]
  %v277 = vld [vmem:[%s1 + $0x7e0] sm:$0xff]
  %v278 = vld [vmem:[%s1 + $0x7e8] sm:$0xff]
  %v279 = vld [vmem:[%s1 + $0x7f0] sm:$0xff]
  %v280 = vld [vmem:[%s1 + $0x7f8] sm:$0xff]
  %v281 = vld [vmem:[%s1 + $0x800] sm:$0xff]
  %v282 = vld [vmem:[%s1 + $0x808] sm:$0xff]
  %v283 = vld [vmem:[%s1 + $0x810] sm:$0xff]
  %v284 = vld [vmem:[%s1 + $0x818] sm:$0xff]
  %v285 = vld [vmem:[%s1 + $0x820] sm:$0xff]
  %v286 = vld [vmem:[%s1 + $0x828] sm:$0xff]
  %v287 = vld [vmem:[%s1 + $0x830] sm:$0xff]
  %v288 = vld [vmem:[%s1 + $0x838] sm:$0xff]
  %v289 = vld [vmem:[%s1 + $0x840] sm:$0xff]
  %v290 = vld [vmem:[%s1 + $0x848] sm:$0xff]
  %v291 = vld [vmem:[%s1 + $0x850] sm:$0xff]
  %v292 = vld [vmem:[%s1 + $0x858] sm:$0xff]
  %v293 = vld [vmem:[%s1 + $0x860] sm:$0xff]
  %v294 = vld [vmem:[%s1 + $0x868] sm:$0xff]
  %v295 = vld [vmem:[%s1 + $0x870] sm:$0xff]
  %v296 = vld [vmem:[%s1 + $0x878] sm:$0xff]
  %v297 = vld [vmem:[%s1 + $0x880] sm:$0xff]
  %v298 = vld [vmem:[%s1 + $0x888] sm:$0xff]
  %v299 = vld [vmem:[%s1 + $0x890] sm:$0xff]
  %v300 = vld [vmem:[%s1 + $0x898] sm:$0xff]
  %v301 = vld [vmem:[%s1 + $0x8a0] sm:$0xff]
  %v302 = vld [vmem:[%s1 + $0x8a8] sm:$0xff]
  %v303 = vld [vmem:[%s1 + $0x8b0] sm:$0xff]
  %v304 = vld [vmem:[%s1 + $0x8b8] sm:$0xff]
  %v305 = vld [vmem:[%s1 + $0x8c0] sm:$0xff]
  %v306 = vld [vmem:[%s1 + $0x8c8] sm:$0xff]
  %v307 = vld [vmem:[%s1 + $0x8d0] sm:$0xff]
  %v308 = vld [vmem:[%s1 + $0x8d8] sm:$0xff]
  %v309 = vld [vmem:[%s1 + $0x8e0] sm:$0xff]
  %v310 = vld [vmem:[%s1 + $0x8e8] sm:$0xff]
  %v311 = vld [vmem:[%s1 + $0x8f0] sm:$0xff]
  %v312 = vld [vmem:[%s1 + $0x8f8] sm:$0xff]
  %v313 = vld [vmem:[%s1 + $0x900] sm:$0xff]
  %v314 = vld [vmem:[%s1 + $0x908] sm:$0xff]
  %v315 = vld [vmem:[%s1 + $0x910] sm:$0xff]
  %v316 = vld [vmem:[%s1 + $0x918] sm:$0xff]
  %v317 = vld [vmem:[%s1 + $0x920] sm:$0xff]
  %v318 = vld [vmem:[%s1 + $0x928] sm:$0xff]
  %v319 = vld [vmem:[%s1 + $0x930] sm:$0xff]
  %v320 = vld [vmem:[%s1 + $0x938] sm:$0xff]
  %v321 = vld [vmem:[%s1 + $0x940] sm:$0xff]
  %v322 = vld [vmem:[%s1 + $0x948] sm:$0xff]
  %v323 = vld [vmem:[%s1 + $0x950] sm:$0xff]
  %v324 = vld [vmem:[%s1 + $0x958] sm:$0xff]
  %v325 = vld [vmem:[%s1 + $0x960] sm:$0xff]
  %v326 = vld [vmem:[%s1 + $0x968] sm:$0xff]
  %v327 = vld [vmem:[%s1 + $0x970] sm:$0xff]
  %v328 = vld [vmem:[%s1 + $0x978] sm:$0xff]
  %v329 = vld [vmem:[%s1 + $0x980] sm:$0xff]
  %v330 = vld [vmem:[%s1 + $0x988] sm:$0xff]
  %v331 = vld [vmem:[%s1 + $0x990] sm:$0xff]
  %v332 = vld [vmem:[%s1 + $0x998] sm:$0xff]
  %v333 = vld [vmem:[%s1 + $0x9a0] sm:$0xff]
  %v334 = vld [vmem:[%s1 + $0x9a8] sm:$0xff]
  %v335 = vld [vmem:[%s1 + $0x9b0] sm:$0xff]
  %v336 = vld [vmem:[%s1 + $0x9b8] sm:$0xff]
  %v337 = vld [vmem:[%s1 + $0x9c0] sm:$0xff]
  %v338 = vld [vmem:[%s1 + $0x9c8] sm:$0xff]
  %v339 = vld [vmem:[%s1 + $0x9d0] sm:$0xff]
  %v340 = vld [vmem:[%s1 + $0x9d8] sm:$0xff]
  %v341 = vld [vmem:[%s1 + $0x9e0] sm:$0xff]
  %v342 = vld [vmem:[%s1 + $0x9e8] sm:$0xff]
  %v343 = vld [vmem:[%s1 + $0x9f0] sm:$0xff]
  %v344 = vld [vmem:[%s1 + $0x9f8] sm:$0xff]
  %v345 = vld [vmem:[%s1 + $0xa00] sm:$0xff]
  %v346 = vld [vmem:[%s1 + $0xa08] sm:$0xff]
  %v347 = vld [vmem:[%s1 + $0xa10] sm:$0xff]
  %v348 = vld [vmem:[%s1 + $0xa18] sm:$0xff]
  %v349 = vld [vmem:[%s1 + $0xa20] sm:$0xff]
  %v350 = vld [vmem:[%s1 + $0xa28] sm:$0xff]
  %v351 = vld [vmem:[%s1 + $0xa30] sm:$0xff]
  %v352 = vld [vmem:[%s1 + $0xa38] sm:$0xff]
  %v353 = vld [vmem:[%s1 + $0xa40] sm:$0xff]
  %v354 = vld [vmem:[%s1 + $0xa48] sm:$0xff]
  %v355 = vld [vmem:[%s1 + $0xa50] sm:$0xff]
  %v356 = vld [vmem:[%s1 + $0xa58] sm:$0xff]
  %v357 = vld [vmem:[%s1 + $0xa60] sm:$0xff]
  %v358 = vld [vmem:[%s1 + $0xa68] sm:$0xff]
  %v359 = vld [vmem:[%s1 + $0xa70] sm:$0xff]
  %v360 = vld [vmem:[%s1 + $0xa78] sm:$0xff]
  %v361 = vld [vmem:[%s1 + $0xa80] sm:$0xff]
  %v362 = vld [vmem:[%s1 + $0xa88] sm:$0xff]
  %v363 = vld [vmem:[%s1 + $0xa90] sm:$0xff]
  %v364 = vld [vmem:[%s1 + $0xa98] sm:$0xff]
  %v365 = vld [vmem:[%s1 + $0xaa0] sm:$0xff]
  %v366 = vld [vmem:[%s1 + $0xaa8] sm:$0xff]
  %v367 = vld [vmem:[%s1 + $0xab0] sm:$0xff]
  %v368 = vld [vmem:[%s1 + $0xab8] sm:$0xff]
  %v369 = vld [vmem:[%s1 + $0xac0] sm:$0xff]
  %v370 = vld [vmem:[%s1 + $0xac8] sm:$0xff]
  %v371 = vld [vmem:[%s1 + $0xad0] sm:$0xff]
  %v372 = vld [vmem:[%s1 + $0xad8] sm:$0xff]
  %v373 = vld [vmem:[%s1 + $0xae0] sm:$0xff]
  %v374 = vld [vmem:[%s1 + $0xae8] sm:$0xff]
  %v375 = vld [vmem:[%s1 + $0xaf0] sm:$0xff]
  %v376 = vld [vmem:[%s1 + $0xaf8] sm:$0xff]
  %v377 = vld [vmem:[%s1 + $0xb00] sm:$0xff]
  %v378 = vld [vmem:[%s1 + $0xb08] sm:$0xff]
  %v379 = vld [vmem:[%s1 + $0xb10] sm:$0xff]
  %v380 = vld [vmem:[%s1 + $0xb18] sm:$0xff]
  %v381 = vld [vmem:[%s1 + $0xb20] sm:$0xff]
  %v382 = vld [vmem:[%s1 + $0xb28] sm:$0xff]
  %v383 = vld [vmem:[%s1 + $0xb30] sm:$0xff]
  %v384 = vld [vmem:[%s1 + $0xb38] sm:$0xff]
  %v385 = vld [vmem:[%s1 + $0xb40] sm:$0xff]
  %v386 = vld [vmem:[%s1 + $0xb48] sm:$0xff]
  %v387 = vld [vmem:[%s1 + $0xb50] sm:$0xff]
  %v388 = vld [vmem:[%s1 + $0xb58] sm:$0xff]
  %v389 = vld [vmem:[%s1 + $0xb60] sm:$0xff]
  %v390 = vld [vmem:[%s1 + $0xb68] sm:$0xff]
  %v391 = vld [vmem:[%s1 + $0xb70] sm:$0xff]
  %v392 = vld [vmem:[%s1 + $0xb78] sm:$0xff]
  %v393 = vld [vmem:[%s1 + $0xb80] sm:$0xff]
  %v394 = vld [vmem:[%s1 + $0xb88] sm:$0xff]
  %v395 = vld [vmem:[%s1 + $0xb90] sm:$0xff]
  %v396 = vld [vmem:[%s1 + $0xb98] sm:$0xff]
  %v397 = vld [vmem:[%s1 + $0xba0] sm:$0xff]
  %v398 = vld [vmem:[%s1 + $0xba8] sm:$0xff]
  %v399 = vld [vmem:[%s1 + $0xbb0] sm:$0xff]
  %v400 = vld [vmem:[%s1 + $0xbb8] sm:$0xff]
  %v401 = vld [vmem:[%s1 + $0xbc0] sm:$0xff]
  %v402 = vld [vmem:[%s1 + $0xbc8] sm:$0xff]
  %v403 = vld [vmem:[%s1 + $0xbd0] sm:$0xff]
  %v404 = vld [vmem:[%s1 + $0xbd8] sm:$0xff]
  %v405 = vld [vmem:[%s1 + $0xbe0] sm:$0xff]
  %v406 = vld [vmem:[%s1 + $0xbe8] sm:$0xff]
  %v407 = vld [vmem:[%s1 + $0xbf0] sm:$0xff]
  %v408 = vld [vmem:[%s1 + $0xbf8] sm:$0xff]
  %v409 = vld [vmem:[%s1 + $0xc00] sm:$0xff]
  %v410 = vld [vmem:[%s1 + $0xc08] sm:$0xff]
  %v411 = vld [vmem:[%s1 + $0xc10] sm:$0xff]
  %v412 = vld [vmem:[%s1 + $0xc18] sm:$0xff]
  %v413 = vld [vmem:[%s1 + $0xc20] sm:$0xff]
  %v414 = vld [vmem:[%s1 + $0xc28] sm:$0xff]
  %v415 = vld [vmem:[%s1 + $0xc30] sm:$0xff]
  %v416 = vld [vmem:[%s1 + $0xc38] sm:$0xff]
  %v417 = vld [vmem:[%s1 + $0xc40] sm:$0xff]
  %v418 = vld [vmem:[%s1 + $0xc48] sm:$0xff]
  %v419 = vld [vmem:[%s1 + $0xc50] sm:$0xff]
  %v420 = vld [vmem:[%s1 + $0xc58] sm:$0xff]
  %v421 = vld [vmem:[%s1 + $0xc60] sm:$0xff]
  %v422 = vld [vmem:[%s1 + $0xc68] sm:$0xff]
  %v423 = vld [vmem:[%s1 + $0xc70] sm:$0xff]
  %v424 = vld [vmem:[%s1 + $0xc78] sm:$0xff]
  %v425 = vld [vmem:[%s1 + $0xc80] sm:$0xff]
  %v426 = vld [vmem:[%s1 + $0xc88] sm:$0xff]
  %v427 = vld [vmem:[%s1 + $0xc90] sm:$0xff]
  %v428 = vld [vmem:[%s1 + $0xc98] sm:$0xff]
  %v429 = vld [vmem:[%s1 + $0xca0] sm:$0xff]
  %v430 = vld [vmem:[%s1 + $0xca8] sm:$0xff]
  %v431 = vld [vmem:[%s1 + $0xcb0] sm:$0xff]
  %v432 = vld [vmem:[%s1 + $0xcb8] sm:$0xff]
  %v433 = vld [vmem:[%s1 + $0xcc0] sm:$0xff]
  %v434 = vld [vmem:[%s1 + $0xcc8] sm:$0xff]
  %v435 = vld [vmem:[%s1 + $0xcd0] sm:$0xff]
  %v436 = vld [vmem:[%s1 + $0xcd8] sm:$0xff]
  %v437 = vld [vmem:[%s1 + $0xce0] sm:$0xff]
  %v438 = vld [vmem:[%s1 + $0xce8] sm:$0xff]
  %v439 = vld [vmem:[%s1 + $0xcf0] sm:$0xff]
  %v440 = vld [vmem:[%s1 + $0xcf8] sm:$0xff]
  %v441 = vld [vmem:[%s1 + $0xd00] sm:$0xff]
  %v442 = vld [vmem:[%s1 + $0xd08] sm:$0xff]
  %v443 = vld [vmem:[%s1 + $0xd10] sm:$0xff]
  %v444 = vld [vmem:[%s1 + $0xd18] sm:$0xff]
  %v445 = vld [vmem:[%s1 + $0xd20] sm:$0xff]
  %v446 = vld [vmem:[%s1 + $0xd28] sm:$0xff]
  %v447 = vld [vmem:[%s1 + $0xd30] sm:$0xff]
  %v448 = vld [vmem:[%s1 + $0xd38] sm:$0xff]
  %v449 = vld [vmem:[%s1 + $0xd40] sm:$0xff]
  %v450 = vld [vmem:[%s1 + $0xd48] sm:$0xff]
  %v451 = vld [vmem:[%s1 + $0xd50] sm:$0xff]
  %v452 = vld [vmem:[%s1 + $0xd58] sm:$0xff]
  %v453 = vld [vmem:[%s1 + $0xd60] sm:$0xff]
  %v454 = vld [vmem:[%s1 + $0xd68] sm:$0xff]
  %v455 = vld [vmem:[%s1 + $0xd70] sm:$0xff]
  %v456 = vld [vmem:[%s1 + $0xd78] sm:$0xff]
  %v457 = vld [vmem:[%s1 + $0xd80] sm:$0xff]
  %v458 = vld [vmem:[%s1 + $0xd88] sm:$0xff]
  %v459 = vld [vmem:[%s1 + $0xd90] sm:$0xff]
  %v460 = vld [vmem:[%s1 + $0xd98] sm:$0xff]
  %v461 = vld [vmem:[%s1 + $0xda0] sm:$0xff]
  %v462 = vld [vmem:[%s1 + $0xda8] sm:$0xff]
  %v463 = vld [vmem:[%s1 + $0xdb0] sm:$0xff]
  %v464 = vld [vmem:[%s1 + $0xdb8] sm:$0xff]
  %v465 = vld [vmem:[%s1 + $0xdc0] sm:$0xff]
  %v466 = vld [vmem:[%s1 + $0xdc8] sm:$0xff]
  %v467 = vld [vmem:[%s1 + $0xdd0] sm:$0xff]
  %v468 = vld [vmem:[%s1 + $0xdd8] sm:$0xff]
  %v469 = vld [vmem:[%s1 + $0xde0] sm:$0xff]
  %v470 = vld [vmem:[%s1 + $0xde8] sm:$0xff]
  %v471 = vld [vmem:[%s1 + $0xdf0] sm:$0xff]
  %v472 = vld [vmem:[%s1 + $0xdf8] sm:$0xff]
  %v473 = vld [vmem:[%s1 + $0xe00] sm:$0xff]
  %v474 = vld [vmem:[%s1 + $0xe08] sm:$0xff]
  %v475 = vld [vmem:[%s1 + $0xe10] sm:$0xff]
  %v476 = vld [vmem:[%s1 + $0xe18] sm:$0xff]
  %v477 = vld [vmem:[%s1 + $0xe20] sm:$0xff]
  %v478 = vld [vmem:[%s1 + $0xe28] sm:$0xff]
  %v479 = vld [vmem:[%s1 + $0xe30] sm:$0xff]
  %v480 = vld [vmem:[%s1 + $0xe38] sm:$0xff]
  %v481 = vld [vmem:[%s1 + $0xe40] sm:$0xff]
  %v482 = vld [vmem:[%s1 + $0xe48] sm:$0xff]
  %v483 = vld [vmem:[%s1 + $0xe50] sm:$0xff]
  %v484 = vld [vmem:[%s1 + $0xe58] sm:$0xff]
  %v485 = vld [vmem:[%s1 + $0xe60] sm:$0xff]
  %v486 = vld [vmem:[%s1 + $0xe68] sm:$0xff]
  %v487 = vld [vmem:[%s1 + $0xe70] sm:$0xff]
  %v488 = vld [vmem:[%s1 + $0xe78] sm:$0xff]
  %v489 = vld [vmem:[%s1 + $0xe80] sm:$0xff]
  %v490 = vld [vmem:[%s1 + $0xe88] sm:$0xff]
  %v491 = vld [vmem:[%s1 + $0xe90] sm:$0xff]
  %v492 = vld [vmem:[%s1 + $0xe98] sm:$0xff]
  %v493 = vld [vmem:[%s1 + $0xea0] sm:$0xff]
  %v494 = vld [vmem:[%s1 + $0xea8] sm:$0xff]
  %v495 = vld [vmem:[%s1 + $0xeb0] sm:$0xff]
  %v496 = vld [vmem:[%s1 + $0xeb8] sm:$0xff]
  %v497 = vld [vmem:[%s1 + $0xec0] sm:$0xff]
  %v498 = vld [vmem:[%s1 + $0xec8] sm:$0xff]
  %v499 = vld [vmem:[%s1 + $0xed0] sm:$0xff]
  %v500 = vld [vmem:[%s1 + $0xed8] sm:$0xff]
  %v501 = vld [vmem:[%s1 + $0xee0] sm:$0xff]
  %v502 = vld [vmem:[%s1 + $0xee8] sm:$0xff]
  %v503 = vld [vmem:[%s1 + $0xef0] sm:$0xff]
  %v504 = vld [vmem:[%s1 + $0xef8] sm:$0xff]
  %v505 = vld [vmem:[%s1 + $0xf00] sm:$0xff]
  %v506 = vld [vmem:[%s1 + $0xf08] sm:$0xff]
  %v507 = vld [vmem:[%s1 + $0xf10] sm:$0xff]
  %v508 = vld [vmem:[%s1 + $0xf18] sm:$0xff]
  %v509 = vld [vmem:[%s1 + $0xf20] sm:$0xff]
  %v510 = vld [vmem:[%s1 + $0xf28] sm:$0xff]
  %v511 = vld [vmem:[%s1 + $0xf30] sm:$0xff]
  %v512 = vld [vmem:[%s1 + $0xf38] sm:$0xff]
  %v513 = vld [vmem:[%s1 + $0xf40] sm:$0xff]
  %v514 = vld [vmem:[%s1 + $0xf48] sm:$0xff]
  %v515 = vld [vmem:[%s1 + $0xf50] sm:$0xff]
  %v516 = vld [vmem:[%s1 + $0xf58] sm:$0xff]
  %v517 = vld [vmem:[%s1 + $0xf60] sm:$0xff]
  %v518 = vld [vmem:[%s1 + $0xf68] sm:$0xff]
  %v519 = vld [vmem:[%s1 + $0xf70] sm:$0xff]
  %v520 = vld [vmem:[%s1 + $0xf78] sm:$0xff]
  %v521 = vld [vmem:[%s1 + $0xf80] sm:$0xff]
  %v522 = vld [vmem:[%s1 + $0xf88] sm:$0xff]
  %v523 = vld [vmem:[%s1 + $0xf90] sm:$0xff]
  %v524 = vld [vmem:[%s1 + $0xf98] sm:$0xff]
  %v525 = vld [vmem:[%s1 + $0xfa0] sm:$0xff]
  %v526 = vld [vmem:[%s1 + $0xfa8] sm:$0xff]
  %v527 = vld [vmem:[%s1 + $0xfb0] sm:$0xff]
  %v528 = vld [vmem:[%s1 + $0xfb8] sm:$0xff]
  %v529 = vld [vmem:[%s1 + $0xfc0] sm:$0xff]
  %v530 = vld [vmem:[%s1 + $0xfc8] sm:$0xff]
  %v531 = vld [vmem:[%s1 + $0xfd0] sm:$0xff]
  %v532 = vld [vmem:[%s1 + $0xfd8] sm:$0xff]
  %v533 = vld [vmem:[%s1 + $0xfe0] sm:$0xff]
  %v534 = vld [vmem:[%s1 + $0xfe8] sm:$0xff]
  %v535 = vld [vmem:[%s1 + $0xff0] sm:$0xff]
  %v536 = vld [vmem:[%s1 + $0xff8] sm:$0xff]
  %v537 = vld [vmem:[%s2] sm:$0xff]
  %v539 = vlaneseq
  %v540 = vshrl.u32 %v539, 7
  %v541 = vsub.s32 0, %v540
  %v542 = vrot.slane %v537, %v541
  %v543 = vlaneseq
  %v544 = vshrl.u32 %v543, 7
  %v545 = vsub.s32 1, %v544
  %v546 = vrot.slane %v537, %v545
  %v547 = vlaneseq
  %v548 = vshrl.u32 %v547, 7
  %v549 = vsub.s32 2, %v548
  %v550 = vrot.slane %v537, %v549
  %v551 = vlaneseq
  %v552 = vshrl.u32 %v551, 7
  %v553 = vsub.s32 3, %v552
  %v554 = vrot.slane %v537, %v553
  %v555 = vlaneseq
  %v556 = vshrl.u32 %v555, 7
  %v557 = vsub.s32 4, %v556
  %v558 = vrot.slane %v537, %v557
  %v559 = vlaneseq
  %v560 = vshrl.u32 %v559, 7
  %v561 = vsub.s32 5, %v560
  %v562 = vrot.slane %v537, %v561
  %v563 = vlaneseq
  %v564 = vshrl.u32 %v563, 7
  %v565 = vsub.s32 6, %v564
  %v566 = vrot.slane %v537, %v565
  %v567 = vlaneseq
  %v568 = vshrl.u32 %v567, 7
  %v569 = vsub.s32 7, %v568
  %v570 = vrot.slane %v537, %v569
  %v583 = vunpack.c.l.b16 %v21
  %v584 = vunpack.c.h.b16 %v21
  %v585 = vunpack.c.l.b16 %v22
  %v586 = vunpack.c.h.b16 %v22
  %v587 = vunpack.c.l.b16 %v23
  %v588 = vunpack.c.h.b16 %v23
  %v589 = vunpack.c.l.b16 %v24
  %v590 = vunpack.c.h.b16 %v24
  %v591 = vpack.c.b16 %v583, %v583
  %v592 = vpack.c.b16 %v584, %v584
  %v593 = vpack.c.b16 %v585, %v585
  %v594 = vpack.c.b16 %v586, %v586
  %v595 = vpack.c.b16 %v587, %v587
  %v596 = vpack.c.b16 %v588, %v588
  %v597 = vpack.c.b16 %v589, %v589
  %v598 = vpack.c.b16 %v590, %v590
  %v1119 = vunpack.c.l.b16 %v25
  %v1120 = vunpack.c.h.b16 %v25
  %v1121 = vunpack.c.l.b16 %v26
  %v1122 = vunpack.c.h.b16 %v26
  %v1123 = vunpack.c.l.b16 %v27
  %v1124 = vunpack.c.h.b16 %v27
  %v1125 = vunpack.c.l.b16 %v28
  %v1126 = vunpack.c.h.b16 %v28
  %v1127 = vunpack.c.l.b16 %v29
  %v1128 = vunpack.c.h.b16 %v29
  %v1129 = vunpack.c.l.b16 %v30
  %v1130 = vunpack.c.h.b16 %v30
  %v1131 = vunpack.c.l.b16 %v31
  %v1132 = vunpack.c.h.b16 %v31
  %v1133 = vunpack.c.l.b16 %v32
  %v1134 = vunpack.c.h.b16 %v32
  %v1135 = vunpack.c.l.b16 %v33
  %v1136 = vunpack.c.h.b16 %v33
  %v1137 = vunpack.c.l.b16 %v34
  %v1138 = vunpack.c.h.b16 %v34
  %v1139 = vunpack.c.l.b16 %v35
  %v1140 = vunpack.c.h.b16 %v35
  %v1141 = vunpack.c.l.b16 %v36
  %v1142 = vunpack.c.h.b16 %v36
  %v1143 = vunpack.c.l.b16 %v37
  %v1144 = vunpack.c.h.b16 %v37
  %v1145 = vunpack.c.l.b16 %v38
  %v1146 = vunpack.c.h.b16 %v38
  %v1147 = vunpack.c.l.b16 %v39
  %v1148 = vunpack.c.h.b16 %v39
  %v1149 = vunpack.c.l.b16 %v40
  %v1150 = vunpack.c.h.b16 %v40
  %v1151 = vunpack.c.l.b16 %v41
  %v1152 = vunpack.c.h.b16 %v41
  %v1153 = vunpack.c.l.b16 %v42
  %v1154 = vunpack.c.h.b16 %v42
  %v1155 = vunpack.c.l.b16 %v43
  %v1156 = vunpack.c.h.b16 %v43
  %v1157 = vunpack.c.l.b16 %v44
  %v1158 = vunpack.c.h.b16 %v44
  %v1159 = vunpack.c.l.b16 %v45
  %v1160 = vunpack.c.h.b16 %v45
  %v1161 = vunpack.c.l.b16 %v46
  %v1162 = vunpack.c.h.b16 %v46
  %v1163 = vunpack.c.l.b16 %v47
  %v1164 = vunpack.c.h.b16 %v47
  %v1165 = vunpack.c.l.b16 %v48
  %v1166 = vunpack.c.h.b16 %v48
  %v1167 = vunpack.c.l.b16 %v49
  %v1168 = vunpack.c.h.b16 %v49
  %v1169 = vunpack.c.l.b16 %v50
  %v1170 = vunpack.c.h.b16 %v50
  %v1171 = vunpack.c.l.b16 %v51
  %v1172 = vunpack.c.h.b16 %v51
  %v1173 = vunpack.c.l.b16 %v52
  %v1174 = vunpack.c.h.b16 %v52
  %v1175 = vunpack.c.l.b16 %v53
  %v1176 = vunpack.c.h.b16 %v53
  %v1177 = vunpack.c.l.b16 %v54
  %v1178 = vunpack.c.h.b16 %v54
  %v1179 = vunpack.c.l.b16 %v55
  %v1180 = vunpack.c.h.b16 %v55
  %v1181 = vunpack.c.l.b16 %v56
  %v1182 = vunpack.c.h.b16 %v56
  %v1183 = vunpack.c.l.b16 %v57
  %v1184 = vunpack.c.h.b16 %v57
  %v1185 = vunpack.c.l.b16 %v58
  %v1186 = vunpack.c.h.b16 %v58
  %v1187 = vunpack.c.l.b16 %v59
  %v1188 = vunpack.c.h.b16 %v59
  %v1189 = vunpack.c.l.b16 %v60
  %v1190 = vunpack.c.h.b16 %v60
  %v1191 = vunpack.c.l.b16 %v61
  %v1192 = vunpack.c.h.b16 %v61
  %v1193 = vunpack.c.l.b16 %v62
  %v1194 = vunpack.c.h.b16 %v62
  %v1195 = vunpack.c.l.b16 %v63
  %v1196 = vunpack.c.h.b16 %v63
  %v1197 = vunpack.c.l.b16 %v64
  %v1198 = vunpack.c.h.b16 %v64
  %v1199 = vunpack.c.l.b16 %v65
  %v1200 = vunpack.c.h.b16 %v65
  %v1201 = vunpack.c.l.b16 %v66
  %v1202 = vunpack.c.h.b16 %v66
  %v1203 = vunpack.c.l.b16 %v67
  %v1204 = vunpack.c.h.b16 %v67
  %v1205 = vunpack.c.l.b16 %v68
  %v1206 = vunpack.c.h.b16 %v68
  %v1207 = vunpack.c.l.b16 %v69
  %v1208 = vunpack.c.h.b16 %v69
  %v1209 = vunpack.c.l.b16 %v70
  %v1210 = vunpack.c.h.b16 %v70
  %v1211 = vunpack.c.l.b16 %v71
  %v1212 = vunpack.c.h.b16 %v71
  %v1213 = vunpack.c.l.b16 %v72
  %v1214 = vunpack.c.h.b16 %v72
  %v1215 = vunpack.c.l.b16 %v73
  %v1216 = vunpack.c.h.b16 %v73
  %v1217 = vunpack.c.l.b16 %v74
  %v1218 = vunpack.c.h.b16 %v74
  %v1219 = vunpack.c.l.b16 %v75
  %v1220 = vunpack.c.h.b16 %v75
  %v1221 = vunpack.c.l.b16 %v76
  %v1222 = vunpack.c.h.b16 %v76
  %v1223 = vunpack.c.l.b16 %v77
  %v1224 = vunpack.c.h.b16 %v77
  %v1225 = vunpack.c.l.b16 %v78
  %v1226 = vunpack.c.h.b16 %v78
  %v1227 = vunpack.c.l.b16 %v79
  %v1228 = vunpack.c.h.b16 %v79
  %v1229 = vunpack.c.l.b16 %v80
  %v1230 = vunpack.c.h.b16 %v80
  %v1231 = vunpack.c.l.b16 %v81
  %v1232 = vunpack.c.h.b16 %v81
  %v1233 = vunpack.c.l.b16 %v82
  %v1234 = vunpack.c.h.b16 %v82
  %v1235 = vunpack.c.l.b16 %v83
  %v1236 = vunpack.c.h.b16 %v83
  %v1237 = vunpack.c.l.b16 %v84
  %v1238 = vunpack.c.h.b16 %v84
  %v1239 = vunpack.c.l.b16 %v85
  %v1240 = vunpack.c.h.b16 %v85
  %v1241 = vunpack.c.l.b16 %v86
  %v1242 = vunpack.c.h.b16 %v86
  %v1243 = vunpack.c.l.b16 %v87
  %v1244 = vunpack.c.h.b16 %v87
  %v1245 = vunpack.c.l.b16 %v88
  %v1246 = vunpack.c.h.b16 %v88
  %v1247 = vunpack.c.l.b16 %v89
  %v1248 = vunpack.c.h.b16 %v89
  %v1249 = vunpack.c.l.b16 %v90
  %v1250 = vunpack.c.h.b16 %v90
  %v1251 = vunpack.c.l.b16 %v91
  %v1252 = vunpack.c.h.b16 %v91
  %v1253 = vunpack.c.l.b16 %v92
  %v1254 = vunpack.c.h.b16 %v92
  %v1255 = vunpack.c.l.b16 %v93
  %v1256 = vunpack.c.h.b16 %v93
  %v1257 = vunpack.c.l.b16 %v94
  %v1258 = vunpack.c.h.b16 %v94
  %v1259 = vunpack.c.l.b16 %v95
  %v1260 = vunpack.c.h.b16 %v95
  %v1261 = vunpack.c.l.b16 %v96
  %v1262 = vunpack.c.h.b16 %v96
  %v1263 = vunpack.c.l.b16 %v97
  %v1264 = vunpack.c.h.b16 %v97
  %v1265 = vunpack.c.l.b16 %v98
  %v1266 = vunpack.c.h.b16 %v98
  %v1267 = vunpack.c.l.b16 %v99
  %v1268 = vunpack.c.h.b16 %v99
  %v1269 = vunpack.c.l.b16 %v100
  %v1270 = vunpack.c.h.b16 %v100
  %v1271 = vunpack.c.l.b16 %v101
  %v1272 = vunpack.c.h.b16 %v101
  %v1273 = vunpack.c.l.b16 %v102
  %v1274 = vunpack.c.h.b16 %v102
  %v1275 = vunpack.c.l.b16 %v103
  %v1276 = vunpack.c.h.b16 %v103
  %v1277 = vunpack.c.l.b16 %v104
  %v1278 = vunpack.c.h.b16 %v104
  %v1279 = vunpack.c.l.b16 %v105
  %v1280 = vunpack.c.h.b16 %v105
  %v1281 = vunpack.c.l.b16 %v106
  %v1282 = vunpack.c.h.b16 %v106
  %v1283 = vunpack.c.l.b16 %v107
  %v1284 = vunpack.c.h.b16 %v107
  %v1285 = vunpack.c.l.b16 %v108
  %v1286 = vunpack.c.h.b16 %v108
  %v1287 = vunpack.c.l.b16 %v109
  %v1288 = vunpack.c.h.b16 %v109
  %v1289 = vunpack.c.l.b16 %v110
  %v1290 = vunpack.c.h.b16 %v110
  %v1291 = vunpack.c.l.b16 %v111
  %v1292 = vunpack.c.h.b16 %v111
  %v1293 = vunpack.c.l.b16 %v112
  %v1294 = vunpack.c.h.b16 %v112
  %v1295 = vunpack.c.l.b16 %v113
  %v1296 = vunpack.c.h.b16 %v113
  %v1297 = vunpack.c.l.b16 %v114
  %v1298 = vunpack.c.h.b16 %v114
  %v1299 = vunpack.c.l.b16 %v115
  %v1300 = vunpack.c.h.b16 %v115
  %v1301 = vunpack.c.l.b16 %v116
  %v1302 = vunpack.c.h.b16 %v116
  %v1303 = vunpack.c.l.b16 %v117
  %v1304 = vunpack.c.h.b16 %v117
  %v1305 = vunpack.c.l.b16 %v118
  %v1306 = vunpack.c.h.b16 %v118
  %v1307 = vunpack.c.l.b16 %v119
  %v1308 = vunpack.c.h.b16 %v119
  %v1309 = vunpack.c.l.b16 %v120
  %v1310 = vunpack.c.h.b16 %v120
  %v1311 = vunpack.c.l.b16 %v121
  %v1312 = vunpack.c.h.b16 %v121
  %v1313 = vunpack.c.l.b16 %v122
  %v1314 = vunpack.c.h.b16 %v122
  %v1315 = vunpack.c.l.b16 %v123
  %v1316 = vunpack.c.h.b16 %v123
  %v1317 = vunpack.c.l.b16 %v124
  %v1318 = vunpack.c.h.b16 %v124
  %v1319 = vunpack.c.l.b16 %v125
  %v1320 = vunpack.c.h.b16 %v125
  %v1321 = vunpack.c.l.b16 %v126
  %v1322 = vunpack.c.h.b16 %v126
  %v1323 = vunpack.c.l.b16 %v127
  %v1324 = vunpack.c.h.b16 %v127
  %v1325 = vunpack.c.l.b16 %v128
  %v1326 = vunpack.c.h.b16 %v128
  %v1327 = vunpack.c.l.b16 %v129
  %v1328 = vunpack.c.h.b16 %v129
  %v1329 = vunpack.c.l.b16 %v130
  %v1330 = vunpack.c.h.b16 %v130
  %v1331 = vunpack.c.l.b16 %v131
  %v1332 = vunpack.c.h.b16 %v131
  %v1333 = vunpack.c.l.b16 %v132
  %v1334 = vunpack.c.h.b16 %v132
  %v1335 = vunpack.c.l.b16 %v133
  %v1336 = vunpack.c.h.b16 %v133
  %v1337 = vunpack.c.l.b16 %v134
  %v1338 = vunpack.c.h.b16 %v134
  %v1339 = vunpack.c.l.b16 %v135
  %v1340 = vunpack.c.h.b16 %v135
  %v1341 = vunpack.c.l.b16 %v136
  %v1342 = vunpack.c.h.b16 %v136
  %v1343 = vunpack.c.l.b16 %v137
  %v1344 = vunpack.c.h.b16 %v137
  %v1345 = vunpack.c.l.b16 %v138
  %v1346 = vunpack.c.h.b16 %v138
  %v1347 = vunpack.c.l.b16 %v139
  %v1348 = vunpack.c.h.b16 %v139
  %v1349 = vunpack.c.l.b16 %v140
  %v1350 = vunpack.c.h.b16 %v140
  %v1351 = vunpack.c.l.b16 %v141
  %v1352 = vunpack.c.h.b16 %v141
  %v1353 = vunpack.c.l.b16 %v142
  %v1354 = vunpack.c.h.b16 %v142
  %v1355 = vunpack.c.l.b16 %v143
  %v1356 = vunpack.c.h.b16 %v143
  %v1357 = vunpack.c.l.b16 %v144
  %v1358 = vunpack.c.h.b16 %v144
  %v1359 = vunpack.c.l.b16 %v145
  %v1360 = vunpack.c.h.b16 %v145
  %v1361 = vunpack.c.l.b16 %v146
  %v1362 = vunpack.c.h.b16 %v146
  %v1363 = vunpack.c.l.b16 %v147
  %v1364 = vunpack.c.h.b16 %v147
  %v1365 = vunpack.c.l.b16 %v148
  %v1366 = vunpack.c.h.b16 %v148
  %v1367 = vunpack.c.l.b16 %v149
  %v1368 = vunpack.c.h.b16 %v149
  %v1369 = vunpack.c.l.b16 %v150
  %v1370 = vunpack.c.h.b16 %v150
  %v1371 = vunpack.c.l.b16 %v151
  %v1372 = vunpack.c.h.b16 %v151
  %v1373 = vunpack.c.l.b16 %v152
  %v1374 = vunpack.c.h.b16 %v152
  %v1375 = vunpack.c.l.b16 %v153
  %v1376 = vunpack.c.h.b16 %v153
  %v1377 = vunpack.c.l.b16 %v154
  %v1378 = vunpack.c.h.b16 %v154
  %v1379 = vunpack.c.l.b16 %v155
  %v1380 = vunpack.c.h.b16 %v155
  %v1381 = vunpack.c.l.b16 %v156
  %v1382 = vunpack.c.h.b16 %v156
  %v1383 = vunpack.c.l.b16 %v157
  %v1384 = vunpack.c.h.b16 %v157
  %v1385 = vunpack.c.l.b16 %v158
  %v1386 = vunpack.c.h.b16 %v158
  %v1387 = vunpack.c.l.b16 %v159
  %v1388 = vunpack.c.h.b16 %v159
  %v1389 = vunpack.c.l.b16 %v160
  %v1390 = vunpack.c.h.b16 %v160
  %v1391 = vunpack.c.l.b16 %v161
  %v1392 = vunpack.c.h.b16 %v161
  %v1393 = vunpack.c.l.b16 %v162
  %v1394 = vunpack.c.h.b16 %v162
  %v1395 = vunpack.c.l.b16 %v163
  %v1396 = vunpack.c.h.b16 %v163
  %v1397 = vunpack.c.l.b16 %v164
  %v1398 = vunpack.c.h.b16 %v164
  %v1399 = vunpack.c.l.b16 %v165
  %v1400 = vunpack.c.h.b16 %v165
  %v1401 = vunpack.c.l.b16 %v166
  %v1402 = vunpack.c.h.b16 %v166
  %v1403 = vunpack.c.l.b16 %v167
  %v1404 = vunpack.c.h.b16 %v167
  %v1405 = vunpack.c.l.b16 %v168
  %v1406 = vunpack.c.h.b16 %v168
  %v1407 = vunpack.c.l.b16 %v169
  %v1408 = vunpack.c.h.b16 %v169
  %v1409 = vunpack.c.l.b16 %v170
  %v1410 = vunpack.c.h.b16 %v170
  %v1411 = vunpack.c.l.b16 %v171
  %v1412 = vunpack.c.h.b16 %v171
  %v1413 = vunpack.c.l.b16 %v172
  %v1414 = vunpack.c.h.b16 %v172
  %v1415 = vunpack.c.l.b16 %v173
  %v1416 = vunpack.c.h.b16 %v173
  %v1417 = vunpack.c.l.b16 %v174
  %v1418 = vunpack.c.h.b16 %v174
  %v1419 = vunpack.c.l.b16 %v175
  %v1420 = vunpack.c.h.b16 %v175
  %v1421 = vunpack.c.l.b16 %v176
  %v1422 = vunpack.c.h.b16 %v176
  %v1423 = vunpack.c.l.b16 %v177
  %v1424 = vunpack.c.h.b16 %v177
  %v1425 = vunpack.c.l.b16 %v178
  %v1426 = vunpack.c.h.b16 %v178
  %v1427 = vunpack.c.l.b16 %v179
  %v1428 = vunpack.c.h.b16 %v179
  %v1429 = vunpack.c.l.b16 %v180
  %v1430 = vunpack.c.h.b16 %v180
  %v1431 = vunpack.c.l.b16 %v181
  %v1432 = vunpack.c.h.b16 %v181
  %v1433 = vunpack.c.l.b16 %v182
  %v1434 = vunpack.c.h.b16 %v182
  %v1435 = vunpack.c.l.b16 %v183
  %v1436 = vunpack.c.h.b16 %v183
  %v1437 = vunpack.c.l.b16 %v184
  %v1438 = vunpack.c.h.b16 %v184
  %v1439 = vunpack.c.l.b16 %v185
  %v1440 = vunpack.c.h.b16 %v185
  %v1441 = vunpack.c.l.b16 %v186
  %v1442 = vunpack.c.h.b16 %v186
  %v1443 = vunpack.c.l.b16 %v187
  %v1444 = vunpack.c.h.b16 %v187
  %v1445 = vunpack.c.l.b16 %v188
  %v1446 = vunpack.c.h.b16 %v188
  %v1447 = vunpack.c.l.b16 %v189
  %v1448 = vunpack.c.h.b16 %v189
  %v1449 = vunpack.c.l.b16 %v190
  %v1450 = vunpack.c.h.b16 %v190
  %v1451 = vunpack.c.l.b16 %v191
  %v1452 = vunpack.c.h.b16 %v191
  %v1453 = vunpack.c.l.b16 %v192
  %v1454 = vunpack.c.h.b16 %v192
  %v1455 = vunpack.c.l.b16 %v193
  %v1456 = vunpack.c.h.b16 %v193
  %v1457 = vunpack.c.l.b16 %v194
  %v1458 = vunpack.c.h.b16 %v194
  %v1459 = vunpack.c.l.b16 %v195
  %v1460 = vunpack.c.h.b16 %v195
  %v1461 = vunpack.c.l.b16 %v196
  %v1462 = vunpack.c.h.b16 %v196
  %v1463 = vunpack.c.l.b16 %v197
  %v1464 = vunpack.c.h.b16 %v197
  %v1465 = vunpack.c.l.b16 %v198
  %v1466 = vunpack.c.h.b16 %v198
  %v1467 = vunpack.c.l.b16 %v199
  %v1468 = vunpack.c.h.b16 %v199
  %v1469 = vunpack.c.l.b16 %v200
  %v1470 = vunpack.c.h.b16 %v200
  %v1471 = vunpack.c.l.b16 %v201
  %v1472 = vunpack.c.h.b16 %v201
  %v1473 = vunpack.c.l.b16 %v202
  %v1474 = vunpack.c.h.b16 %v202
  %v1475 = vunpack.c.l.b16 %v203
  %v1476 = vunpack.c.h.b16 %v203
  %v1477 = vunpack.c.l.b16 %v204
  %v1478 = vunpack.c.h.b16 %v204
  %v1479 = vunpack.c.l.b16 %v205
  %v1480 = vunpack.c.h.b16 %v205
  %v1481 = vunpack.c.l.b16 %v206
  %v1482 = vunpack.c.h.b16 %v206
  %v1483 = vunpack.c.l.b16 %v207
  %v1484 = vunpack.c.h.b16 %v207
  %v1485 = vunpack.c.l.b16 %v208
  %v1486 = vunpack.c.h.b16 %v208
  %v1487 = vunpack.c.l.b16 %v209
  %v1488 = vunpack.c.h.b16 %v209
  %v1489 = vunpack.c.l.b16 %v210
  %v1490 = vunpack.c.h.b16 %v210
  %v1491 = vunpack.c.l.b16 %v211
  %v1492 = vunpack.c.h.b16 %v211
  %v1493 = vunpack.c.l.b16 %v212
  %v1494 = vunpack.c.h.b16 %v212
  %v1495 = vunpack.c.l.b16 %v213
  %v1496 = vunpack.c.h.b16 %v213
  %v1497 = vunpack.c.l.b16 %v214
  %v1498 = vunpack.c.h.b16 %v214
  %v1499 = vunpack.c.l.b16 %v215
  %v1500 = vunpack.c.h.b16 %v215
  %v1501 = vunpack.c.l.b16 %v216
  %v1502 = vunpack.c.h.b16 %v216
  %v1503 = vunpack.c.l.b16 %v217
  %v1504 = vunpack.c.h.b16 %v217
  %v1505 = vunpack.c.l.b16 %v218
  %v1506 = vunpack.c.h.b16 %v218
  %v1507 = vunpack.c.l.b16 %v219
  %v1508 = vunpack.c.h.b16 %v219
  %v1509 = vunpack.c.l.b16 %v220
  %v1510 = vunpack.c.h.b16 %v220
  %v1511 = vunpack.c.l.b16 %v221
  %v1512 = vunpack.c.h.b16 %v221
  %v1513 = vunpack.c.l.b16 %v222
  %v1514 = vunpack.c.h.b16 %v222
  %v1515 = vunpack.c.l.b16 %v223
  %v1516 = vunpack.c.h.b16 %v223
  %v1517 = vunpack.c.l.b16 %v224
  %v1518 = vunpack.c.h.b16 %v224
  %v1519 = vunpack.c.l.b16 %v225
  %v1520 = vunpack.c.h.b16 %v225
  %v1521 = vunpack.c.l.b16 %v226
  %v1522 = vunpack.c.h.b16 %v226
  %v1523 = vunpack.c.l.b16 %v227
  %v1524 = vunpack.c.h.b16 %v227
  %v1525 = vunpack.c.l.b16 %v228
  %v1526 = vunpack.c.h.b16 %v228
  %v1527 = vunpack.c.l.b16 %v229
  %v1528 = vunpack.c.h.b16 %v229
  %v1529 = vunpack.c.l.b16 %v230
  %v1530 = vunpack.c.h.b16 %v230
  %v1531 = vunpack.c.l.b16 %v231
  %v1532 = vunpack.c.h.b16 %v231
  %v1533 = vunpack.c.l.b16 %v232
  %v1534 = vunpack.c.h.b16 %v232
  %v1535 = vunpack.c.l.b16 %v233
  %v1536 = vunpack.c.h.b16 %v233
  %v1537 = vunpack.c.l.b16 %v234
  %v1538 = vunpack.c.h.b16 %v234
  %v1539 = vunpack.c.l.b16 %v235
  %v1540 = vunpack.c.h.b16 %v235
  %v1541 = vunpack.c.l.b16 %v236
  %v1542 = vunpack.c.h.b16 %v236
  %v1543 = vunpack.c.l.b16 %v237
  %v1544 = vunpack.c.h.b16 %v237
  %v1545 = vunpack.c.l.b16 %v238
  %v1546 = vunpack.c.h.b16 %v238
  %v1547 = vunpack.c.l.b16 %v239
  %v1548 = vunpack.c.h.b16 %v239
  %v1549 = vunpack.c.l.b16 %v240
  %v1550 = vunpack.c.h.b16 %v240
  %v1551 = vunpack.c.l.b16 %v241
  %v1552 = vunpack.c.h.b16 %v241
  %v1553 = vunpack.c.l.b16 %v242
  %v1554 = vunpack.c.h.b16 %v242
  %v1555 = vunpack.c.l.b16 %v243
  %v1556 = vunpack.c.h.b16 %v243
  %v1557 = vunpack.c.l.b16 %v244
  %v1558 = vunpack.c.h.b16 %v244
  %v1559 = vunpack.c.l.b16 %v245
  %v1560 = vunpack.c.h.b16 %v245
  %v1561 = vunpack.c.l.b16 %v246
  %v1562 = vunpack.c.h.b16 %v246
  %v1563 = vunpack.c.l.b16 %v247
  %v1564 = vunpack.c.h.b16 %v247
  %v1565 = vunpack.c.l.b16 %v248
  %v1566 = vunpack.c.h.b16 %v248
  %v1567 = vunpack.c.l.b16 %v249
  %v1568 = vunpack.c.h.b16 %v249
  %v1569 = vunpack.c.l.b16 %v250
  %v1570 = vunpack.c.h.b16 %v250
  %v1571 = vunpack.c.l.b16 %v251
  %v1572 = vunpack.c.h.b16 %v251
  %v1573 = vunpack.c.l.b16 %v252
  %v1574 = vunpack.c.h.b16 %v252
  %v1575 = vunpack.c.l.b16 %v253
  %v1576 = vunpack.c.h.b16 %v253
  %v1577 = vunpack.c.l.b16 %v254
  %v1578 = vunpack.c.h.b16 %v254
  %v1579 = vunpack.c.l.b16 %v255
  %v1580 = vunpack.c.h.b16 %v255
  %v1581 = vunpack.c.l.b16 %v256
  %v1582 = vunpack.c.h.b16 %v256
  %v1583 = vunpack.c.l.b16 %v257
  %v1584 = vunpack.c.h.b16 %v257
  %v1585 = vunpack.c.l.b16 %v258
  %v1586 = vunpack.c.h.b16 %v258
  %v1587 = vunpack.c.l.b16 %v259
  %v1588 = vunpack.c.h.b16 %v259
  %v1589 = vunpack.c.l.b16 %v260
  %v1590 = vunpack.c.h.b16 %v260
  %v1591 = vunpack.c.l.b16 %v261
  %v1592 = vunpack.c.h.b16 %v261
  %v1593 = vunpack.c.l.b16 %v262
  %v1594 = vunpack.c.h.b16 %v262
  %v1595 = vunpack.c.l.b16 %v263
  %v1596 = vunpack.c.h.b16 %v263
  %v1597 = vunpack.c.l.b16 %v264
  %v1598 = vunpack.c.h.b16 %v264
  %v1599 = vunpack.c.l.b16 %v265
  %v1600 = vunpack.c.h.b16 %v265
  %v1601 = vunpack.c.l.b16 %v266
  %v1602 = vunpack.c.h.b16 %v266
  %v1603 = vunpack.c.l.b16 %v267
  %v1604 = vunpack.c.h.b16 %v267
  %v1605 = vunpack.c.l.b16 %v268
  %v1606 = vunpack.c.h.b16 %v268
  %v1607 = vunpack.c.l.b16 %v269
  %v1608 = vunpack.c.h.b16 %v269
  %v1609 = vunpack.c.l.b16 %v270
  %v1610 = vunpack.c.h.b16 %v270
  %v1611 = vunpack.c.l.b16 %v271
  %v1612 = vunpack.c.h.b16 %v271
  %v1613 = vunpack.c.l.b16 %v272
  %v1614 = vunpack.c.h.b16 %v272
  %v1615 = vunpack.c.l.b16 %v273
  %v1616 = vunpack.c.h.b16 %v273
  %v1617 = vunpack.c.l.b16 %v274
  %v1618 = vunpack.c.h.b16 %v274
  %v1619 = vunpack.c.l.b16 %v275
  %v1620 = vunpack.c.h.b16 %v275
  %v1621 = vunpack.c.l.b16 %v276
  %v1622 = vunpack.c.h.b16 %v276
  %v1623 = vunpack.c.l.b16 %v277
  %v1624 = vunpack.c.h.b16 %v277
  %v1625 = vunpack.c.l.b16 %v278
  %v1626 = vunpack.c.h.b16 %v278
  %v1627 = vunpack.c.l.b16 %v279
  %v1628 = vunpack.c.h.b16 %v279
  %v1629 = vunpack.c.l.b16 %v280
  %v1630 = vunpack.c.h.b16 %v280
  %v1631 = vunpack.c.l.b16 %v281
  %v1632 = vunpack.c.h.b16 %v281
  %v1633 = vunpack.c.l.b16 %v282
  %v1634 = vunpack.c.h.b16 %v282
  %v1635 = vunpack.c.l.b16 %v283
  %v1636 = vunpack.c.h.b16 %v283
  %v1637 = vunpack.c.l.b16 %v284
  %v1638 = vunpack.c.h.b16 %v284
  %v1639 = vunpack.c.l.b16 %v285
  %v1640 = vunpack.c.h.b16 %v285
  %v1641 = vunpack.c.l.b16 %v286
  %v1642 = vunpack.c.h.b16 %v286
  %v1643 = vunpack.c.l.b16 %v287
  %v1644 = vunpack.c.h.b16 %v287
  %v1645 = vunpack.c.l.b16 %v288
  %v1646 = vunpack.c.h.b16 %v288
  %v1647 = vunpack.c.l.b16 %v289
  %v1648 = vunpack.c.h.b16 %v289
  %v1649 = vunpack.c.l.b16 %v290
  %v1650 = vunpack.c.h.b16 %v290
  %v1651 = vunpack.c.l.b16 %v291
  %v1652 = vunpack.c.h.b16 %v291
  %v1653 = vunpack.c.l.b16 %v292
  %v1654 = vunpack.c.h.b16 %v292
  %v1655 = vunpack.c.l.b16 %v293
  %v1656 = vunpack.c.h.b16 %v293
  %v1657 = vunpack.c.l.b16 %v294
  %v1658 = vunpack.c.h.b16 %v294
  %v1659 = vunpack.c.l.b16 %v295
  %v1660 = vunpack.c.h.b16 %v295
  %v1661 = vunpack.c.l.b16 %v296
  %v1662 = vunpack.c.h.b16 %v296
  %v1663 = vunpack.c.l.b16 %v297
  %v1664 = vunpack.c.h.b16 %v297
  %v1665 = vunpack.c.l.b16 %v298
  %v1666 = vunpack.c.h.b16 %v298
  %v1667 = vunpack.c.l.b16 %v299
  %v1668 = vunpack.c.h.b16 %v299
  %v1669 = vunpack.c.l.b16 %v300
  %v1670 = vunpack.c.h.b16 %v300
  %v1671 = vunpack.c.l.b16 %v301
  %v1672 = vunpack.c.h.b16 %v301
  %v1673 = vunpack.c.l.b16 %v302
  %v1674 = vunpack.c.h.b16 %v302
  %v1675 = vunpack.c.l.b16 %v303
  %v1676 = vunpack.c.h.b16 %v303
  %v1677 = vunpack.c.l.b16 %v304
  %v1678 = vunpack.c.h.b16 %v304
  %v1679 = vunpack.c.l.b16 %v305
  %v1680 = vunpack.c.h.b16 %v305
  %v1681 = vunpack.c.l.b16 %v306
  %v1682 = vunpack.c.h.b16 %v306
  %v1683 = vunpack.c.l.b16 %v307
  %v1684 = vunpack.c.h.b16 %v307
  %v1685 = vunpack.c.l.b16 %v308
  %v1686 = vunpack.c.h.b16 %v308
  %v1687 = vunpack.c.l.b16 %v309
  %v1688 = vunpack.c.h.b16 %v309
  %v1689 = vunpack.c.l.b16 %v310
  %v1690 = vunpack.c.h.b16 %v310
  %v1691 = vunpack.c.l.b16 %v311
  %v1692 = vunpack.c.h.b16 %v311
  %v1693 = vunpack.c.l.b16 %v312
  %v1694 = vunpack.c.h.b16 %v312
  %v1695 = vunpack.c.l.b16 %v313
  %v1696 = vunpack.c.h.b16 %v313
  %v1697 = vunpack.c.l.b16 %v314
  %v1698 = vunpack.c.h.b16 %v314
  %v1699 = vunpack.c.l.b16 %v315
  %v1700 = vunpack.c.h.b16 %v315
  %v1701 = vunpack.c.l.b16 %v316
  %v1702 = vunpack.c.h.b16 %v316
  %v1703 = vunpack.c.l.b16 %v317
  %v1704 = vunpack.c.h.b16 %v317
  %v1705 = vunpack.c.l.b16 %v318
  %v1706 = vunpack.c.h.b16 %v318
  %v1707 = vunpack.c.l.b16 %v319
  %v1708 = vunpack.c.h.b16 %v319
  %v1709 = vunpack.c.l.b16 %v320
  %v1710 = vunpack.c.h.b16 %v320
  %v1711 = vunpack.c.l.b16 %v321
  %v1712 = vunpack.c.h.b16 %v321
  %v1713 = vunpack.c.l.b16 %v322
  %v1714 = vunpack.c.h.b16 %v322
  %v1715 = vunpack.c.l.b16 %v323
  %v1716 = vunpack.c.h.b16 %v323
  %v1717 = vunpack.c.l.b16 %v324
  %v1718 = vunpack.c.h.b16 %v324
  %v1719 = vunpack.c.l.b16 %v325
  %v1720 = vunpack.c.h.b16 %v325
  %v1721 = vunpack.c.l.b16 %v326
  %v1722 = vunpack.c.h.b16 %v326
  %v1723 = vunpack.c.l.b16 %v327
  %v1724 = vunpack.c.h.b16 %v327
  %v1725 = vunpack.c.l.b16 %v328
  %v1726 = vunpack.c.h.b16 %v328
  %v1727 = vunpack.c.l.b16 %v329
  %v1728 = vunpack.c.h.b16 %v329
  %v1729 = vunpack.c.l.b16 %v330
  %v1730 = vunpack.c.h.b16 %v330
  %v1731 = vunpack.c.l.b16 %v331
  %v1732 = vunpack.c.h.b16 %v331
  %v1733 = vunpack.c.l.b16 %v332
  %v1734 = vunpack.c.h.b16 %v332
  %v1735 = vunpack.c.l.b16 %v333
  %v1736 = vunpack.c.h.b16 %v333
  %v1737 = vunpack.c.l.b16 %v334
  %v1738 = vunpack.c.h.b16 %v334
  %v1739 = vunpack.c.l.b16 %v335
  %v1740 = vunpack.c.h.b16 %v335
  %v1741 = vunpack.c.l.b16 %v336
  %v1742 = vunpack.c.h.b16 %v336
  %v1743 = vunpack.c.l.b16 %v337
  %v1744 = vunpack.c.h.b16 %v337
  %v1745 = vunpack.c.l.b16 %v338
  %v1746 = vunpack.c.h.b16 %v338
  %v1747 = vunpack.c.l.b16 %v339
  %v1748 = vunpack.c.h.b16 %v339
  %v1749 = vunpack.c.l.b16 %v340
  %v1750 = vunpack.c.h.b16 %v340
  %v1751 = vunpack.c.l.b16 %v341
  %v1752 = vunpack.c.h.b16 %v341
  %v1753 = vunpack.c.l.b16 %v342
  %v1754 = vunpack.c.h.b16 %v342
  %v1755 = vunpack.c.l.b16 %v343
  %v1756 = vunpack.c.h.b16 %v343
  %v1757 = vunpack.c.l.b16 %v344
  %v1758 = vunpack.c.h.b16 %v344
  %v1759 = vunpack.c.l.b16 %v345
  %v1760 = vunpack.c.h.b16 %v345
  %v1761 = vunpack.c.l.b16 %v346
  %v1762 = vunpack.c.h.b16 %v346
  %v1763 = vunpack.c.l.b16 %v347
  %v1764 = vunpack.c.h.b16 %v347
  %v1765 = vunpack.c.l.b16 %v348
  %v1766 = vunpack.c.h.b16 %v348
  %v1767 = vunpack.c.l.b16 %v349
  %v1768 = vunpack.c.h.b16 %v349
  %v1769 = vunpack.c.l.b16 %v350
  %v1770 = vunpack.c.h.b16 %v350
  %v1771 = vunpack.c.l.b16 %v351
  %v1772 = vunpack.c.h.b16 %v351
  %v1773 = vunpack.c.l.b16 %v352
  %v1774 = vunpack.c.h.b16 %v352
  %v1775 = vunpack.c.l.b16 %v353
  %v1776 = vunpack.c.h.b16 %v353
  %v1777 = vunpack.c.l.b16 %v354
  %v1778 = vunpack.c.h.b16 %v354
  %v1779 = vunpack.c.l.b16 %v355
  %v1780 = vunpack.c.h.b16 %v355
  %v1781 = vunpack.c.l.b16 %v356
  %v1782 = vunpack.c.h.b16 %v356
  %v1783 = vunpack.c.l.b16 %v357
  %v1784 = vunpack.c.h.b16 %v357
  %v1785 = vunpack.c.l.b16 %v358
  %v1786 = vunpack.c.h.b16 %v358
  %v1787 = vunpack.c.l.b16 %v359
  %v1788 = vunpack.c.h.b16 %v359
  %v1789 = vunpack.c.l.b16 %v360
  %v1790 = vunpack.c.h.b16 %v360
  %v1791 = vunpack.c.l.b16 %v361
  %v1792 = vunpack.c.h.b16 %v361
  %v1793 = vunpack.c.l.b16 %v362
  %v1794 = vunpack.c.h.b16 %v362
  %v1795 = vunpack.c.l.b16 %v363
  %v1796 = vunpack.c.h.b16 %v363
  %v1797 = vunpack.c.l.b16 %v364
  %v1798 = vunpack.c.h.b16 %v364
  %v1799 = vunpack.c.l.b16 %v365
  %v1800 = vunpack.c.h.b16 %v365
  %v1801 = vunpack.c.l.b16 %v366
  %v1802 = vunpack.c.h.b16 %v366
  %v1803 = vunpack.c.l.b16 %v367
  %v1804 = vunpack.c.h.b16 %v367
  %v1805 = vunpack.c.l.b16 %v368
  %v1806 = vunpack.c.h.b16 %v368
  %v1807 = vunpack.c.l.b16 %v369
  %v1808 = vunpack.c.h.b16 %v369
  %v1809 = vunpack.c.l.b16 %v370
  %v1810 = vunpack.c.h.b16 %v370
  %v1811 = vunpack.c.l.b16 %v371
  %v1812 = vunpack.c.h.b16 %v371
  %v1813 = vunpack.c.l.b16 %v372
  %v1814 = vunpack.c.h.b16 %v372
  %v1815 = vunpack.c.l.b16 %v373
  %v1816 = vunpack.c.h.b16 %v373
  %v1817 = vunpack.c.l.b16 %v374
  %v1818 = vunpack.c.h.b16 %v374
  %v1819 = vunpack.c.l.b16 %v375
  %v1820 = vunpack.c.h.b16 %v375
  %v1821 = vunpack.c.l.b16 %v376
  %v1822 = vunpack.c.h.b16 %v376
  %v1823 = vunpack.c.l.b16 %v377
  %v1824 = vunpack.c.h.b16 %v377
  %v1825 = vunpack.c.l.b16 %v378
  %v1826 = vunpack.c.h.b16 %v378
  %v1827 = vunpack.c.l.b16 %v379
  %v1828 = vunpack.c.h.b16 %v379
  %v1829 = vunpack.c.l.b16 %v380
  %v1830 = vunpack.c.h.b16 %v380
  %v1831 = vunpack.c.l.b16 %v381
  %v1832 = vunpack.c.h.b16 %v381
  %v1833 = vunpack.c.l.b16 %v382
  %v1834 = vunpack.c.h.b16 %v382
  %v1835 = vunpack.c.l.b16 %v383
  %v1836 = vunpack.c.h.b16 %v383
  %v1837 = vunpack.c.l.b16 %v384
  %v1838 = vunpack.c.h.b16 %v384
  %v1839 = vunpack.c.l.b16 %v385
  %v1840 = vunpack.c.h.b16 %v385
  %v1841 = vunpack.c.l.b16 %v386
  %v1842 = vunpack.c.h.b16 %v386
  %v1843 = vunpack.c.l.b16 %v387
  %v1844 = vunpack.c.h.b16 %v387
  %v1845 = vunpack.c.l.b16 %v388
  %v1846 = vunpack.c.h.b16 %v388
  %v1847 = vunpack.c.l.b16 %v389
  %v1848 = vunpack.c.h.b16 %v389
  %v1849 = vunpack.c.l.b16 %v390
  %v1850 = vunpack.c.h.b16 %v390
  %v1851 = vunpack.c.l.b16 %v391
  %v1852 = vunpack.c.h.b16 %v391
  %v1853 = vunpack.c.l.b16 %v392
  %v1854 = vunpack.c.h.b16 %v392
  %v1855 = vunpack.c.l.b16 %v393
  %v1856 = vunpack.c.h.b16 %v393
  %v1857 = vunpack.c.l.b16 %v394
  %v1858 = vunpack.c.h.b16 %v394
  %v1859 = vunpack.c.l.b16 %v395
  %v1860 = vunpack.c.h.b16 %v395
  %v1861 = vunpack.c.l.b16 %v396
  %v1862 = vunpack.c.h.b16 %v396
  %v1863 = vunpack.c.l.b16 %v397
  %v1864 = vunpack.c.h.b16 %v397
  %v1865 = vunpack.c.l.b16 %v398
  %v1866 = vunpack.c.h.b16 %v398
  %v1867 = vunpack.c.l.b16 %v399
  %v1868 = vunpack.c.h.b16 %v399
  %v1869 = vunpack.c.l.b16 %v400
  %v1870 = vunpack.c.h.b16 %v400
  %v1871 = vunpack.c.l.b16 %v401
  %v1872 = vunpack.c.h.b16 %v401
  %v1873 = vunpack.c.l.b16 %v402
  %v1874 = vunpack.c.h.b16 %v402
  %v1875 = vunpack.c.l.b16 %v403
  %v1876 = vunpack.c.h.b16 %v403
  %v1877 = vunpack.c.l.b16 %v404
  %v1878 = vunpack.c.h.b16 %v404
  %v1879 = vunpack.c.l.b16 %v405
  %v1880 = vunpack.c.h.b16 %v405
  %v1881 = vunpack.c.l.b16 %v406
  %v1882 = vunpack.c.h.b16 %v406
  %v1883 = vunpack.c.l.b16 %v407
  %v1884 = vunpack.c.h.b16 %v407
  %v1885 = vunpack.c.l.b16 %v408
  %v1886 = vunpack.c.h.b16 %v408
  %v1887 = vunpack.c.l.b16 %v409
  %v1888 = vunpack.c.h.b16 %v409
  %v1889 = vunpack.c.l.b16 %v410
  %v1890 = vunpack.c.h.b16 %v410
  %v1891 = vunpack.c.l.b16 %v411
  %v1892 = vunpack.c.h.b16 %v411
  %v1893 = vunpack.c.l.b16 %v412
  %v1894 = vunpack.c.h.b16 %v412
  %v1895 = vunpack.c.l.b16 %v413
  %v1896 = vunpack.c.h.b16 %v413
  %v1897 = vunpack.c.l.b16 %v414
  %v1898 = vunpack.c.h.b16 %v414
  %v1899 = vunpack.c.l.b16 %v415
  %v1900 = vunpack.c.h.b16 %v415
  %v1901 = vunpack.c.l.b16 %v416
  %v1902 = vunpack.c.h.b16 %v416
  %v1903 = vunpack.c.l.b16 %v417
  %v1904 = vunpack.c.h.b16 %v417
  %v1905 = vunpack.c.l.b16 %v418
  %v1906 = vunpack.c.h.b16 %v418
  %v1907 = vunpack.c.l.b16 %v419
  %v1908 = vunpack.c.h.b16 %v419
  %v1909 = vunpack.c.l.b16 %v420
  %v1910 = vunpack.c.h.b16 %v420
  %v1911 = vunpack.c.l.b16 %v421
  %v1912 = vunpack.c.h.b16 %v421
  %v1913 = vunpack.c.l.b16 %v422
  %v1914 = vunpack.c.h.b16 %v422
  %v1915 = vunpack.c.l.b16 %v423
  %v1916 = vunpack.c.h.b16 %v423
  %v1917 = vunpack.c.l.b16 %v424
  %v1918 = vunpack.c.h.b16 %v424
  %v1919 = vunpack.c.l.b16 %v425
  %v1920 = vunpack.c.h.b16 %v425
  %v1921 = vunpack.c.l.b16 %v426
  %v1922 = vunpack.c.h.b16 %v426
  %v1923 = vunpack.c.l.b16 %v427
  %v1924 = vunpack.c.h.b16 %v427
  %v1925 = vunpack.c.l.b16 %v428
  %v1926 = vunpack.c.h.b16 %v428
  %v1927 = vunpack.c.l.b16 %v429
  %v1928 = vunpack.c.h.b16 %v429
  %v1929 = vunpack.c.l.b16 %v430
  %v1930 = vunpack.c.h.b16 %v430
  %v1931 = vunpack.c.l.b16 %v431
  %v1932 = vunpack.c.h.b16 %v431
  %v1933 = vunpack.c.l.b16 %v432
  %v1934 = vunpack.c.h.b16 %v432
  %v1935 = vunpack.c.l.b16 %v433
  %v1936 = vunpack.c.h.b16 %v433
  %v1937 = vunpack.c.l.b16 %v434
  %v1938 = vunpack.c.h.b16 %v434
  %v1939 = vunpack.c.l.b16 %v435
  %v1940 = vunpack.c.h.b16 %v435
  %v1941 = vunpack.c.l.b16 %v436
  %v1942 = vunpack.c.h.b16 %v436
  %v1943 = vunpack.c.l.b16 %v437
  %v1944 = vunpack.c.h.b16 %v437
  %v1945 = vunpack.c.l.b16 %v438
  %v1946 = vunpack.c.h.b16 %v438
  %v1947 = vunpack.c.l.b16 %v439
  %v1948 = vunpack.c.h.b16 %v439
  %v1949 = vunpack.c.l.b16 %v440
  %v1950 = vunpack.c.h.b16 %v440
  %v1951 = vunpack.c.l.b16 %v441
  %v1952 = vunpack.c.h.b16 %v441
  %v1953 = vunpack.c.l.b16 %v442
  %v1954 = vunpack.c.h.b16 %v442
  %v1955 = vunpack.c.l.b16 %v443
  %v1956 = vunpack.c.h.b16 %v443
  %v1957 = vunpack.c.l.b16 %v444
  %v1958 = vunpack.c.h.b16 %v444
  %v1959 = vunpack.c.l.b16 %v445
  %v1960 = vunpack.c.h.b16 %v445
  %v1961 = vunpack.c.l.b16 %v446
  %v1962 = vunpack.c.h.b16 %v446
  %v1963 = vunpack.c.l.b16 %v447
  %v1964 = vunpack.c.h.b16 %v447
  %v1965 = vunpack.c.l.b16 %v448
  %v1966 = vunpack.c.h.b16 %v448
  %v1967 = vunpack.c.l.b16 %v449
  %v1968 = vunpack.c.h.b16 %v449
  %v1969 = vunpack.c.l.b16 %v450
  %v1970 = vunpack.c.h.b16 %v450
  %v1971 = vunpack.c.l.b16 %v451
  %v1972 = vunpack.c.h.b16 %v451
  %v1973 = vunpack.c.l.b16 %v452
  %v1974 = vunpack.c.h.b16 %v452
  %v1975 = vunpack.c.l.b16 %v453
  %v1976 = vunpack.c.h.b16 %v453
  %v1977 = vunpack.c.l.b16 %v454
  %v1978 = vunpack.c.h.b16 %v454
  %v1979 = vunpack.c.l.b16 %v455
  %v1980 = vunpack.c.h.b16 %v455
  %v1981 = vunpack.c.l.b16 %v456
  %v1982 = vunpack.c.h.b16 %v456
  %v1983 = vunpack.c.l.b16 %v457
  %v1984 = vunpack.c.h.b16 %v457
  %v1985 = vunpack.c.l.b16 %v458
  %v1986 = vunpack.c.h.b16 %v458
  %v1987 = vunpack.c.l.b16 %v459
  %v1988 = vunpack.c.h.b16 %v459
  %v1989 = vunpack.c.l.b16 %v460
  %v1990 = vunpack.c.h.b16 %v460
  %v1991 = vunpack.c.l.b16 %v461
  %v1992 = vunpack.c.h.b16 %v461
  %v1993 = vunpack.c.l.b16 %v462
  %v1994 = vunpack.c.h.b16 %v462
  %v1995 = vunpack.c.l.b16 %v463
  %v1996 = vunpack.c.h.b16 %v463
  %v1997 = vunpack.c.l.b16 %v464
  %v1998 = vunpack.c.h.b16 %v464
  %v1999 = vunpack.c.l.b16 %v465
  %v2000 = vunpack.c.h.b16 %v465
  %v2001 = vunpack.c.l.b16 %v466
  %v2002 = vunpack.c.h.b16 %v466
  %v2003 = vunpack.c.l.b16 %v467
  %v2004 = vunpack.c.h.b16 %v467
  %v2005 = vunpack.c.l.b16 %v468
  %v2006 = vunpack.c.h.b16 %v468
  %v2007 = vunpack.c.l.b16 %v469
  %v2008 = vunpack.c.h.b16 %v469
  %v2009 = vunpack.c.l.b16 %v470
  %v2010 = vunpack.c.h.b16 %v470
  %v2011 = vunpack.c.l.b16 %v471
  %v2012 = vunpack.c.h.b16 %v471
  %v2013 = vunpack.c.l.b16 %v472
  %v2014 = vunpack.c.h.b16 %v472
  %v2015 = vunpack.c.l.b16 %v473
  %v2016 = vunpack.c.h.b16 %v473
  %v2017 = vunpack.c.l.b16 %v474
  %v2018 = vunpack.c.h.b16 %v474
  %v2019 = vunpack.c.l.b16 %v475
  %v2020 = vunpack.c.h.b16 %v475
  %v2021 = vunpack.c.l.b16 %v476
  %v2022 = vunpack.c.h.b16 %v476
  %v2023 = vunpack.c.l.b16 %v477
  %v2024 = vunpack.c.h.b16 %v477
  %v2025 = vunpack.c.l.b16 %v478
  %v2026 = vunpack.c.h.b16 %v478
  %v2027 = vunpack.c.l.b16 %v479
  %v2028 = vunpack.c.h.b16 %v479
  %v2029 = vunpack.c.l.b16 %v480
  %v2030 = vunpack.c.h.b16 %v480
  %v2031 = vunpack.c.l.b16 %v481
  %v2032 = vunpack.c.h.b16 %v481
  %v2033 = vunpack.c.l.b16 %v482
  %v2034 = vunpack.c.h.b16 %v482
  %v2035 = vunpack.c.l.b16 %v483
  %v2036 = vunpack.c.h.b16 %v483
  %v2037 = vunpack.c.l.b16 %v484
  %v2038 = vunpack.c.h.b16 %v484
  %v2039 = vunpack.c.l.b16 %v485
  %v2040 = vunpack.c.h.b16 %v485
  %v2041 = vunpack.c.l.b16 %v486
  %v2042 = vunpack.c.h.b16 %v486
  %v2043 = vunpack.c.l.b16 %v487
  %v2044 = vunpack.c.h.b16 %v487
  %v2045 = vunpack.c.l.b16 %v488
  %v2046 = vunpack.c.h.b16 %v488
  %v2047 = vunpack.c.l.b16 %v489
  %v2048 = vunpack.c.h.b16 %v489
  %v2049 = vunpack.c.l.b16 %v490
  %v2050 = vunpack.c.h.b16 %v490
  %v2051 = vunpack.c.l.b16 %v491
  %v2052 = vunpack.c.h.b16 %v491
  %v2053 = vunpack.c.l.b16 %v492
  %v2054 = vunpack.c.h.b16 %v492
  %v2055 = vunpack.c.l.b16 %v493
  %v2056 = vunpack.c.h.b16 %v493
  %v2057 = vunpack.c.l.b16 %v494
  %v2058 = vunpack.c.h.b16 %v494
  %v2059 = vunpack.c.l.b16 %v495
  %v2060 = vunpack.c.h.b16 %v495
  %v2061 = vunpack.c.l.b16 %v496
  %v2062 = vunpack.c.h.b16 %v496
  %v2063 = vunpack.c.l.b16 %v497
  %v2064 = vunpack.c.h.b16 %v497
  %v2065 = vunpack.c.l.b16 %v498
  %v2066 = vunpack.c.h.b16 %v498
  %v2067 = vunpack.c.l.b16 %v499
  %v2068 = vunpack.c.h.b16 %v499
  %v2069 = vunpack.c.l.b16 %v500
  %v2070 = vunpack.c.h.b16 %v500
  %v2071 = vunpack.c.l.b16 %v501
  %v2072 = vunpack.c.h.b16 %v501
  %v2073 = vunpack.c.l.b16 %v502
  %v2074 = vunpack.c.h.b16 %v502
  %v2075 = vunpack.c.l.b16 %v503
  %v2076 = vunpack.c.h.b16 %v503
  %v2077 = vunpack.c.l.b16 %v504
  %v2078 = vunpack.c.h.b16 %v504
  %v2079 = vunpack.c.l.b16 %v505
  %v2080 = vunpack.c.h.b16 %v505
  %v2081 = vunpack.c.l.b16 %v506
  %v2082 = vunpack.c.h.b16 %v506
  %v2083 = vunpack.c.l.b16 %v507
  %v2084 = vunpack.c.h.b16 %v507
  %v2085 = vunpack.c.l.b16 %v508
  %v2086 = vunpack.c.h.b16 %v508
  %v2087 = vunpack.c.l.b16 %v509
  %v2088 = vunpack.c.h.b16 %v509
  %v2089 = vunpack.c.l.b16 %v510
  %v2090 = vunpack.c.h.b16 %v510
  %v2091 = vunpack.c.l.b16 %v511
  %v2092 = vunpack.c.h.b16 %v511
  %v2093 = vunpack.c.l.b16 %v512
  %v2094 = vunpack.c.h.b16 %v512
  %v2095 = vunpack.c.l.b16 %v513
  %v2096 = vunpack.c.h.b16 %v513
  %v2097 = vunpack.c.l.b16 %v514
  %v2098 = vunpack.c.h.b16 %v514
  %v2099 = vunpack.c.l.b16 %v515
  %v2100 = vunpack.c.h.b16 %v515
  %v2101 = vunpack.c.l.b16 %v516
  %v2102 = vunpack.c.h.b16 %v516
  %v2103 = vunpack.c.l.b16 %v517
  %v2104 = vunpack.c.h.b16 %v517
  %v2105 = vunpack.c.l.b16 %v518
  %v2106 = vunpack.c.h.b16 %v518
  %v2107 = vunpack.c.l.b16 %v519
  %v2108 = vunpack.c.h.b16 %v519
  %v2109 = vunpack.c.l.b16 %v520
  %v2110 = vunpack.c.h.b16 %v520
  %v2111 = vunpack.c.l.b16 %v521
  %v2112 = vunpack.c.h.b16 %v521
  %v2113 = vunpack.c.l.b16 %v522
  %v2114 = vunpack.c.h.b16 %v522
  %v2115 = vunpack.c.l.b16 %v523
  %v2116 = vunpack.c.h.b16 %v523
  %v2117 = vunpack.c.l.b16 %v524
  %v2118 = vunpack.c.h.b16 %v524
  %v2119 = vunpack.c.l.b16 %v525
  %v2120 = vunpack.c.h.b16 %v525
  %v2121 = vunpack.c.l.b16 %v526
  %v2122 = vunpack.c.h.b16 %v526
  %v2123 = vunpack.c.l.b16 %v527
  %v2124 = vunpack.c.h.b16 %v527
  %v2125 = vunpack.c.l.b16 %v528
  %v2126 = vunpack.c.h.b16 %v528
  %v2127 = vunpack.c.l.b16 %v529
  %v2128 = vunpack.c.h.b16 %v529
  %v2129 = vunpack.c.l.b16 %v530
  %v2130 = vunpack.c.h.b16 %v530
  %v2131 = vunpack.c.l.b16 %v531
  %v2132 = vunpack.c.h.b16 %v531
  %v2133 = vunpack.c.l.b16 %v532
  %v2134 = vunpack.c.h.b16 %v532
  %v2135 = vunpack.c.l.b16 %v533
  %v2136 = vunpack.c.h.b16 %v533
  %v2137 = vunpack.c.l.b16 %v534
  %v2138 = vunpack.c.h.b16 %v534
  %v2139 = vunpack.c.l.b16 %v535
  %v2140 = vunpack.c.h.b16 %v535
  %v2141 = vunpack.c.l.b16 %v536
  %v2142 = vunpack.c.h.b16 %v536
  %v2143 = vpack.c.b16 %v1127, %v1119
  %v2144 = vpack.c.b16 %v1128, %v1120
  %v2145 = vpack.c.b16 %v1129, %v1121
  %v2146 = vpack.c.b16 %v1130, %v1122
  %v2147 = vpack.c.b16 %v1131, %v1123
  %v2148 = vpack.c.b16 %v1132, %v1124
  %v2149 = vpack.c.b16 %v1133, %v1125
  %v2150 = vpack.c.b16 %v1134, %v1126
  %v2151 = vpack.c.b16 %v1143, %v1135
  %v2152 = vpack.c.b16 %v1144, %v1136
  %v2153 = vpack.c.b16 %v1145, %v1137
  %v2154 = vpack.c.b16 %v1146, %v1138
  %v2155 = vpack.c.b16 %v1147, %v1139
  %v2156 = vpack.c.b16 %v1148, %v1140
  %v2157 = vpack.c.b16 %v1149, %v1141
  %v2158 = vpack.c.b16 %v1150, %v1142
  %v2159 = vpack.c.b16 %v1159, %v1151
  %v2160 = vpack.c.b16 %v1160, %v1152
  %v2161 = vpack.c.b16 %v1161, %v1153
  %v2162 = vpack.c.b16 %v1162, %v1154
  %v2163 = vpack.c.b16 %v1163, %v1155
  %v2164 = vpack.c.b16 %v1164, %v1156
  %v2165 = vpack.c.b16 %v1165, %v1157
  %v2166 = vpack.c.b16 %v1166, %v1158
  %v2167 = vpack.c.b16 %v1175, %v1167
  %v2168 = vpack.c.b16 %v1176, %v1168
  %v2169 = vpack.c.b16 %v1177, %v1169
  %v2170 = vpack.c.b16 %v1178, %v1170
  %v2171 = vpack.c.b16 %v1179, %v1171
  %v2172 = vpack.c.b16 %v1180, %v1172
  %v2173 = vpack.c.b16 %v1181, %v1173
  %v2174 = vpack.c.b16 %v1182, %v1174
  %v2175 = vpack.c.b16 %v1191, %v1183
  %v2176 = vpack.c.b16 %v1192, %v1184
  %v2177 = vpack.c.b16 %v1193, %v1185
  %v2178 = vpack.c.b16 %v1194, %v1186
  %v2179 = vpack.c.b16 %v1195, %v1187
  %v2180 = vpack.c.b16 %v1196, %v1188
  %v2181 = vpack.c.b16 %v1197, %v1189
  %v2182 = vpack.c.b16 %v1198, %v1190
  %v2183 = vpack.c.b16 %v1207, %v1199
  %v2184 = vpack.c.b16 %v1208, %v1200
  %v2185 = vpack.c.b16 %v1209, %v1201
  %v2186 = vpack.c.b16 %v1210, %v1202
  %v2187 = vpack.c.b16 %v1211, %v1203
  %v2188 = vpack.c.b16 %v1212, %v1204
  %v2189 = vpack.c.b16 %v1213, %v1205
  %v2190 = vpack.c.b16 %v1214, %v1206
  %v2191 = vpack.c.b16 %v1223, %v1215
  %v2192 = vpack.c.b16 %v1224, %v1216
  %v2193 = vpack.c.b16 %v1225, %v1217
  %v2194 = vpack.c.b16 %v1226, %v1218
  %v2195 = vpack.c.b16 %v1227, %v1219
  %v2196 = vpack.c.b16 %v1228, %v1220
  %v2197 = vpack.c.b16 %v1229, %v1221
  %v2198 = vpack.c.b16 %v1230, %v1222
  %v2199 = vpack.c.b16 %v1239, %v1231
  %v2200 = vpack.c.b16 %v1240, %v1232
  %v2201 = vpack.c.b16 %v1241, %v1233
  %v2202 = vpack.c.b16 %v1242, %v1234
  %v2203 = vpack.c.b16 %v1243, %v1235
  %v2204 = vpack.c.b16 %v1244, %v1236
  %v2205 = vpack.c.b16 %v1245, %v1237
  %v2206 = vpack.c.b16 %v1246, %v1238
  %v2207 = vpack.c.b16 %v1255, %v1247
  %v2208 = vpack.c.b16 %v1256, %v1248
  %v2209 = vpack.c.b16 %v1257, %v1249
  %v2210 = vpack.c.b16 %v1258, %v1250
  %v2211 = vpack.c.b16 %v1259, %v1251
  %v2212 = vpack.c.b16 %v1260, %v1252
  %v2213 = vpack.c.b16 %v1261, %v1253
  %v2214 = vpack.c.b16 %v1262, %v1254
  %v2215 = vpack.c.b16 %v1271, %v1263
  %v2216 = vpack.c.b16 %v1272, %v1264
  %v2217 = vpack.c.b16 %v1273, %v1265
  %v2218 = vpack.c.b16 %v1274, %v1266
  %v2219 = vpack.c.b16 %v1275, %v1267
  %v2220 = vpack.c.b16 %v1276, %v1268
  %v2221 = vpack.c.b16 %v1277, %v1269
  %v2222 = vpack.c.b16 %v1278, %v1270
  %v2223 = vpack.c.b16 %v1287, %v1279
  %v2224 = vpack.c.b16 %v1288, %v1280
  %v2225 = vpack.c.b16 %v1289, %v1281
  %v2226 = vpack.c.b16 %v1290, %v1282
  %v2227 = vpack.c.b16 %v1291, %v1283
  %v2228 = vpack.c.b16 %v1292, %v1284
  %v2229 = vpack.c.b16 %v1293, %v1285
  %v2230 = vpack.c.b16 %v1294, %v1286
  %v2231 = vpack.c.b16 %v1303, %v1295
  %v2232 = vpack.c.b16 %v1304, %v1296
  %v2233 = vpack.c.b16 %v1305, %v1297
  %v2234 = vpack.c.b16 %v1306, %v1298
  %v2235 = vpack.c.b16 %v1307, %v1299
  %v2236 = vpack.c.b16 %v1308, %v1300
  %v2237 = vpack.c.b16 %v1309, %v1301
  %v2238 = vpack.c.b16 %v1310, %v1302
  %v2239 = vpack.c.b16 %v1319, %v1311
  %v2240 = vpack.c.b16 %v1320, %v1312
  %v2241 = vpack.c.b16 %v1321, %v1313
  %v2242 = vpack.c.b16 %v1322, %v1314
  %v2243 = vpack.c.b16 %v1323, %v1315
  %v2244 = vpack.c.b16 %v1324, %v1316
  %v2245 = vpack.c.b16 %v1325, %v1317
  %v2246 = vpack.c.b16 %v1326, %v1318
  %v2247 = vpack.c.b16 %v1335, %v1327
  %v2248 = vpack.c.b16 %v1336, %v1328
  %v2249 = vpack.c.b16 %v1337, %v1329
  %v2250 = vpack.c.b16 %v1338, %v1330
  %v2251 = vpack.c.b16 %v1339, %v1331
  %v2252 = vpack.c.b16 %v1340, %v1332
  %v2253 = vpack.c.b16 %v1341, %v1333
  %v2254 = vpack.c.b16 %v1342, %v1334
  %v2255 = vpack.c.b16 %v1351, %v1343
  %v2256 = vpack.c.b16 %v1352, %v1344
  %v2257 = vpack.c.b16 %v1353, %v1345
  %v2258 = vpack.c.b16 %v1354, %v1346
  %v2259 = vpack.c.b16 %v1355, %v1347
  %v2260 = vpack.c.b16 %v1356, %v1348
  %v2261 = vpack.c.b16 %v1357, %v1349
  %v2262 = vpack.c.b16 %v1358, %v1350
  %v2263 = vpack.c.b16 %v1367, %v1359
  %v2264 = vpack.c.b16 %v1368, %v1360
  %v2265 = vpack.c.b16 %v1369, %v1361
  %v2266 = vpack.c.b16 %v1370, %v1362
  %v2267 = vpack.c.b16 %v1371, %v1363
  %v2268 = vpack.c.b16 %v1372, %v1364
  %v2269 = vpack.c.b16 %v1373, %v1365
  %v2270 = vpack.c.b16 %v1374, %v1366
  %v2271 = vpack.c.b16 %v1383, %v1375
  %v2272 = vpack.c.b16 %v1384, %v1376
  %v2273 = vpack.c.b16 %v1385, %v1377
  %v2274 = vpack.c.b16 %v1386, %v1378
  %v2275 = vpack.c.b16 %v1387, %v1379
  %v2276 = vpack.c.b16 %v1388, %v1380
  %v2277 = vpack.c.b16 %v1389, %v1381
  %v2278 = vpack.c.b16 %v1390, %v1382
  %v2279 = vpack.c.b16 %v1399, %v1391
  %v2280 = vpack.c.b16 %v1400, %v1392
  %v2281 = vpack.c.b16 %v1401, %v1393
  %v2282 = vpack.c.b16 %v1402, %v1394
  %v2283 = vpack.c.b16 %v1403, %v1395
  %v2284 = vpack.c.b16 %v1404, %v1396
  %v2285 = vpack.c.b16 %v1405, %v1397
  %v2286 = vpack.c.b16 %v1406, %v1398
  %v2287 = vpack.c.b16 %v1415, %v1407
  %v2288 = vpack.c.b16 %v1416, %v1408
  %v2289 = vpack.c.b16 %v1417, %v1409
  %v2290 = vpack.c.b16 %v1418, %v1410
  %v2291 = vpack.c.b16 %v1419, %v1411
  %v2292 = vpack.c.b16 %v1420, %v1412
  %v2293 = vpack.c.b16 %v1421, %v1413
  %v2294 = vpack.c.b16 %v1422, %v1414
  %v2295 = vpack.c.b16 %v1431, %v1423
  %v2296 = vpack.c.b16 %v1432, %v1424
  %v2297 = vpack.c.b16 %v1433, %v1425
  %v2298 = vpack.c.b16 %v1434, %v1426
  %v2299 = vpack.c.b16 %v1435, %v1427
  %v2300 = vpack.c.b16 %v1436, %v1428
  %v2301 = vpack.c.b16 %v1437, %v1429
  %v2302 = vpack.c.b16 %v1438, %v1430
  %v2303 = vpack.c.b16 %v1447, %v1439
  %v2304 = vpack.c.b16 %v1448, %v1440
  %v2305 = vpack.c.b16 %v1449, %v1441
  %v2306 = vpack.c.b16 %v1450, %v1442
  %v2307 = vpack.c.b16 %v1451, %v1443
  %v2308 = vpack.c.b16 %v1452, %v1444
  %v2309 = vpack.c.b16 %v1453, %v1445
  %v2310 = vpack.c.b16 %v1454, %v1446
  %v2311 = vpack.c.b16 %v1463, %v1455
  %v2312 = vpack.c.b16 %v1464, %v1456
  %v2313 = vpack.c.b16 %v1465, %v1457
  %v2314 = vpack.c.b16 %v1466, %v1458
  %v2315 = vpack.c.b16 %v1467, %v1459
  %v2316 = vpack.c.b16 %v1468, %v1460
  %v2317 = vpack.c.b16 %v1469, %v1461
  %v2318 = vpack.c.b16 %v1470, %v1462
  %v2319 = vpack.c.b16 %v1479, %v1471
  %v2320 = vpack.c.b16 %v1480, %v1472
  %v2321 = vpack.c.b16 %v1481, %v1473
  %v2322 = vpack.c.b16 %v1482, %v1474
  %v2323 = vpack.c.b16 %v1483, %v1475
  %v2324 = vpack.c.b16 %v1484, %v1476
  %v2325 = vpack.c.b16 %v1485, %v1477
  %v2326 = vpack.c.b16 %v1486, %v1478
  %v2327 = vpack.c.b16 %v1495, %v1487
  %v2328 = vpack.c.b16 %v1496, %v1488
  %v2329 = vpack.c.b16 %v1497, %v1489
  %v2330 = vpack.c.b16 %v1498, %v1490
  %v2331 = vpack.c.b16 %v1499, %v1491
  %v2332 = vpack.c.b16 %v1500, %v1492
  %v2333 = vpack.c.b16 %v1501, %v1493
  %v2334 = vpack.c.b16 %v1502, %v1494
  %v2335 = vpack.c.b16 %v1511, %v1503
  %v2336 = vpack.c.b16 %v1512, %v1504
  %v2337 = vpack.c.b16 %v1513, %v1505
  %v2338 = vpack.c.b16 %v1514, %v1506
  %v2339 = vpack.c.b16 %v1515, %v1507
  %v2340 = vpack.c.b16 %v1516, %v1508
  %v2341 = vpack.c.b16 %v1517, %v1509
  %v2342 = vpack.c.b16 %v1518, %v1510
  %v2343 = vpack.c.b16 %v1527, %v1519
  %v2344 = vpack.c.b16 %v1528, %v1520
  %v2345 = vpack.c.b16 %v1529, %v1521
  %v2346 = vpack.c.b16 %v1530, %v1522
  %v2347 = vpack.c.b16 %v1531, %v1523
  %v2348 = vpack.c.b16 %v1532, %v1524
  %v2349 = vpack.c.b16 %v1533, %v1525
  %v2350 = vpack.c.b16 %v1534, %v1526
  %v2351 = vpack.c.b16 %v1543, %v1535
  %v2352 = vpack.c.b16 %v1544, %v1536
  %v2353 = vpack.c.b16 %v1545, %v1537
  %v2354 = vpack.c.b16 %v1546, %v1538
  %v2355 = vpack.c.b16 %v1547, %v1539
  %v2356 = vpack.c.b16 %v1548, %v1540
  %v2357 = vpack.c.b16 %v1549, %v1541
  %v2358 = vpack.c.b16 %v1550, %v1542
  %v2359 = vpack.c.b16 %v1559, %v1551
  %v2360 = vpack.c.b16 %v1560, %v1552
  %v2361 = vpack.c.b16 %v1561, %v1553
  %v2362 = vpack.c.b16 %v1562, %v1554
  %v2363 = vpack.c.b16 %v1563, %v1555
  %v2364 = vpack.c.b16 %v1564, %v1556
  %v2365 = vpack.c.b16 %v1565, %v1557
  %v2366 = vpack.c.b16 %v1566, %v1558
  %v2367 = vpack.c.b16 %v1575, %v1567
  %v2368 = vpack.c.b16 %v1576, %v1568
  %v2369 = vpack.c.b16 %v1577, %v1569
  %v2370 = vpack.c.b16 %v1578, %v1570
  %v2371 = vpack.c.b16 %v1579, %v1571
  %v2372 = vpack.c.b16 %v1580, %v1572
  %v2373 = vpack.c.b16 %v1581, %v1573
  %v2374 = vpack.c.b16 %v1582, %v1574
  %v2375 = vpack.c.b16 %v1591, %v1583
  %v2376 = vpack.c.b16 %v1592, %v1584
  %v2377 = vpack.c.b16 %v1593, %v1585
  %v2378 = vpack.c.b16 %v1594, %v1586
  %v2379 = vpack.c.b16 %v1595, %v1587
  %v2380 = vpack.c.b16 %v1596, %v1588
  %v2381 = vpack.c.b16 %v1597, %v1589
  %v2382 = vpack.c.b16 %v1598, %v1590
  %v2383 = vpack.c.b16 %v1607, %v1599
  %v2384 = vpack.c.b16 %v1608, %v1600
  %v2385 = vpack.c.b16 %v1609, %v1601
  %v2386 = vpack.c.b16 %v1610, %v1602
  %v2387 = vpack.c.b16 %v1611, %v1603
  %v2388 = vpack.c.b16 %v1612, %v1604
  %v2389 = vpack.c.b16 %v1613, %v1605
  %v2390 = vpack.c.b16 %v1614, %v1606
  %v2391 = vpack.c.b16 %v1623, %v1615
  %v2392 = vpack.c.b16 %v1624, %v1616
  %v2393 = vpack.c.b16 %v1625, %v1617
  %v2394 = vpack.c.b16 %v1626, %v1618
  %v2395 = vpack.c.b16 %v1627, %v1619
  %v2396 = vpack.c.b16 %v1628, %v1620
  %v2397 = vpack.c.b16 %v1629, %v1621
  %v2398 = vpack.c.b16 %v1630, %v1622
  %v2399 = vpack.c.b16 %v1639, %v1631
  %v2400 = vpack.c.b16 %v1640, %v1632
  %v2401 = vpack.c.b16 %v1641, %v1633
  %v2402 = vpack.c.b16 %v1642, %v1634
  %v2403 = vpack.c.b16 %v1643, %v1635
  %v2404 = vpack.c.b16 %v1644, %v1636
  %v2405 = vpack.c.b16 %v1645, %v1637
  %v2406 = vpack.c.b16 %v1646, %v1638
  %v2407 = vpack.c.b16 %v1655, %v1647
  %v2408 = vpack.c.b16 %v1656, %v1648
  %v2409 = vpack.c.b16 %v1657, %v1649
  %v2410 = vpack.c.b16 %v1658, %v1650
  %v2411 = vpack.c.b16 %v1659, %v1651
  %v2412 = vpack.c.b16 %v1660, %v1652
  %v2413 = vpack.c.b16 %v1661, %v1653
  %v2414 = vpack.c.b16 %v1662, %v1654
  %v2415 = vpack.c.b16 %v1671, %v1663
  %v2416 = vpack.c.b16 %v1672, %v1664
  %v2417 = vpack.c.b16 %v1673, %v1665
  %v2418 = vpack.c.b16 %v1674, %v1666
  %v2419 = vpack.c.b16 %v1675, %v1667
  %v2420 = vpack.c.b16 %v1676, %v1668
  %v2421 = vpack.c.b16 %v1677, %v1669
  %v2422 = vpack.c.b16 %v1678, %v1670
  %v2423 = vpack.c.b16 %v1687, %v1679
  %v2424 = vpack.c.b16 %v1688, %v1680
  %v2425 = vpack.c.b16 %v1689, %v1681
  %v2426 = vpack.c.b16 %v1690, %v1682
  %v2427 = vpack.c.b16 %v1691, %v1683
  %v2428 = vpack.c.b16 %v1692, %v1684
  %v2429 = vpack.c.b16 %v1693, %v1685
  %v2430 = vpack.c.b16 %v1694, %v1686
  %v2431 = vpack.c.b16 %v1703, %v1695
  %v2432 = vpack.c.b16 %v1704, %v1696
  %v2433 = vpack.c.b16 %v1705, %v1697
  %v2434 = vpack.c.b16 %v1706, %v1698
  %v2435 = vpack.c.b16 %v1707, %v1699
  %v2436 = vpack.c.b16 %v1708, %v1700
  %v2437 = vpack.c.b16 %v1709, %v1701
  %v2438 = vpack.c.b16 %v1710, %v1702
  %v2439 = vpack.c.b16 %v1719, %v1711
  %v2440 = vpack.c.b16 %v1720, %v1712
  %v2441 = vpack.c.b16 %v1721, %v1713
  %v2442 = vpack.c.b16 %v1722, %v1714
  %v2443 = vpack.c.b16 %v1723, %v1715
  %v2444 = vpack.c.b16 %v1724, %v1716
  %v2445 = vpack.c.b16 %v1725, %v1717
  %v2446 = vpack.c.b16 %v1726, %v1718
  %v2447 = vpack.c.b16 %v1735, %v1727
  %v2448 = vpack.c.b16 %v1736, %v1728
  %v2449 = vpack.c.b16 %v1737, %v1729
  %v2450 = vpack.c.b16 %v1738, %v1730
  %v2451 = vpack.c.b16 %v1739, %v1731
  %v2452 = vpack.c.b16 %v1740, %v1732
  %v2453 = vpack.c.b16 %v1741, %v1733
  %v2454 = vpack.c.b16 %v1742, %v1734
  %v2455 = vpack.c.b16 %v1751, %v1743
  %v2456 = vpack.c.b16 %v1752, %v1744
  %v2457 = vpack.c.b16 %v1753, %v1745
  %v2458 = vpack.c.b16 %v1754, %v1746
  %v2459 = vpack.c.b16 %v1755, %v1747
  %v2460 = vpack.c.b16 %v1756, %v1748
  %v2461 = vpack.c.b16 %v1757, %v1749
  %v2462 = vpack.c.b16 %v1758, %v1750
  %v2463 = vpack.c.b16 %v1767, %v1759
  %v2464 = vpack.c.b16 %v1768, %v1760
  %v2465 = vpack.c.b16 %v1769, %v1761
  %v2466 = vpack.c.b16 %v1770, %v1762
  %v2467 = vpack.c.b16 %v1771, %v1763
  %v2468 = vpack.c.b16 %v1772, %v1764
  %v2469 = vpack.c.b16 %v1773, %v1765
  %v2470 = vpack.c.b16 %v1774, %v1766
  %v2471 = vpack.c.b16 %v1783, %v1775
  %v2472 = vpack.c.b16 %v1784, %v1776
  %v2473 = vpack.c.b16 %v1785, %v1777
  %v2474 = vpack.c.b16 %v1786, %v1778
  %v2475 = vpack.c.b16 %v1787, %v1779
  %v2476 = vpack.c.b16 %v1788, %v1780
  %v2477 = vpack.c.b16 %v1789, %v1781
  %v2478 = vpack.c.b16 %v1790, %v1782
  %v2479 = vpack.c.b16 %v1799, %v1791
  %v2480 = vpack.c.b16 %v1800, %v1792
  %v2481 = vpack.c.b16 %v1801, %v1793
  %v2482 = vpack.c.b16 %v1802, %v1794
  %v2483 = vpack.c.b16 %v1803, %v1795
  %v2484 = vpack.c.b16 %v1804, %v1796
  %v2485 = vpack.c.b16 %v1805, %v1797
  %v2486 = vpack.c.b16 %v1806, %v1798
  %v2487 = vpack.c.b16 %v1815, %v1807
  %v2488 = vpack.c.b16 %v1816, %v1808
  %v2489 = vpack.c.b16 %v1817, %v1809
  %v2490 = vpack.c.b16 %v1818, %v1810
  %v2491 = vpack.c.b16 %v1819, %v1811
  %v2492 = vpack.c.b16 %v1820, %v1812
  %v2493 = vpack.c.b16 %v1821, %v1813
  %v2494 = vpack.c.b16 %v1822, %v1814
  %v2495 = vpack.c.b16 %v1831, %v1823
  %v2496 = vpack.c.b16 %v1832, %v1824
  %v2497 = vpack.c.b16 %v1833, %v1825
  %v2498 = vpack.c.b16 %v1834, %v1826
  %v2499 = vpack.c.b16 %v1835, %v1827
  %v2500 = vpack.c.b16 %v1836, %v1828
  %v2501 = vpack.c.b16 %v1837, %v1829
  %v2502 = vpack.c.b16 %v1838, %v1830
  %v2503 = vpack.c.b16 %v1847, %v1839
  %v2504 = vpack.c.b16 %v1848, %v1840
  %v2505 = vpack.c.b16 %v1849, %v1841
  %v2506 = vpack.c.b16 %v1850, %v1842
  %v2507 = vpack.c.b16 %v1851, %v1843
  %v2508 = vpack.c.b16 %v1852, %v1844
  %v2509 = vpack.c.b16 %v1853, %v1845
  %v2510 = vpack.c.b16 %v1854, %v1846
  %v2511 = vpack.c.b16 %v1863, %v1855
  %v2512 = vpack.c.b16 %v1864, %v1856
  %v2513 = vpack.c.b16 %v1865, %v1857
  %v2514 = vpack.c.b16 %v1866, %v1858
  %v2515 = vpack.c.b16 %v1867, %v1859
  %v2516 = vpack.c.b16 %v1868, %v1860
  %v2517 = vpack.c.b16 %v1869, %v1861
  %v2518 = vpack.c.b16 %v1870, %v1862
  %v2519 = vpack.c.b16 %v1879, %v1871
  %v2520 = vpack.c.b16 %v1880, %v1872
  %v2521 = vpack.c.b16 %v1881, %v1873
  %v2522 = vpack.c.b16 %v1882, %v1874
  %v2523 = vpack.c.b16 %v1883, %v1875
  %v2524 = vpack.c.b16 %v1884, %v1876
  %v2525 = vpack.c.b16 %v1885, %v1877
  %v2526 = vpack.c.b16 %v1886, %v1878
  %v2527 = vpack.c.b16 %v1895, %v1887
  %v2528 = vpack.c.b16 %v1896, %v1888
  %v2529 = vpack.c.b16 %v1897, %v1889
  %v2530 = vpack.c.b16 %v1898, %v1890
  %v2531 = vpack.c.b16 %v1899, %v1891
  %v2532 = vpack.c.b16 %v1900, %v1892
  %v2533 = vpack.c.b16 %v1901, %v1893
  %v2534 = vpack.c.b16 %v1902, %v1894
  %v2535 = vpack.c.b16 %v1911, %v1903
  %v2536 = vpack.c.b16 %v1912, %v1904
  %v2537 = vpack.c.b16 %v1913, %v1905
  %v2538 = vpack.c.b16 %v1914, %v1906
  %v2539 = vpack.c.b16 %v1915, %v1907
  %v2540 = vpack.c.b16 %v1916, %v1908
  %v2541 = vpack.c.b16 %v1917, %v1909
  %v2542 = vpack.c.b16 %v1918, %v1910
  %v2543 = vpack.c.b16 %v1927, %v1919
  %v2544 = vpack.c.b16 %v1928, %v1920
  %v2545 = vpack.c.b16 %v1929, %v1921
  %v2546 = vpack.c.b16 %v1930, %v1922
  %v2547 = vpack.c.b16 %v1931, %v1923
  %v2548 = vpack.c.b16 %v1932, %v1924
  %v2549 = vpack.c.b16 %v1933, %v1925
  %v2550 = vpack.c.b16 %v1934, %v1926
  %v2551 = vpack.c.b16 %v1943, %v1935
  %v2552 = vpack.c.b16 %v1944, %v1936
  %v2553 = vpack.c.b16 %v1945, %v1937
  %v2554 = vpack.c.b16 %v1946, %v1938
  %v2555 = vpack.c.b16 %v1947, %v1939
  %v2556 = vpack.c.b16 %v1948, %v1940
  %v2557 = vpack.c.b16 %v1949, %v1941
  %v2558 = vpack.c.b16 %v1950, %v1942
  %v2559 = vpack.c.b16 %v1959, %v1951
  %v2560 = vpack.c.b16 %v1960, %v1952
  %v2561 = vpack.c.b16 %v1961, %v1953
  %v2562 = vpack.c.b16 %v1962, %v1954
  %v2563 = vpack.c.b16 %v1963, %v1955
  %v2564 = vpack.c.b16 %v1964, %v1956
  %v2565 = vpack.c.b16 %v1965, %v1957
  %v2566 = vpack.c.b16 %v1966, %v1958
  %v2567 = vpack.c.b16 %v1975, %v1967
  %v2568 = vpack.c.b16 %v1976, %v1968
  %v2569 = vpack.c.b16 %v1977, %v1969
  %v2570 = vpack.c.b16 %v1978, %v1970
  %v2571 = vpack.c.b16 %v1979, %v1971
  %v2572 = vpack.c.b16 %v1980, %v1972
  %v2573 = vpack.c.b16 %v1981, %v1973
  %v2574 = vpack.c.b16 %v1982, %v1974
  %v2575 = vpack.c.b16 %v1991, %v1983
  %v2576 = vpack.c.b16 %v1992, %v1984
  %v2577 = vpack.c.b16 %v1993, %v1985
  %v2578 = vpack.c.b16 %v1994, %v1986
  %v2579 = vpack.c.b16 %v1995, %v1987
  %v2580 = vpack.c.b16 %v1996, %v1988
  %v2581 = vpack.c.b16 %v1997, %v1989
  %v2582 = vpack.c.b16 %v1998, %v1990
  %v2583 = vpack.c.b16 %v2007, %v1999
  %v2584 = vpack.c.b16 %v2008, %v2000
  %v2585 = vpack.c.b16 %v2009, %v2001
  %v2586 = vpack.c.b16 %v2010, %v2002
  %v2587 = vpack.c.b16 %v2011, %v2003
  %v2588 = vpack.c.b16 %v2012, %v2004
  %v2589 = vpack.c.b16 %v2013, %v2005
  %v2590 = vpack.c.b16 %v2014, %v2006
  %v2591 = vpack.c.b16 %v2023, %v2015
  %v2592 = vpack.c.b16 %v2024, %v2016
  %v2593 = vpack.c.b16 %v2025, %v2017
  %v2594 = vpack.c.b16 %v2026, %v2018
  %v2595 = vpack.c.b16 %v2027, %v2019
  %v2596 = vpack.c.b16 %v2028, %v2020
  %v2597 = vpack.c.b16 %v2029, %v2021
  %v2598 = vpack.c.b16 %v2030, %v2022
  %v2599 = vpack.c.b16 %v2039, %v2031
  %v2600 = vpack.c.b16 %v2040, %v2032
  %v2601 = vpack.c.b16 %v2041, %v2033
  %v2602 = vpack.c.b16 %v2042, %v2034
  %v2603 = vpack.c.b16 %v2043, %v2035
  %v2604 = vpack.c.b16 %v2044, %v2036
  %v2605 = vpack.c.b16 %v2045, %v2037
  %v2606 = vpack.c.b16 %v2046, %v2038
  %v2607 = vpack.c.b16 %v2055, %v2047
  %v2608 = vpack.c.b16 %v2056, %v2048
  %v2609 = vpack.c.b16 %v2057, %v2049
  %v2610 = vpack.c.b16 %v2058, %v2050
  %v2611 = vpack.c.b16 %v2059, %v2051
  %v2612 = vpack.c.b16 %v2060, %v2052
  %v2613 = vpack.c.b16 %v2061, %v2053
  %v2614 = vpack.c.b16 %v2062, %v2054
  %v2615 = vpack.c.b16 %v2071, %v2063
  %v2616 = vpack.c.b16 %v2072, %v2064
  %v2617 = vpack.c.b16 %v2073, %v2065
  %v2618 = vpack.c.b16 %v2074, %v2066
  %v2619 = vpack.c.b16 %v2075, %v2067
  %v2620 = vpack.c.b16 %v2076, %v2068
  %v2621 = vpack.c.b16 %v2077, %v2069
  %v2622 = vpack.c.b16 %v2078, %v2070
  %v2623 = vpack.c.b16 %v2087, %v2079
  %v2624 = vpack.c.b16 %v2088, %v2080
  %v2625 = vpack.c.b16 %v2089, %v2081
  %v2626 = vpack.c.b16 %v2090, %v2082
  %v2627 = vpack.c.b16 %v2091, %v2083
  %v2628 = vpack.c.b16 %v2092, %v2084
  %v2629 = vpack.c.b16 %v2093, %v2085
  %v2630 = vpack.c.b16 %v2094, %v2086
  %v2631 = vpack.c.b16 %v2103, %v2095
  %v2632 = vpack.c.b16 %v2104, %v2096
  %v2633 = vpack.c.b16 %v2105, %v2097
  %v2634 = vpack.c.b16 %v2106, %v2098
  %v2635 = vpack.c.b16 %v2107, %v2099
  %v2636 = vpack.c.b16 %v2108, %v2100
  %v2637 = vpack.c.b16 %v2109, %v2101
  %v2638 = vpack.c.b16 %v2110, %v2102
  %v2639 = vpack.c.b16 %v2119, %v2111
  %v2640 = vpack.c.b16 %v2120, %v2112
  %v2641 = vpack.c.b16 %v2121, %v2113
  %v2642 = vpack.c.b16 %v2122, %v2114
  %v2643 = vpack.c.b16 %v2123, %v2115
  %v2644 = vpack.c.b16 %v2124, %v2116
  %v2645 = vpack.c.b16 %v2125, %v2117
  %v2646 = vpack.c.b16 %v2126, %v2118
  %v2647 = vpack.c.b16 %v2135, %v2127
  %v2648 = vpack.c.b16 %v2136, %v2128
  %v2649 = vpack.c.b16 %v2137, %v2129
  %v2650 = vpack.c.b16 %v2138, %v2130
  %v2651 = vpack.c.b16 %v2139, %v2131
  %v2652 = vpack.c.b16 %v2140, %v2132
  %v2653 = vpack.c.b16 %v2141, %v2133
  %v2654 = vpack.c.b16 %v2142, %v2134
  %3167 = vmatprep.subr.bf16.mxu0 %v2144
  %3168 = vmatpush1.bf16.msra.mxu0 %v2143
  %3169 = vmatprep.subr.bf16.mxu0 %v2152
  %3170 = vmatpush1.bf16.msra.mxu0 %v2151
  %3171 = vmatprep.subr.bf16.mxu0 %v2160
  %3172 = vmatpush1.bf16.msra.mxu0 %v2159
  %3173 = vmatprep.subr.bf16.mxu0 %v2168
  %3174 = vmatpush1.bf16.msra.mxu0 %v2167
  %3175 = vmatprep.subr.bf16.mxu0 %v2176
  %3176 = vmatpush1.bf16.msra.mxu0 %v2175
  %3177 = vmatprep.subr.bf16.mxu0 %v2184
  %3178 = vmatpush1.bf16.msra.mxu0 %v2183
  %3179 = vmatprep.subr.bf16.mxu0 %v2192
  %3180 = vmatpush1.bf16.msra.mxu0 %v2191
  %3181 = vmatprep.subr.bf16.mxu0 %v2200
  %3182 = vmatpush1.bf16.msra.mxu0 %v2199
  %3183 = vmatprep.subr.bf16.mxu0 %v2208
  %3184 = vmatpush1.bf16.msra.mxu0 %v2207
  %3185 = vmatprep.subr.bf16.mxu0 %v2216
  %3186 = vmatpush1.bf16.msra.mxu0 %v2215
  %3187 = vmatprep.subr.bf16.mxu0 %v2224
  %3188 = vmatpush1.bf16.msra.mxu0 %v2223
  %3189 = vmatprep.subr.bf16.mxu0 %v2232
  %3190 = vmatpush1.bf16.msra.mxu0 %v2231
  %3191 = vmatprep.subr.bf16.mxu0 %v2240
  %3192 = vmatpush1.bf16.msra.mxu0 %v2239
  %3193 = vmatprep.subr.bf16.mxu0 %v2248
  %3194 = vmatpush1.bf16.msra.mxu0 %v2247
  %3195 = vmatprep.subr.bf16.mxu0 %v2256
  %3196 = vmatpush1.bf16.msra.mxu0 %v2255
  %3197 = vmatprep.subr.bf16.mxu0 %v2264
  %3198 = vmatpush1.bf16.msra.mxu0 %v2263
  %3199 = vmatprep.mubr.bf16.mxu0 %v592
  %3200 = vmatmul.mubr.bf16.gmra.mrb[0].mxu0 %v591
  %v3201 = vpop.f32.mrb[0].mxu0
  %v3202 = vadd.f32 %v542, %v3201
  %v3203 = vpop.f32.mrb[0].mxu0
  %v3204 = vadd.f32 %v546, %v3203
  %v3205 = vpop.f32.mrb[0].mxu0
  %v3206 = vpop.f32.mrb[0].mxu0
  %3207 = vdwg.mxu0
  %3208 = vmatprep.subr.bf16.mxu0 %v2272
  %3209 = vmatpush1.bf16.msra.mxu0 %v2271
  %3210 = vmatprep.subr.bf16.mxu0 %v2280
  %3211 = vmatpush1.bf16.msra.mxu0 %v2279
  %3212 = vmatprep.subr.bf16.mxu0 %v2288
  %3213 = vmatpush1.bf16.msra.mxu0 %v2287
  %3214 = vmatprep.subr.bf16.mxu0 %v2296
  %3215 = vmatpush1.bf16.msra.mxu0 %v2295
  %3216 = vmatprep.subr.bf16.mxu0 %v2304
  %3217 = vmatpush1.bf16.msra.mxu0 %v2303
  %3218 = vmatprep.subr.bf16.mxu0 %v2312
  %3219 = vmatpush1.bf16.msra.mxu0 %v2311
  %3220 = vmatprep.subr.bf16.mxu0 %v2320
  %3221 = vmatpush1.bf16.msra.mxu0 %v2319
  %3222 = vmatprep.subr.bf16.mxu0 %v2328
  %3223 = vmatpush1.bf16.msra.mxu0 %v2327
  %3224 = vmatprep.subr.bf16.mxu0 %v2336
  %3225 = vmatpush1.bf16.msra.mxu0 %v2335
  %3226 = vmatprep.subr.bf16.mxu0 %v2344
  %3227 = vmatpush1.bf16.msra.mxu0 %v2343
  %3228 = vmatprep.subr.bf16.mxu0 %v2352
  %3229 = vmatpush1.bf16.msra.mxu0 %v2351
  %3230 = vmatprep.subr.bf16.mxu0 %v2360
  %3231 = vmatpush1.bf16.msra.mxu0 %v2359
  %3232 = vmatprep.subr.bf16.mxu0 %v2368
  %3233 = vmatpush1.bf16.msra.mxu0 %v2367
  %3234 = vmatprep.subr.bf16.mxu0 %v2376
  %3235 = vmatpush1.bf16.msra.mxu0 %v2375
  %3236 = vmatprep.subr.bf16.mxu0 %v2384
  %3237 = vmatpush1.bf16.msra.mxu0 %v2383
  %3238 = vmatprep.subr.bf16.mxu0 %v2392
  %3239 = vmatpush1.bf16.msra.mxu0 %v2391
  %3240 = vmatprep.mubr.bf16.mxu0 %v594
  %3241 = vmatmul.mubr.bf16.gmra.mrb[0].mxu0 %v593
  %v3242 = vpop.f32.mrb[0].mxu0
  %v3243 = vadd.f32 %v3202, %v3242
  %v3244 = vpop.f32.mrb[0].mxu0
  %v3245 = vadd.f32 %v3204, %v3244
  %v3246 = vpop.f32.mrb[0].mxu0
  %v3247 = vpop.f32.mrb[0].mxu0
  %3248 = vdwg.mxu0
  %3249 = vmatprep.subr.bf16.mxu0 %v2400
  %3250 = vmatpush1.bf16.msra.mxu0 %v2399
  %3251 = vmatprep.subr.bf16.mxu0 %v2408
  %3252 = vmatpush1.bf16.msra.mxu0 %v2407
  %3253 = vmatprep.subr.bf16.mxu0 %v2416
  %3254 = vmatpush1.bf16.msra.mxu0 %v2415
  %3255 = vmatprep.subr.bf16.mxu0 %v2424
  %3256 = vmatpush1.bf16.msra.mxu0 %v2423
  %3257 = vmatprep.subr.bf16.mxu0 %v2432
  %3258 = vmatpush1.bf16.msra.mxu0 %v2431
  %3259 = vmatprep.subr.bf16.mxu0 %v2440
  %3260 = vmatpush1.bf16.msra.mxu0 %v2439
  %3261 = vmatprep.subr.bf16.mxu0 %v2448
  %3262 = vmatpush1.bf16.msra.mxu0 %v2447
  %3263 = vmatprep.subr.bf16.mxu0 %v2456
  %3264 = vmatpush1.bf16.msra.mxu0 %v2455
  %3265 = vmatprep.subr.bf16.mxu0 %v2464
  %3266 = vmatpush1.bf16.msra.mxu0 %v2463
  %3267 = vmatprep.subr.bf16.mxu0 %v2472
  %3268 = vmatpush1.bf16.msra.mxu0 %v2471
  %3269 = vmatprep.subr.bf16.mxu0 %v2480
  %3270 = vmatpush1.bf16.msra.mxu0 %v2479
  %3271 = vmatprep.subr.bf16.mxu0 %v2488
  %3272 = vmatpush1.bf16.msra.mxu0 %v2487
  %3273 = vmatprep.subr.bf16.mxu0 %v2496
  %3274 = vmatpush1.bf16.msra.mxu0 %v2495
  %3275 = vmatprep.subr.bf16.mxu0 %v2504
  %3276 = vmatpush1.bf16.msra.mxu0 %v2503
  %3277 = vmatprep.subr.bf16.mxu0 %v2512
  %3278 = vmatpush1.bf16.msra.mxu0 %v2511
  %3279 = vmatprep.subr.bf16.mxu0 %v2520
  %3280 = vmatpush1.bf16.msra.mxu0 %v2519
  %3281 = vmatprep.mubr.bf16.mxu0 %v596
  %3282 = vmatmul.mubr.bf16.gmra.mrb[0].mxu0 %v595
  %v3283 = vpop.f32.mrb[0].mxu0
  %v3284 = vadd.f32 %v3243, %v3283
  %v3285 = vpop.f32.mrb[0].mxu0
  %v3286 = vadd.f32 %v3245, %v3285
  %v3287 = vpop.f32.mrb[0].mxu0
  %v3288 = vpop.f32.mrb[0].mxu0
  %3289 = vdwg.mxu0
  %3290 = vmatprep.subr.bf16.mxu0 %v2528
  %3291 = vmatpush1.bf16.msra.mxu0 %v2527
  %3292 = vmatprep.subr.bf16.mxu0 %v2536
  %3293 = vmatpush1.bf16.msra.mxu0 %v2535
  %3294 = vmatprep.subr.bf16.mxu0 %v2544
  %3295 = vmatpush1.bf16.msra.mxu0 %v2543
  %3296 = vmatprep.subr.bf16.mxu0 %v2552
  %3297 = vmatpush1.bf16.msra.mxu0 %v2551
  %3298 = vmatprep.subr.bf16.mxu0 %v2560
  %3299 = vmatpush1.bf16.msra.mxu0 %v2559
  %3300 = vmatprep.subr.bf16.mxu0 %v2568
  %3301 = vmatpush1.bf16.msra.mxu0 %v2567
  %3302 = vmatprep.subr.bf16.mxu0 %v2576
  %3303 = vmatpush1.bf16.msra.mxu0 %v2575
  %3304 = vmatprep.subr.bf16.mxu0 %v2584
  %3305 = vmatpush1.bf16.msra.mxu0 %v2583
  %3306 = vmatprep.subr.bf16.mxu0 %v2592
  %3307 = vmatpush1.bf16.msra.mxu0 %v2591
  %3308 = vmatprep.subr.bf16.mxu0 %v2600
  %3309 = vmatpush1.bf16.msra.mxu0 %v2599
  %3310 = vmatprep.subr.bf16.mxu0 %v2608
  %3311 = vmatpush1.bf16.msra.mxu0 %v2607
  %3312 = vmatprep.subr.bf16.mxu0 %v2616
  %3313 = vmatpush1.bf16.msra.mxu0 %v2615
  %3314 = vmatprep.subr.bf16.mxu0 %v2624
  %3315 = vmatpush1.bf16.msra.mxu0 %v2623
  %3316 = vmatprep.subr.bf16.mxu0 %v2632
  %3317 = vmatpush1.bf16.msra.mxu0 %v2631
  %3318 = vmatprep.subr.bf16.mxu0 %v2640
  %3319 = vmatpush1.bf16.msra.mxu0 %v2639
  %3320 = vmatprep.subr.bf16.mxu0 %v2648
  %3321 = vmatpush1.bf16.msra.mxu0 %v2647
  %3322 = vmatprep.mubr.bf16.mxu0 %v598
  %3323 = vmatmul.mubr.bf16.gmra.mrb[0].mxu0 %v597
  %v3324 = vpop.f32.mrb[0].mxu0
  %v3325 = vadd.f32 %v3284, %v3324
  %v3326 = vpop.f32.mrb[0].mxu0
  %v3327 = vadd.f32 %v3286, %v3326
  %v3328 = vpop.f32.mrb[0].mxu0
  %v3329 = vpop.f32.mrb[0].mxu0
  %3330 = vdwg.mxu0
  %3331 = vmatprep.subr.bf16.mxu0 %v2146
  %3332 = vmatpush1.bf16.msra.mxu0 %v2145
  %3333 = vmatprep.subr.bf16.mxu0 %v2154
  %3334 = vmatpush1.bf16.msra.mxu0 %v2153
  %3335 = vmatprep.subr.bf16.mxu0 %v2162
  %3336 = vmatpush1.bf16.msra.mxu0 %v2161
  %3337 = vmatprep.subr.bf16.mxu0 %v2170
  %3338 = vmatpush1.bf16.msra.mxu0 %v2169
  %3339 = vmatprep.subr.bf16.mxu0 %v2178
  %3340 = vmatpush1.bf16.msra.mxu0 %v2177
  %3341 = vmatprep.subr.bf16.mxu0 %v2186
  %3342 = vmatpush1.bf16.msra.mxu0 %v2185
  %3343 = vmatprep.subr.bf16.mxu0 %v2194
  %3344 = vmatpush1.bf16.msra.mxu0 %v2193
  %3345 = vmatprep.subr.bf16.mxu0 %v2202
  %3346 = vmatpush1.bf16.msra.mxu0 %v2201
  %3347 = vmatprep.subr.bf16.mxu0 %v2210
  %3348 = vmatpush1.bf16.msra.mxu0 %v2209
  %3349 = vmatprep.subr.bf16.mxu0 %v2218
  %3350 = vmatpush1.bf16.msra.mxu0 %v2217
  %3351 = vmatprep.subr.bf16.mxu0 %v2226
  %3352 = vmatpush1.bf16.msra.mxu0 %v2225
  %3353 = vmatprep.subr.bf16.mxu0 %v2234
  %3354 = vmatpush1.bf16.msra.mxu0 %v2233
  %3355 = vmatprep.subr.bf16.mxu0 %v2242
  %3356 = vmatpush1.bf16.msra.mxu0 %v2241
  %3357 = vmatprep.subr.bf16.mxu0 %v2250
  %3358 = vmatpush1.bf16.msra.mxu0 %v2249
  %3359 = vmatprep.subr.bf16.mxu0 %v2258
  %3360 = vmatpush1.bf16.msra.mxu0 %v2257
  %3361 = vmatprep.subr.bf16.mxu0 %v2266
  %3362 = vmatpush1.bf16.msra.mxu0 %v2265
  %3363 = vmatprep.mubr.bf16.mxu0 %v592
  %3364 = vmatmul.mubr.bf16.gmra.mrb[0].mxu0 %v591
  %v3365 = vpop.f32.mrb[0].mxu0
  %v3366 = vadd.f32 %v550, %v3365
  %v3367 = vpop.f32.mrb[0].mxu0
  %v3368 = vadd.f32 %v554, %v3367
  %v3369 = vpop.f32.mrb[0].mxu0
  %v3370 = vpop.f32.mrb[0].mxu0
  %3371 = vdwg.mxu0
  %3372 = vmatprep.subr.bf16.mxu0 %v2274
  %3373 = vmatpush1.bf16.msra.mxu0 %v2273
  %3374 = vmatprep.subr.bf16.mxu0 %v2282
  %3375 = vmatpush1.bf16.msra.mxu0 %v2281
  %3376 = vmatprep.subr.bf16.mxu0 %v2290
  %3377 = vmatpush1.bf16.msra.mxu0 %v2289
  %3378 = vmatprep.subr.bf16.mxu0 %v2298
  %3379 = vmatpush1.bf16.msra.mxu0 %v2297
  %3380 = vmatprep.subr.bf16.mxu0 %v2306
  %3381 = vmatpush1.bf16.msra.mxu0 %v2305
  %3382 = vmatprep.subr.bf16.mxu0 %v2314
  %3383 = vmatpush1.bf16.msra.mxu0 %v2313
  %3384 = vmatprep.subr.bf16.mxu0 %v2322
  %3385 = vmatpush1.bf16.msra.mxu0 %v2321
  %3386 = vmatprep.subr.bf16.mxu0 %v2330
  %3387 = vmatpush1.bf16.msra.mxu0 %v2329
  %3388 = vmatprep.subr.bf16.mxu0 %v2338
  %3389 = vmatpush1.bf16.msra.mxu0 %v2337
  %3390 = vmatprep.subr.bf16.mxu0 %v2346
  %3391 = vmatpush1.bf16.msra.mxu0 %v2345
  %3392 = vmatprep.subr.bf16.mxu0 %v2354
  %3393 = vmatpush1.bf16.msra.mxu0 %v2353
  %3394 = vmatprep.subr.bf16.mxu0 %v2362
  %3395 = vmatpush1.bf16.msra.mxu0 %v2361
  %3396 = vmatprep.subr.bf16.mxu0 %v2370
  %3397 = vmatpush1.bf16.msra.mxu0 %v2369
  %3398 = vmatprep.subr.bf16.mxu0 %v2378
  %3399 = vmatpush1.bf16.msra.mxu0 %v2377
  %3400 = vmatprep.subr.bf16.mxu0 %v2386
  %3401 = vmatpush1.bf16.msra.mxu0 %v2385
  %3402 = vmatprep.subr.bf16.mxu0 %v2394
  %3403 = vmatpush1.bf16.msra.mxu0 %v2393
  %3404 = vmatprep.mubr.bf16.mxu0 %v594
  %3405 = vmatmul.mubr.bf16.gmra.mrb[0].mxu0 %v593
  %v3406 = vpop.f32.mrb[0].mxu0
  %v3407 = vadd.f32 %v3366, %v3406
  %v3408 = vpop.f32.mrb[0].mxu0
  %v3409 = vadd.f32 %v3368, %v3408
  %v3410 = vpop.f32.mrb[0].mxu0
  %v3411 = vpop.f32.mrb[0].mxu0
  %3412 = vdwg.mxu0
  %3413 = vmatprep.subr.bf16.mxu0 %v2402
  %3414 = vmatpush1.bf16.msra.mxu0 %v2401
  %3415 = vmatprep.subr.bf16.mxu0 %v2410
  %3416 = vmatpush1.bf16.msra.mxu0 %v2409
  %3417 = vmatprep.subr.bf16.mxu0 %v2418
  %3418 = vmatpush1.bf16.msra.mxu0 %v2417
  %3419 = vmatprep.subr.bf16.mxu0 %v2426
  %3420 = vmatpush1.bf16.msra.mxu0 %v2425
  %3421 = vmatprep.subr.bf16.mxu0 %v2434
  %3422 = vmatpush1.bf16.msra.mxu0 %v2433
  %3423 = vmatprep.subr.bf16.mxu0 %v2442
  %3424 = vmatpush1.bf16.msra.mxu0 %v2441
  %3425 = vmatprep.subr.bf16.mxu0 %v2450
  %3426 = vmatpush1.bf16.msra.mxu0 %v2449
  %3427 = vmatprep.subr.bf16.mxu0 %v2458
  %3428 = vmatpush1.bf16.msra.mxu0 %v2457
  %3429 = vmatprep.subr.bf16.mxu0 %v2466
  %3430 = vmatpush1.bf16.msra.mxu0 %v2465
  %3431 = vmatprep.subr.bf16.mxu0 %v2474
  %3432 = vmatpush1.bf16.msra.mxu0 %v2473
  %3433 = vmatprep.subr.bf16.mxu0 %v2482
  %3434 = vmatpush1.bf16.msra.mxu0 %v2481
  %3435 = vmatprep.subr.bf16.mxu0 %v2490
  %3436 = vmatpush1.bf16.msra.mxu0 %v2489
  %3437 = vmatprep.subr.bf16.mxu0 %v2498
  %3438 = vmatpush1.bf16.msra.mxu0 %v2497
  %3439 = vmatprep.subr.bf16.mxu0 %v2506
  %3440 = vmatpush1.bf16.msra.mxu0 %v2505
  %3441 = vmatprep.subr.bf16.mxu0 %v2514
  %3442 = vmatpush1.bf16.msra.mxu0 %v2513
  %3443 = vmatprep.subr.bf16.mxu0 %v2522
  %3444 = vmatpush1.bf16.msra.mxu0 %v2521
  %3445 = vmatprep.mubr.bf16.mxu0 %v596
  %3446 = vmatmul.mubr.bf16.gmra.mrb[0].mxu0 %v595
  %v3447 = vpop.f32.mrb[0].mxu0
  %v3448 = vadd.f32 %v3407, %v3447
  %v3449 = vpop.f32.mrb[0].mxu0
  %v3450 = vadd.f32 %v3409, %v3449
  %v3451 = vpop.f32.mrb[0].mxu0
  %v3452 = vpop.f32.mrb[0].mxu0
  %3453 = vdwg.mxu0
  %3454 = vmatprep.subr.bf16.mxu0 %v2530
  %3455 = vmatpush1.bf16.msra.mxu0 %v2529
  %3456 = vmatprep.subr.bf16.mxu0 %v2538
  %3457 = vmatpush1.bf16.msra.mxu0 %v2537
  %3458 = vmatprep.subr.bf16.mxu0 %v2546
  %3459 = vmatpush1.bf16.msra.mxu0 %v2545
  %3460 = vmatprep.subr.bf16.mxu0 %v2554
  %3461 = vmatpush1.bf16.msra.mxu0 %v2553
  %3462 = vmatprep.subr.bf16.mxu0 %v2562
  %3463 = vmatpush1.bf16.msra.mxu0 %v2561
  %3464 = vmatprep.subr.bf16.mxu0 %v2570
  %3465 = vmatpush1.bf16.msra.mxu0 %v2569
  %3466 = vmatprep.subr.bf16.mxu0 %v2578
  %3467 = vmatpush1.bf16.msra.mxu0 %v2577
  %3468 = vmatprep.subr.bf16.mxu0 %v2586
  %3469 = vmatpush1.bf16.msra.mxu0 %v2585
  %3470 = vmatprep.subr.bf16.mxu0 %v2594
  %3471 = vmatpush1.bf16.msra.mxu0 %v2593
  %3472 = vmatprep.subr.bf16.mxu0 %v2602
  %3473 = vmatpush1.bf16.msra.mxu0 %v2601
  %3474 = vmatprep.subr.bf16.mxu0 %v2610
  %3475 = vmatpush1.bf16.msra.mxu0 %v2609
  %3476 = vmatprep.subr.bf16.mxu0 %v2618
  %3477 = vmatpush1.bf16.msra.mxu0 %v2617
  %3478 = vmatprep.subr.bf16.mxu0 %v2626
  %3479 = vmatpush1.bf16.msra.mxu0 %v2625
  %3480 = vmatprep.subr.bf16.mxu0 %v2634
  %3481 = vmatpush1.bf16.msra.mxu0 %v2633
  %3482 = vmatprep.subr.bf16.mxu0 %v2642
  %3483 = vmatpush1.bf16.msra.mxu0 %v2641
  %3484 = vmatprep.subr.bf16.mxu0 %v2650
  %3485 = vmatpush1.bf16.msra.mxu0 %v2649
  %3486 = vmatprep.mubr.bf16.mxu0 %v598
  %3487 = vmatmul.mubr.bf16.gmra.mrb[0].mxu0 %v597
  %v3488 = vpop.f32.mrb[0].mxu0
  %v3489 = vadd.f32 %v3448, %v3488
  %v3490 = vpop.f32.mrb[0].mxu0
  %v3491 = vadd.f32 %v3450, %v3490
  %v3492 = vpop.f32.mrb[0].mxu0
  %v3493 = vpop.f32.mrb[0].mxu0
  %3494 = vdwg.mxu0
  %3495 = vmatprep.subr.bf16.mxu0 %v2148
  %3496 = vmatpush1.bf16.msra.mxu0 %v2147
  %3497 = vmatprep.subr.bf16.mxu0 %v2156
  %3498 = vmatpush1.bf16.msra.mxu0 %v2155
  %3499 = vmatprep.subr.bf16.mxu0 %v2164
  %3500 = vmatpush1.bf16.msra.mxu0 %v2163
  %3501 = vmatprep.subr.bf16.mxu0 %v2172
  %3502 = vmatpush1.bf16.msra.mxu0 %v2171
  %3503 = vmatprep.subr.bf16.mxu0 %v2180
  %3504 = vmatpush1.bf16.msra.mxu0 %v2179
  %3505 = vmatprep.subr.bf16.mxu0 %v2188
  %3506 = vmatpush1.bf16.msra.mxu0 %v2187
  %3507 = vmatprep.subr.bf16.mxu0 %v2196
  %3508 = vmatpush1.bf16.msra.mxu0 %v2195
  %3509 = vmatprep.subr.bf16.mxu0 %v2204
  %3510 = vmatpush1.bf16.msra.mxu0 %v2203
  %3511 = vmatprep.subr.bf16.mxu0 %v2212
  %3512 = vmatpush1.bf16.msra.mxu0 %v2211
  %3513 = vmatprep.subr.bf16.mxu0 %v2220
  %3514 = vmatpush1.bf16.msra.mxu0 %v2219
  %3515 = vmatprep.subr.bf16.mxu0 %v2228
  %3516 = vmatpush1.bf16.msra.mxu0 %v2227
  %3517 = vmatprep.subr.bf16.mxu0 %v2236
  %3518 = vmatpush1.bf16.msra.mxu0 %v2235
  %3519 = vmatprep.subr.bf16.mxu0 %v2244
  %3520 = vmatpush1.bf16.msra.mxu0 %v2243
  %3521 = vmatprep.subr.bf16.mxu0 %v2252
  %3522 = vmatpush1.bf16.msra.mxu0 %v2251
  %3523 = vmatprep.subr.bf16.mxu0 %v2260
  %3524 = vmatpush1.bf16.msra.mxu0 %v2259
  %3525 = vmatprep.subr.bf16.mxu0 %v2268
  %3526 = vmatpush1.bf16.msra.mxu0 %v2267
  %3527 = vmatprep.mubr.bf16.mxu0 %v592
  %3528 = vmatmul.mubr.bf16.gmra.mrb[0].mxu0 %v591
  %v3529 = vpop.f32.mrb[0].mxu0
  %v3530 = vadd.f32 %v558, %v3529
  %v3531 = vpop.f32.mrb[0].mxu0
  %v3532 = vadd.f32 %v562, %v3531
  %v3533 = vpop.f32.mrb[0].mxu0
  %v3534 = vpop.f32.mrb[0].mxu0
  %3535 = vdwg.mxu0
  %3536 = vmatprep.subr.bf16.mxu0 %v2276
  %3537 = vmatpush1.bf16.msra.mxu0 %v2275
  %3538 = vmatprep.subr.bf16.mxu0 %v2284
  %3539 = vmatpush1.bf16.msra.mxu0 %v2283
  %3540 = vmatprep.subr.bf16.mxu0 %v2292
  %3541 = vmatpush1.bf16.msra.mxu0 %v2291
  %3542 = vmatprep.subr.bf16.mxu0 %v2300
  %3543 = vmatpush1.bf16.msra.mxu0 %v2299
  %3544 = vmatprep.subr.bf16.mxu0 %v2308
  %3545 = vmatpush1.bf16.msra.mxu0 %v2307
  %3546 = vmatprep.subr.bf16.mxu0 %v2316
  %3547 = vmatpush1.bf16.msra.mxu0 %v2315
  %3548 = vmatprep.subr.bf16.mxu0 %v2324
  %3549 = vmatpush1.bf16.msra.mxu0 %v2323
  %3550 = vmatprep.subr.bf16.mxu0 %v2332
  %3551 = vmatpush1.bf16.msra.mxu0 %v2331
  %3552 = vmatprep.subr.bf16.mxu0 %v2340
  %3553 = vmatpush1.bf16.msra.mxu0 %v2339
  %3554 = vmatprep.subr.bf16.mxu0 %v2348
  %3555 = vmatpush1.bf16.msra.mxu0 %v2347
  %3556 = vmatprep.subr.bf16.mxu0 %v2356
  %3557 = vmatpush1.bf16.msra.mxu0 %v2355
  %3558 = vmatprep.subr.bf16.mxu0 %v2364
  %3559 = vmatpush1.bf16.msra.mxu0 %v2363
  %3560 = vmatprep.subr.bf16.mxu0 %v2372
  %3561 = vmatpush1.bf16.msra.mxu0 %v2371
  %3562 = vmatprep.subr.bf16.mxu0 %v2380
  %3563 = vmatpush1.bf16.msra.mxu0 %v2379
  %3564 = vmatprep.subr.bf16.mxu0 %v2388
  %3565 = vmatpush1.bf16.msra.mxu0 %v2387
  %3566 = vmatprep.subr.bf16.mxu0 %v2396
  %3567 = vmatpush1.bf16.msra.mxu0 %v2395
  %3568 = vmatprep.mubr.bf16.mxu0 %v594
  %3569 = vmatmul.mubr.bf16.gmra.mrb[0].mxu0 %v593
  %v3570 = vpop.f32.mrb[0].mxu0
  %v3571 = vadd.f32 %v3530, %v3570
  %v3572 = vpop.f32.mrb[0].mxu0
  %v3573 = vadd.f32 %v3532, %v3572
  %v3574 = vpop.f32.mrb[0].mxu0
  %v3575 = vpop.f32.mrb[0].mxu0
  %3576 = vdwg.mxu0
  %3577 = vmatprep.subr.bf16.mxu0 %v2404
  %3578 = vmatpush1.bf16.msra.mxu0 %v2403
  %3579 = vmatprep.subr.bf16.mxu0 %v2412
  %3580 = vmatpush1.bf16.msra.mxu0 %v2411
  %3581 = vmatprep.subr.bf16.mxu0 %v2420
  %3582 = vmatpush1.bf16.msra.mxu0 %v2419
  %3583 = vmatprep.subr.bf16.mxu0 %v2428
  %3584 = vmatpush1.bf16.msra.mxu0 %v2427
  %3585 = vmatprep.subr.bf16.mxu0 %v2436
  %3586 = vmatpush1.bf16.msra.mxu0 %v2435
  %3587 = vmatprep.subr.bf16.mxu0 %v2444
  %3588 = vmatpush1.bf16.msra.mxu0 %v2443
  %3589 = vmatprep.subr.bf16.mxu0 %v2452
  %3590 = vmatpush1.bf16.msra.mxu0 %v2451
  %3591 = vmatprep.subr.bf16.mxu0 %v2460
  %3592 = vmatpush1.bf16.msra.mxu0 %v2459
  %3593 = vmatprep.subr.bf16.mxu0 %v2468
  %3594 = vmatpush1.bf16.msra.mxu0 %v2467
  %3595 = vmatprep.subr.bf16.mxu0 %v2476
  %3596 = vmatpush1.bf16.msra.mxu0 %v2475
  %3597 = vmatprep.subr.bf16.mxu0 %v2484
  %3598 = vmatpush1.bf16.msra.mxu0 %v2483
  %3599 = vmatprep.subr.bf16.mxu0 %v2492
  %3600 = vmatpush1.bf16.msra.mxu0 %v2491
  %3601 = vmatprep.subr.bf16.mxu0 %v2500
  %3602 = vmatpush1.bf16.msra.mxu0 %v2499
  %3603 = vmatprep.subr.bf16.mxu0 %v2508
  %3604 = vmatpush1.bf16.msra.mxu0 %v2507
  %3605 = vmatprep.subr.bf16.mxu0 %v2516
  %3606 = vmatpush1.bf16.msra.mxu0 %v2515
  %3607 = vmatprep.subr.bf16.mxu0 %v2524
  %3608 = vmatpush1.bf16.msra.mxu0 %v2523
  %3609 = vmatprep.mubr.bf16.mxu0 %v596
  %3610 = vmatmul.mubr.bf16.gmra.mrb[0].mxu0 %v595
  %v3611 = vpop.f32.mrb[0].mxu0
  %v3612 = vadd.f32 %v3571, %v3611
  %v3613 = vpop.f32.mrb[0].mxu0
  %v3614 = vadd.f32 %v3573, %v3613
  %v3615 = vpop.f32.mrb[0].mxu0
  %v3616 = vpop.f32.mrb[0].mxu0
  %3617 = vdwg.mxu0
  %3618 = vmatprep.subr.bf16.mxu0 %v2532
  %3619 = vmatpush1.bf16.msra.mxu0 %v2531
  %3620 = vmatprep.subr.bf16.mxu0 %v2540
  %3621 = vmatpush1.bf16.msra.mxu0 %v2539
  %3622 = vmatprep.subr.bf16.mxu0 %v2548
  %3623 = vmatpush1.bf16.msra.mxu0 %v2547
  %3624 = vmatprep.subr.bf16.mxu0 %v2556
  %3625 = vmatpush1.bf16.msra.mxu0 %v2555
  %3626 = vmatprep.subr.bf16.mxu0 %v2564
  %3627 = vmatpush1.bf16.msra.mxu0 %v2563
  %3628 = vmatprep.subr.bf16.mxu0 %v2572
  %3629 = vmatpush1.bf16.msra.mxu0 %v2571
  %3630 = vmatprep.subr.bf16.mxu0 %v2580
  %3631 = vmatpush1.bf16.msra.mxu0 %v2579
  %3632 = vmatprep.subr.bf16.mxu0 %v2588
  %3633 = vmatpush1.bf16.msra.mxu0 %v2587
  %3634 = vmatprep.subr.bf16.mxu0 %v2596
  %3635 = vmatpush1.bf16.msra.mxu0 %v2595
  %3636 = vmatprep.subr.bf16.mxu0 %v2604
  %3637 = vmatpush1.bf16.msra.mxu0 %v2603
  %3638 = vmatprep.subr.bf16.mxu0 %v2612
  %3639 = vmatpush1.bf16.msra.mxu0 %v2611
  %3640 = vmatprep.subr.bf16.mxu0 %v2620
  %3641 = vmatpush1.bf16.msra.mxu0 %v2619
  %3642 = vmatprep.subr.bf16.mxu0 %v2628
  %3643 = vmatpush1.bf16.msra.mxu0 %v2627
  %3644 = vmatprep.subr.bf16.mxu0 %v2636
  %3645 = vmatpush1.bf16.msra.mxu0 %v2635
  %3646 = vmatprep.subr.bf16.mxu0 %v2644
  %3647 = vmatpush1.bf16.msra.mxu0 %v2643
  %3648 = vmatprep.subr.bf16.mxu0 %v2652
  %3649 = vmatpush1.bf16.msra.mxu0 %v2651
  %3650 = vmatprep.mubr.bf16.mxu0 %v598
  %3651 = vmatmul.mubr.bf16.gmra.mrb[0].mxu0 %v597
  %v3652 = vpop.f32.mrb[0].mxu0
  %v3653 = vadd.f32 %v3612, %v3652
  %v3654 = vpop.f32.mrb[0].mxu0
  %v3655 = vadd.f32 %v3614, %v3654
  %v3656 = vpop.f32.mrb[0].mxu0
  %v3657 = vpop.f32.mrb[0].mxu0
  %3658 = vdwg.mxu0
  %3659 = vmatprep.subr.bf16.mxu0 %v2150
  %3660 = vmatpush1.bf16.msra.mxu0 %v2149
  %3661 = vmatprep.subr.bf16.mxu0 %v2158
  %3662 = vmatpush1.bf16.msra.mxu0 %v2157
  %3663 = vmatprep.subr.bf16.mxu0 %v2166
  %3664 = vmatpush1.bf16.msra.mxu0 %v2165
  %3665 = vmatprep.subr.bf16.mxu0 %v2174
  %3666 = vmatpush1.bf16.msra.mxu0 %v2173
  %3667 = vmatprep.subr.bf16.mxu0 %v2182
  %3668 = vmatpush1.bf16.msra.mxu0 %v2181
  %3669 = vmatprep.subr.bf16.mxu0 %v2190
  %3670 = vmatpush1.bf16.msra.mxu0 %v2189
  %3671 = vmatprep.subr.bf16.mxu0 %v2198
  %3672 = vmatpush1.bf16.msra.mxu0 %v2197
  %3673 = vmatprep.subr.bf16.mxu0 %v2206
  %3674 = vmatpush1.bf16.msra.mxu0 %v2205
  %3675 = vmatprep.subr.bf16.mxu0 %v2214
  %3676 = vmatpush1.bf16.msra.mxu0 %v2213
  %3677 = vmatprep.subr.bf16.mxu0 %v2222
  %3678 = vmatpush1.bf16.msra.mxu0 %v2221
  %3679 = vmatprep.subr.bf16.mxu0 %v2230
  %3680 = vmatpush1.bf16.msra.mxu0 %v2229
  %3681 = vmatprep.subr.bf16.mxu0 %v2238
  %3682 = vmatpush1.bf16.msra.mxu0 %v2237
  %3683 = vmatprep.subr.bf16.mxu0 %v2246
  %3684 = vmatpush1.bf16.msra.mxu0 %v2245
  %3685 = vmatprep.subr.bf16.mxu0 %v2254
  %3686 = vmatpush1.bf16.msra.mxu0 %v2253
  %3687 = vmatprep.subr.bf16.mxu0 %v2262
  %3688 = vmatpush1.bf16.msra.mxu0 %v2261
  %3689 = vmatprep.subr.bf16.mxu0 %v2270
  %3690 = vmatpush1.bf16.msra.mxu0 %v2269
  %3691 = vmatprep.mubr.bf16.mxu0 %v592
  %3692 = vmatmul.mubr.bf16.gmra.mrb[0].mxu0 %v591
  %v3693 = vpop.f32.mrb[0].mxu0
  %v3694 = vadd.f32 %v566, %v3693
  %v3695 = vpop.f32.mrb[0].mxu0
  %v3696 = vadd.f32 %v570, %v3695
  %v3697 = vpop.f32.mrb[0].mxu0
  %v3698 = vpop.f32.mrb[0].mxu0
  %3699 = vdwg.mxu0
  %3700 = vmatprep.subr.bf16.mxu0 %v2278
  %3701 = vmatpush1.bf16.msra.mxu0 %v2277
  %3702 = vmatprep.subr.bf16.mxu0 %v2286
  %3703 = vmatpush1.bf16.msra.mxu0 %v2285
  %3704 = vmatprep.subr.bf16.mxu0 %v2294
  %3705 = vmatpush1.bf16.msra.mxu0 %v2293
  %3706 = vmatprep.subr.bf16.mxu0 %v2302
  %3707 = vmatpush1.bf16.msra.mxu0 %v2301
  %3708 = vmatprep.subr.bf16.mxu0 %v2310
  %3709 = vmatpush1.bf16.msra.mxu0 %v2309
  %3710 = vmatprep.subr.bf16.mxu0 %v2318
  %3711 = vmatpush1.bf16.msra.mxu0 %v2317
  %3712 = vmatprep.subr.bf16.mxu0 %v2326
  %3713 = vmatpush1.bf16.msra.mxu0 %v2325
  %3714 = vmatprep.subr.bf16.mxu0 %v2334
  %3715 = vmatpush1.bf16.msra.mxu0 %v2333
  %3716 = vmatprep.subr.bf16.mxu0 %v2342
  %3717 = vmatpush1.bf16.msra.mxu0 %v2341
  %3718 = vmatprep.subr.bf16.mxu0 %v2350
  %3719 = vmatpush1.bf16.msra.mxu0 %v2349
  %3720 = vmatprep.subr.bf16.mxu0 %v2358
  %3721 = vmatpush1.bf16.msra.mxu0 %v2357
  %3722 = vmatprep.subr.bf16.mxu0 %v2366
  %3723 = vmatpush1.bf16.msra.mxu0 %v2365
  %3724 = vmatprep.subr.bf16.mxu0 %v2374
  %3725 = vmatpush1.bf16.msra.mxu0 %v2373
  %3726 = vmatprep.subr.bf16.mxu0 %v2382
  %3727 = vmatpush1.bf16.msra.mxu0 %v2381
  %3728 = vmatprep.subr.bf16.mxu0 %v2390
  %3729 = vmatpush1.bf16.msra.mxu0 %v2389
  %3730 = vmatprep.subr.bf16.mxu0 %v2398
  %3731 = vmatpush1.bf16.msra.mxu0 %v2397
  %3732 = vmatprep.mubr.bf16.mxu0 %v594
  %3733 = vmatmul.mubr.bf16.gmra.mrb[0].mxu0 %v593
  %v3734 = vpop.f32.mrb[0].mxu0
  %v3735 = vadd.f32 %v3694, %v3734
  %v3736 = vpop.f32.mrb[0].mxu0
  %v3737 = vadd.f32 %v3696, %v3736
  %v3738 = vpop.f32.mrb[0].mxu0
  %v3739 = vpop.f32.mrb[0].mxu0
  %3740 = vdwg.mxu0
  %3741 = vmatprep.subr.bf16.mxu0 %v2406
  %3742 = vmatpush1.bf16.msra.mxu0 %v2405
  %3743 = vmatprep.subr.bf16.mxu0 %v2414
  %3744 = vmatpush1.bf16.msra.mxu0 %v2413
  %3745 = vmatprep.subr.bf16.mxu0 %v2422
  %3746 = vmatpush1.bf16.msra.mxu0 %v2421
  %3747 = vmatprep.subr.bf16.mxu0 %v2430
  %3748 = vmatpush1.bf16.msra.mxu0 %v2429
  %3749 = vmatprep.subr.bf16.mxu0 %v2438
  %3750 = vmatpush1.bf16.msra.mxu0 %v2437
  %3751 = vmatprep.subr.bf16.mxu0 %v2446
  %3752 = vmatpush1.bf16.msra.mxu0 %v2445
  %3753 = vmatprep.subr.bf16.mxu0 %v2454
  %3754 = vmatpush1.bf16.msra.mxu0 %v2453
  %3755 = vmatprep.subr.bf16.mxu0 %v2462
  %3756 = vmatpush1.bf16.msra.mxu0 %v2461
  %3757 = vmatprep.subr.bf16.mxu0 %v2470
  %3758 = vmatpush1.bf16.msra.mxu0 %v2469
  %3759 = vmatprep.subr.bf16.mxu0 %v2478
  %3760 = vmatpush1.bf16.msra.mxu0 %v2477
  %3761 = vmatprep.subr.bf16.mxu0 %v2486
  %3762 = vmatpush1.bf16.msra.mxu0 %v2485
  %3763 = vmatprep.subr.bf16.mxu0 %v2494
  %3764 = vmatpush1.bf16.msra.mxu0 %v2493
  %3765 = vmatprep.subr.bf16.mxu0 %v2502
  %3766 = vmatpush1.bf16.msra.mxu0 %v2501
  %3767 = vmatprep.subr.bf16.mxu0 %v2510
  %3768 = vmatpush1.bf16.msra.mxu0 %v2509
  %3769 = vmatprep.subr.bf16.mxu0 %v2518
  %3770 = vmatpush1.bf16.msra.mxu0 %v2517
  %3771 = vmatprep.subr.bf16.mxu0 %v2526
  %3772 = vmatpush1.bf16.msra.mxu0 %v2525
  %3773 = vmatprep.mubr.bf16.mxu0 %v596
  %3774 = vmatmul.mubr.bf16.gmra.mrb[0].mxu0 %v595
  %v3775 = vpop.f32.mrb[0].mxu0
  %v3776 = vadd.f32 %v3735, %v3775
  %v3777 = vpop.f32.mrb[0].mxu0
  %v3778 = vadd.f32 %v3737, %v3777
  %v3779 = vpop.f32.mrb[0].mxu0
  %v3780 = vpop.f32.mrb[0].mxu0
  %3781 = vdwg.mxu0
  %3782 = vmatprep.subr.bf16.mxu0 %v2534
  %3783 = vmatpush1.bf16.msra.mxu0 %v2533
  %3784 = vmatprep.subr.bf16.mxu0 %v2542
  %3785 = vmatpush1.bf16.msra.mxu0 %v2541
  %3786 = vmatprep.subr.bf16.mxu0 %v2550
  %3787 = vmatpush1.bf16.msra.mxu0 %v2549
  %3788 = vmatprep.subr.bf16.mxu0 %v2558
  %3789 = vmatpush1.bf16.msra.mxu0 %v2557
  %3790 = vmatprep.subr.bf16.mxu0 %v2566
  %3791 = vmatpush1.bf16.msra.mxu0 %v2565
  %3792 = vmatprep.subr.bf16.mxu0 %v2574
  %3793 = vmatpush1.bf16.msra.mxu0 %v2573
  %3794 = vmatprep.subr.bf16.mxu0 %v2582
  %3795 = vmatpush1.bf16.msra.mxu0 %v2581
  %3796 = vmatprep.subr.bf16.mxu0 %v2590
  %3797 = vmatpush1.bf16.msra.mxu0 %v2589
  %3798 = vmatprep.subr.bf16.mxu0 %v2598
  %3799 = vmatpush1.bf16.msra.mxu0 %v2597
  %3800 = vmatprep.subr.bf16.mxu0 %v2606
  %3801 = vmatpush1.bf16.msra.mxu0 %v2605
  %3802 = vmatprep.subr.bf16.mxu0 %v2614
  %3803 = vmatpush1.bf16.msra.mxu0 %v2613
  %3804 = vmatprep.subr.bf16.mxu0 %v2622
  %3805 = vmatpush1.bf16.msra.mxu0 %v2621
  %3806 = vmatprep.subr.bf16.mxu0 %v2630
  %3807 = vmatpush1.bf16.msra.mxu0 %v2629
  %3808 = vmatprep.subr.bf16.mxu0 %v2638
  %3809 = vmatpush1.bf16.msra.mxu0 %v2637
  %3810 = vmatprep.subr.bf16.mxu0 %v2646
  %3811 = vmatpush1.bf16.msra.mxu0 %v2645
  %3812 = vmatprep.subr.bf16.mxu0 %v2654
  %3813 = vmatpush1.bf16.msra.mxu0 %v2653
  %3814 = vmatprep.mubr.bf16.mxu0 %v598
  %3815 = vmatmul.mubr.bf16.gmra.mrb[0].mxu0 %v597
  %v3816 = vpop.f32.mrb[0].mxu0
  %v3817 = vadd.f32 %v3776, %v3816
  %v3818 = vpop.f32.mrb[0].mxu0
  %v3819 = vadd.f32 %v3778, %v3818
  %v3820 = vpop.f32.mrb[0].mxu0
  %v3821 = vpop.f32.mrb[0].mxu0
  %3822 = vdwg.mxu0
  %v3823 = vpack.c.bf16 %v3325, %v3325
  %v3824 = vpack.c.bf16 %v3327, %v3327
  %v3825 = vpack.c.bf16 %v3489, %v3489
  %v3826 = vpack.c.bf16 %v3491, %v3491
  %v3827 = vpack.c.bf16 %v3653, %v3653
  %v3828 = vpack.c.bf16 %v3655, %v3655
  %v3829 = vpack.c.bf16 %v3817, %v3817
  %v3830 = vpack.c.bf16 %v3819, %v3819
  %v3831 = vld [vmem:[%s3] sm:$0xf]
  %v3832 = vld [vmem:[%s3 + $0x4] sm:$0xf]
  %v3833 = vld [vmem:[%s3 + $0x8] sm:$0xf]
  %v3834 = vld [vmem:[%s3 + $0xc] sm:$0xf]
  %v3835 = vld [vmem:[%s3 + $0x10] sm:$0xf]
  %v3836 = vld [vmem:[%s3 + $0x14] sm:$0xf]
  %v3837 = vld [vmem:[%s3 + $0x18] sm:$0xf]
  %v3838 = vld [vmem:[%s3 + $0x1c] sm:$0xf]
  %v3839 = vld [vmem:[%s3 + $0x20] sm:$0xf]
  %v3840 = vld [vmem:[%s3 + $0x24] sm:$0xf]
  %v3841 = vld [vmem:[%s3 + $0x28] sm:$0xf]
  %v3842 = vld [vmem:[%s3 + $0x2c] sm:$0xf]
  %v3843 = vld [vmem:[%s3 + $0x30] sm:$0xf]
  %v3844 = vld [vmem:[%s3 + $0x34] sm:$0xf]
  %v3845 = vld [vmem:[%s3 + $0x38] sm:$0xf]
  %v3846 = vld [vmem:[%s3 + $0x3c] sm:$0xf]
  %v3847 = vld [vmem:[%s3 + $0x40] sm:$0xf]
  %v3848 = vld [vmem:[%s3 + $0x44] sm:$0xf]
  %v3849 = vld [vmem:[%s3 + $0x48] sm:$0xf]
  %v3850 = vld [vmem:[%s3 + $0x4c] sm:$0xf]
  %v3851 = vld [vmem:[%s3 + $0x50] sm:$0xf]
  %v3852 = vld [vmem:[%s3 + $0x54] sm:$0xf]
  %v3853 = vld [vmem:[%s3 + $0x58] sm:$0xf]
  %v3854 = vld [vmem:[%s3 + $0x5c] sm:$0xf]
  %v3855 = vld [vmem:[%s3 + $0x60] sm:$0xf]
  %v3856 = vld [vmem:[%s3 + $0x64] sm:$0xf]
  %v3857 = vld [vmem:[%s3 + $0x68] sm:$0xf]
  %v3858 = vld [vmem:[%s3 + $0x6c] sm:$0xf]
  %v3859 = vld [vmem:[%s3 + $0x70] sm:$0xf]
  %v3860 = vld [vmem:[%s3 + $0x74] sm:$0xf]
  %v3861 = vld [vmem:[%s3 + $0x78] sm:$0xf]
  %v3862 = vld [vmem:[%s3 + $0x7c] sm:$0xf]
  %v3863 = vld [vmem:[%s3 + $0x80] sm:$0xf]
  %v3864 = vld [vmem:[%s3 + $0x84] sm:$0xf]
  %v3865 = vld [vmem:[%s3 + $0x88] sm:$0xf]
  %v3866 = vld [vmem:[%s3 + $0x8c] sm:$0xf]
  %v3867 = vld [vmem:[%s3 + $0x90] sm:$0xf]
  %v3868 = vld [vmem:[%s3 + $0x94] sm:$0xf]
  %v3869 = vld [vmem:[%s3 + $0x98] sm:$0xf]
  %v3870 = vld [vmem:[%s3 + $0x9c] sm:$0xf]
  %v3871 = vld [vmem:[%s3 + $0xa0] sm:$0xf]
  %v3872 = vld [vmem:[%s3 + $0xa4] sm:$0xf]
  %v3873 = vld [vmem:[%s3 + $0xa8] sm:$0xf]
  %v3874 = vld [vmem:[%s3 + $0xac] sm:$0xf]
  %v3875 = vld [vmem:[%s3 + $0xb0] sm:$0xf]
  %v3876 = vld [vmem:[%s3 + $0xb4] sm:$0xf]
  %v3877 = vld [vmem:[%s3 + $0xb8] sm:$0xf]
  %v3878 = vld [vmem:[%s3 + $0xbc] sm:$0xf]
  %v3879 = vld [vmem:[%s3 + $0xc0] sm:$0xf]
  %v3880 = vld [vmem:[%s3 + $0xc4] sm:$0xf]
  %v3881 = vld [vmem:[%s3 + $0xc8] sm:$0xf]
  %v3882 = vld [vmem:[%s3 + $0xcc] sm:$0xf]
  %v3883 = vld [vmem:[%s3 + $0xd0] sm:$0xf]
  %v3884 = vld [vmem:[%s3 + $0xd4] sm:$0xf]
  %v3885 = vld [vmem:[%s3 + $0xd8] sm:$0xf]
  %v3886 = vld [vmem:[%s3 + $0xdc] sm:$0xf]
  %v3887 = vld [vmem:[%s3 + $0xe0] sm:$0xf]
  %v3888 = vld [vmem:[%s3 + $0xe4] sm:$0xf]
  %v3889 = vld [vmem:[%s3 + $0xe8] sm:$0xf]
  %v3890 = vld [vmem:[%s3 + $0xec] sm:$0xf]
  %v3891 = vld [vmem:[%s3 + $0xf0] sm:$0xf]
  %v3892 = vld [vmem:[%s3 + $0xf4] sm:$0xf]
  %v3893 = vld [vmem:[%s3 + $0xf8] sm:$0xf]
  %v3894 = vld [vmem:[%s3 + $0xfc] sm:$0xf]
  %v3895 = vld [vmem:[%s3 + $0x100] sm:$0xf]
  %v3896 = vld [vmem:[%s3 + $0x104] sm:$0xf]
  %v3897 = vld [vmem:[%s3 + $0x108] sm:$0xf]
  %v3898 = vld [vmem:[%s3 + $0x10c] sm:$0xf]
  %v3899 = vld [vmem:[%s3 + $0x110] sm:$0xf]
  %v3900 = vld [vmem:[%s3 + $0x114] sm:$0xf]
  %v3901 = vld [vmem:[%s3 + $0x118] sm:$0xf]
  %v3902 = vld [vmem:[%s3 + $0x11c] sm:$0xf]
  %v3903 = vld [vmem:[%s3 + $0x120] sm:$0xf]
  %v3904 = vld [vmem:[%s3 + $0x124] sm:$0xf]
  %v3905 = vld [vmem:[%s3 + $0x128] sm:$0xf]
  %v3906 = vld [vmem:[%s3 + $0x12c] sm:$0xf]
  %v3907 = vld [vmem:[%s3 + $0x130] sm:$0xf]
  %v3908 = vld [vmem:[%s3 + $0x134] sm:$0xf]
  %v3909 = vld [vmem:[%s3 + $0x138] sm:$0xf]
  %v3910 = vld [vmem:[%s3 + $0x13c] sm:$0xf]
  %v3911 = vld [vmem:[%s3 + $0x140] sm:$0xf]
  %v3912 = vld [vmem:[%s3 + $0x144] sm:$0xf]
  %v3913 = vld [vmem:[%s3 + $0x148] sm:$0xf]
  %v3914 = vld [vmem:[%s3 + $0x14c] sm:$0xf]
  %v3915 = vld [vmem:[%s3 + $0x150] sm:$0xf]
  %v3916 = vld [vmem:[%s3 + $0x154] sm:$0xf]
  %v3917 = vld [vmem:[%s3 + $0x158] sm:$0xf]
  %v3918 = vld [vmem:[%s3 + $0x15c] sm:$0xf]
  %v3919 = vld [vmem:[%s3 + $0x160] sm:$0xf]
  %v3920 = vld [vmem:[%s3 + $0x164] sm:$0xf]
  %v3921 = vld [vmem:[%s3 + $0x168] sm:$0xf]
  %v3922 = vld [vmem:[%s3 + $0x16c] sm:$0xf]
  %v3923 = vld [vmem:[%s3 + $0x170] sm:$0xf]
  %v3924 = vld [vmem:[%s3 + $0x174] sm:$0xf]
  %v3925 = vld [vmem:[%s3 + $0x178] sm:$0xf]
  %v3926 = vld [vmem:[%s3 + $0x17c] sm:$0xf]
  %v3927 = vld [vmem:[%s3 + $0x180] sm:$0xf]
  %v3928 = vld [vmem:[%s3 + $0x184] sm:$0xf]
  %v3929 = vld [vmem:[%s3 + $0x188] sm:$0xf]
  %v3930 = vld [vmem:[%s3 + $0x18c] sm:$0xf]
  %v3931 = vld [vmem:[%s3 + $0x190] sm:$0xf]
  %v3932 = vld [vmem:[%s3 + $0x194] sm:$0xf]
  %v3933 = vld [vmem:[%s3 + $0x198] sm:$0xf]
  %v3934 = vld [vmem:[%s3 + $0x19c] sm:$0xf]
  %v3935 = vld [vmem:[%s3 + $0x1a0] sm:$0xf]
  %v3936 = vld [vmem:[%s3 + $0x1a4] sm:$0xf]
  %v3937 = vld [vmem:[%s3 + $0x1a8] sm:$0xf]
  %v3938 = vld [vmem:[%s3 + $0x1ac] sm:$0xf]
  %v3939 = vld [vmem:[%s3 + $0x1b0] sm:$0xf]
  %v3940 = vld [vmem:[%s3 + $0x1b4] sm:$0xf]
  %v3941 = vld [vmem:[%s3 + $0x1b8] sm:$0xf]
  %v3942 = vld [vmem:[%s3 + $0x1bc] sm:$0xf]
  %v3943 = vld [vmem:[%s3 + $0x1c0] sm:$0xf]
  %v3944 = vld [vmem:[%s3 + $0x1c4] sm:$0xf]
  %v3945 = vld [vmem:[%s3 + $0x1c8] sm:$0xf]
  %v3946 = vld [vmem:[%s3 + $0x1cc] sm:$0xf]
  %v3947 = vld [vmem:[%s3 + $0x1d0] sm:$0xf]
  %v3948 = vld [vmem:[%s3 + $0x1d4] sm:$0xf]
  %v3949 = vld [vmem:[%s3 + $0x1d8] sm:$0xf]
  %v3950 = vld [vmem:[%s3 + $0x1dc] sm:$0xf]
  %v3951 = vld [vmem:[%s3 + $0x1e0] sm:$0xf]
  %v3952 = vld [vmem:[%s3 + $0x1e4] sm:$0xf]
  %v3953 = vld [vmem:[%s3 + $0x1e8] sm:$0xf]
  %v3954 = vld [vmem:[%s3 + $0x1ec] sm:$0xf]
  %v3955 = vld [vmem:[%s3 + $0x1f0] sm:$0xf]
  %v3956 = vld [vmem:[%s3 + $0x1f4] sm:$0xf]
  %v3957 = vld [vmem:[%s3 + $0x1f8] sm:$0xf]
  %v3958 = vld [vmem:[%s3 + $0x1fc] sm:$0xf]
  %v3959 = vld [vmem:[%s4] sm:$0x1]
  %v3961 = vlaneseq
  %v3962 = vshrl.u32 %v3961, 7
  %v3963 = vsub.s32 0, %v3962
  %v3964 = vrot.slane %v3959, %v3963
  %v4094 = vunpack.c.l.b16 %v3831
  %v4095 = vunpack.c.l.b16 %v3832
  %v4096 = vunpack.c.l.b16 %v3833
  %v4097 = vunpack.c.l.b16 %v3834
  %v4098 = vunpack.c.l.b16 %v3835
  %v4099 = vunpack.c.l.b16 %v3836
  %v4100 = vunpack.c.l.b16 %v3837
  %v4101 = vunpack.c.l.b16 %v3838
  %v4102 = vunpack.c.l.b16 %v3839
  %v4103 = vunpack.c.l.b16 %v3840
  %v4104 = vunpack.c.l.b16 %v3841
  %v4105 = vunpack.c.l.b16 %v3842
  %v4106 = vunpack.c.l.b16 %v3843
  %v4107 = vunpack.c.l.b16 %v3844
  %v4108 = vunpack.c.l.b16 %v3845
  %v4109 = vunpack.c.l.b16 %v3846
  %v4110 = vunpack.c.l.b16 %v3847
  %v4111 = vunpack.c.l.b16 %v3848
  %v4112 = vunpack.c.l.b16 %v3849
  %v4113 = vunpack.c.l.b16 %v3850
  %v4114 = vunpack.c.l.b16 %v3851
  %v4115 = vunpack.c.l.b16 %v3852
  %v4116 = vunpack.c.l.b16 %v3853
  %v4117 = vunpack.c.l.b16 %v3854
  %v4118 = vunpack.c.l.b16 %v3855
  %v4119 = vunpack.c.l.b16 %v3856
  %v4120 = vunpack.c.l.b16 %v3857
  %v4121 = vunpack.c.l.b16 %v3858
  %v4122 = vunpack.c.l.b16 %v3859
  %v4123 = vunpack.c.l.b16 %v3860
  %v4124 = vunpack.c.l.b16 %v3861
  %v4125 = vunpack.c.l.b16 %v3862
  %v4126 = vunpack.c.l.b16 %v3863
  %v4127 = vunpack.c.l.b16 %v3864
  %v4128 = vunpack.c.l.b16 %v3865
  %v4129 = vunpack.c.l.b16 %v3866
  %v4130 = vunpack.c.l.b16 %v3867
  %v4131 = vunpack.c.l.b16 %v3868
  %v4132 = vunpack.c.l.b16 %v3869
  %v4133 = vunpack.c.l.b16 %v3870
  %v4134 = vunpack.c.l.b16 %v3871
  %v4135 = vunpack.c.l.b16 %v3872
  %v4136 = vunpack.c.l.b16 %v3873
  %v4137 = vunpack.c.l.b16 %v3874
  %v4138 = vunpack.c.l.b16 %v3875
  %v4139 = vunpack.c.l.b16 %v3876
  %v4140 = vunpack.c.l.b16 %v3877
  %v4141 = vunpack.c.l.b16 %v3878
  %v4142 = vunpack.c.l.b16 %v3879
  %v4143 = vunpack.c.l.b16 %v3880
  %v4144 = vunpack.c.l.b16 %v3881
  %v4145 = vunpack.c.l.b16 %v3882
  %v4146 = vunpack.c.l.b16 %v3883
  %v4147 = vunpack.c.l.b16 %v3884
  %v4148 = vunpack.c.l.b16 %v3885
  %v4149 = vunpack.c.l.b16 %v3886
  %v4150 = vunpack.c.l.b16 %v3887
  %v4151 = vunpack.c.l.b16 %v3888
  %v4152 = vunpack.c.l.b16 %v3889
  %v4153 = vunpack.c.l.b16 %v3890
  %v4154 = vunpack.c.l.b16 %v3891
  %v4155 = vunpack.c.l.b16 %v3892
  %v4156 = vunpack.c.l.b16 %v3893
  %v4157 = vunpack.c.l.b16 %v3894
  %v4158 = vunpack.c.l.b16 %v3895
  %v4159 = vunpack.c.l.b16 %v3896
  %v4160 = vunpack.c.l.b16 %v3897
  %v4161 = vunpack.c.l.b16 %v3898
  %v4162 = vunpack.c.l.b16 %v3899
  %v4163 = vunpack.c.l.b16 %v3900
  %v4164 = vunpack.c.l.b16 %v3901
  %v4165 = vunpack.c.l.b16 %v3902
  %v4166 = vunpack.c.l.b16 %v3903
  %v4167 = vunpack.c.l.b16 %v3904
  %v4168 = vunpack.c.l.b16 %v3905
  %v4169 = vunpack.c.l.b16 %v3906
  %v4170 = vunpack.c.l.b16 %v3907
  %v4171 = vunpack.c.l.b16 %v3908
  %v4172 = vunpack.c.l.b16 %v3909
  %v4173 = vunpack.c.l.b16 %v3910
  %v4174 = vunpack.c.l.b16 %v3911
  %v4175 = vunpack.c.l.b16 %v3912
  %v4176 = vunpack.c.l.b16 %v3913
  %v4177 = vunpack.c.l.b16 %v3914
  %v4178 = vunpack.c.l.b16 %v3915
  %v4179 = vunpack.c.l.b16 %v3916
  %v4180 = vunpack.c.l.b16 %v3917
  %v4181 = vunpack.c.l.b16 %v3918
  %v4182 = vunpack.c.l.b16 %v3919
  %v4183 = vunpack.c.l.b16 %v3920
  %v4184 = vunpack.c.l.b16 %v3921
  %v4185 = vunpack.c.l.b16 %v3922
  %v4186 = vunpack.c.l.b16 %v3923
  %v4187 = vunpack.c.l.b16 %v3924
  %v4188 = vunpack.c.l.b16 %v3925
  %v4189 = vunpack.c.l.b16 %v3926
  %v4190 = vunpack.c.l.b16 %v3927
  %v4191 = vunpack.c.l.b16 %v3928
  %v4192 = vunpack.c.l.b16 %v3929
  %v4193 = vunpack.c.l.b16 %v3930
  %v4194 = vunpack.c.l.b16 %v3931
  %v4195 = vunpack.c.l.b16 %v3932
  %v4196 = vunpack.c.l.b16 %v3933
  %v4197 = vunpack.c.l.b16 %v3934
  %v4198 = vunpack.c.l.b16 %v3935
  %v4199 = vunpack.c.l.b16 %v3936
  %v4200 = vunpack.c.l.b16 %v3937
  %v4201 = vunpack.c.l.b16 %v3938
  %v4202 = vunpack.c.l.b16 %v3939
  %v4203 = vunpack.c.l.b16 %v3940
  %v4204 = vunpack.c.l.b16 %v3941
  %v4205 = vunpack.c.l.b16 %v3942
  %v4206 = vunpack.c.l.b16 %v3943
  %v4207 = vunpack.c.l.b16 %v3944
  %v4208 = vunpack.c.l.b16 %v3945
  %v4209 = vunpack.c.l.b16 %v3946
  %v4210 = vunpack.c.l.b16 %v3947
  %v4211 = vunpack.c.l.b16 %v3948
  %v4212 = vunpack.c.l.b16 %v3949
  %v4213 = vunpack.c.l.b16 %v3950
  %v4214 = vunpack.c.l.b16 %v3951
  %v4215 = vunpack.c.l.b16 %v3952
  %v4216 = vunpack.c.l.b16 %v3953
  %v4217 = vunpack.c.l.b16 %v3954
  %v4218 = vunpack.c.l.b16 %v3955
  %v4219 = vunpack.c.l.b16 %v3956
  %v4220 = vunpack.c.l.b16 %v3957
  %v4221 = vunpack.c.l.b16 %v3958
  %v4222 = vpack.c.b16 %v4095, %v4094
  %v4223 = vpack.c.b16 %v4097, %v4096
  %v4224 = vpack.c.b16 %v4099, %v4098
  %v4225 = vpack.c.b16 %v4101, %v4100
  %v4226 = vpack.c.b16 %v4103, %v4102
  %v4227 = vpack.c.b16 %v4105, %v4104
  %v4228 = vpack.c.b16 %v4107, %v4106
  %v4229 = vpack.c.b16 %v4109, %v4108
  %v4230 = vpack.c.b16 %v4111, %v4110
  %v4231 = vpack.c.b16 %v4113, %v4112
  %v4232 = vpack.c.b16 %v4115, %v4114
  %v4233 = vpack.c.b16 %v4117, %v4116
  %v4234 = vpack.c.b16 %v4119, %v4118
  %v4235 = vpack.c.b16 %v4121, %v4120
  %v4236 = vpack.c.b16 %v4123, %v4122
  %v4237 = vpack.c.b16 %v4125, %v4124
  %v4238 = vpack.c.b16 %v4127, %v4126
  %v4239 = vpack.c.b16 %v4129, %v4128
  %v4240 = vpack.c.b16 %v4131, %v4130
  %v4241 = vpack.c.b16 %v4133, %v4132
  %v4242 = vpack.c.b16 %v4135, %v4134
  %v4243 = vpack.c.b16 %v4137, %v4136
  %v4244 = vpack.c.b16 %v4139, %v4138
  %v4245 = vpack.c.b16 %v4141, %v4140
  %v4246 = vpack.c.b16 %v4143, %v4142
  %v4247 = vpack.c.b16 %v4145, %v4144
  %v4248 = vpack.c.b16 %v4147, %v4146
  %v4249 = vpack.c.b16 %v4149, %v4148
  %v4250 = vpack.c.b16 %v4151, %v4150
  %v4251 = vpack.c.b16 %v4153, %v4152
  %v4252 = vpack.c.b16 %v4155, %v4154
  %v4253 = vpack.c.b16 %v4157, %v4156
  %v4254 = vpack.c.b16 %v4159, %v4158
  %v4255 = vpack.c.b16 %v4161, %v4160
  %v4256 = vpack.c.b16 %v4163, %v4162
  %v4257 = vpack.c.b16 %v4165, %v4164
  %v4258 = vpack.c.b16 %v4167, %v4166
  %v4259 = vpack.c.b16 %v4169, %v4168
  %v4260 = vpack.c.b16 %v4171, %v4170
  %v4261 = vpack.c.b16 %v4173, %v4172
  %v4262 = vpack.c.b16 %v4175, %v4174
  %v4263 = vpack.c.b16 %v4177, %v4176
  %v4264 = vpack.c.b16 %v4179, %v4178
  %v4265 = vpack.c.b16 %v4181, %v4180
  %v4266 = vpack.c.b16 %v4183, %v4182
  %v4267 = vpack.c.b16 %v4185, %v4184
  %v4268 = vpack.c.b16 %v4187, %v4186
  %v4269 = vpack.c.b16 %v4189, %v4188
  %v4270 = vpack.c.b16 %v4191, %v4190
  %v4271 = vpack.c.b16 %v4193, %v4192
  %v4272 = vpack.c.b16 %v4195, %v4194
  %v4273 = vpack.c.b16 %v4197, %v4196
  %v4274 = vpack.c.b16 %v4199, %v4198
  %v4275 = vpack.c.b16 %v4201, %v4200
  %v4276 = vpack.c.b16 %v4203, %v4202
  %v4277 = vpack.c.b16 %v4205, %v4204
  %v4278 = vpack.c.b16 %v4207, %v4206
  %v4279 = vpack.c.b16 %v4209, %v4208
  %v4280 = vpack.c.b16 %v4211, %v4210
  %v4281 = vpack.c.b16 %v4213, %v4212
  %v4282 = vpack.c.b16 %v4215, %v4214
  %v4283 = vpack.c.b16 %v4217, %v4216
  %v4284 = vpack.c.b16 %v4219, %v4218
  %v4285 = vpack.c.b16 %v4221, %v4220
  %4350 = vmatprep.subr.bf16.mxu0 0
  %4351 = vmatpush1.bf16.msra.mxu0 %v4222
  %4352 = vmatprep.subr.bf16.mxu0 0
  %4353 = vmatpush1.bf16.msra.mxu0 %v4223
  %4354 = vmatprep.subr.bf16.mxu0 0
  %4355 = vmatpush1.bf16.msra.mxu0 %v4224
  %4356 = vmatprep.subr.bf16.mxu0 0
  %4357 = vmatpush1.bf16.msra.mxu0 %v4225
  %4358 = vmatprep.subr.bf16.mxu0 0
  %4359 = vmatpush1.bf16.msra.mxu0 %v4226
  %4360 = vmatprep.subr.bf16.mxu0 0
  %4361 = vmatpush1.bf16.msra.mxu0 %v4227
  %4362 = vmatprep.subr.bf16.mxu0 0
  %4363 = vmatpush1.bf16.msra.mxu0 %v4228
  %4364 = vmatprep.subr.bf16.mxu0 0
  %4365 = vmatpush1.bf16.msra.mxu0 %v4229
  %4366 = vmatprep.subr.bf16.mxu0 0
  %4367 = vmatpush1.bf16.msra.mxu0 %v4230
  %4368 = vmatprep.subr.bf16.mxu0 0
  %4369 = vmatpush1.bf16.msra.mxu0 %v4231
  %4370 = vmatprep.subr.bf16.mxu0 0
  %4371 = vmatpush1.bf16.msra.mxu0 %v4232
  %4372 = vmatprep.subr.bf16.mxu0 0
  %4373 = vmatpush1.bf16.msra.mxu0 %v4233
  %4374 = vmatprep.subr.bf16.mxu0 0
  %4375 = vmatpush1.bf16.msra.mxu0 %v4234
  %4376 = vmatprep.subr.bf16.mxu0 0
  %4377 = vmatpush1.bf16.msra.mxu0 %v4235
  %4378 = vmatprep.subr.bf16.mxu0 0
  %4379 = vmatpush1.bf16.msra.mxu0 %v4236
  %4380 = vmatprep.subr.bf16.mxu0 0
  %4381 = vmatpush1.bf16.msra.mxu0 %v4237
  %4382 = vmatprep.mubr.bf16.mxu0 %v3824
  %4383 = vmatmul.mubr.bf16.gmra.mrb[0].mxu0 %v3823
  %v4384 = vpop.f32.mrb[0].mxu0
  %v4385 = vadd.f32 %v3964, %v4384
  %v4386 = vpop.f32.mrb[0].mxu0
  %v4387 = vpop.f32.mrb[0].mxu0
  %v4388 = vpop.f32.mrb[0].mxu0
  %4389 = vdwg.mxu0
  %4390 = vmatprep.subr.bf16.mxu0 0
  %4391 = vmatpush1.bf16.msra.mxu0 %v4238
  %4392 = vmatprep.subr.bf16.mxu0 0
  %4393 = vmatpush1.bf16.msra.mxu0 %v4239
  %4394 = vmatprep.subr.bf16.mxu0 0
  %4395 = vmatpush1.bf16.msra.mxu0 %v4240
  %4396 = vmatprep.subr.bf16.mxu0 0
  %4397 = vmatpush1.bf16.msra.mxu0 %v4241
  %4398 = vmatprep.subr.bf16.mxu0 0
  %4399 = vmatpush1.bf16.msra.mxu0 %v4242
  %4400 = vmatprep.subr.bf16.mxu0 0
  %4401 = vmatpush1.bf16.msra.mxu0 %v4243
  %4402 = vmatprep.subr.bf16.mxu0 0
  %4403 = vmatpush1.bf16.msra.mxu0 %v4244
  %4404 = vmatprep.subr.bf16.mxu0 0
  %4405 = vmatpush1.bf16.msra.mxu0 %v4245
  %4406 = vmatprep.subr.bf16.mxu0 0
  %4407 = vmatpush1.bf16.msra.mxu0 %v4246
  %4408 = vmatprep.subr.bf16.mxu0 0
  %4409 = vmatpush1.bf16.msra.mxu0 %v4247
  %4410 = vmatprep.subr.bf16.mxu0 0
  %4411 = vmatpush1.bf16.msra.mxu0 %v4248
  %4412 = vmatprep.subr.bf16.mxu0 0
  %4413 = vmatpush1.bf16.msra.mxu0 %v4249
  %4414 = vmatprep.subr.bf16.mxu0 0
  %4415 = vmatpush1.bf16.msra.mxu0 %v4250
  %4416 = vmatprep.subr.bf16.mxu0 0
  %4417 = vmatpush1.bf16.msra.mxu0 %v4251
  %4418 = vmatprep.subr.bf16.mxu0 0
  %4419 = vmatpush1.bf16.msra.mxu0 %v4252
  %4420 = vmatprep.subr.bf16.mxu0 0
  %4421 = vmatpush1.bf16.msra.mxu0 %v4253
  %4422 = vmatprep.mubr.bf16.mxu0 %v3826
  %4423 = vmatmul.mubr.bf16.gmra.mrb[0].mxu0 %v3825
  %v4424 = vpop.f32.mrb[0].mxu0
  %v4425 = vadd.f32 %v4385, %v4424
  %v4426 = vpop.f32.mrb[0].mxu0
  %v4427 = vpop.f32.mrb[0].mxu0
  %v4428 = vpop.f32.mrb[0].mxu0
  %4429 = vdwg.mxu0
  %4430 = vmatprep.subr.bf16.mxu0 0
  %4431 = vmatpush1.bf16.msra.mxu0 %v4254
  %4432 = vmatprep.subr.bf16.mxu0 0
  %4433 = vmatpush1.bf16.msra.mxu0 %v4255
  %4434 = vmatprep.subr.bf16.mxu0 0
  %4435 = vmatpush1.bf16.msra.mxu0 %v4256
  %4436 = vmatprep.subr.bf16.mxu0 0
  %4437 = vmatpush1.bf16.msra.mxu0 %v4257
  %4438 = vmatprep.subr.bf16.mxu0 0
  %4439 = vmatpush1.bf16.msra.mxu0 %v4258
  %4440 = vmatprep.subr.bf16.mxu0 0
  %4441 = vmatpush1.bf16.msra.mxu0 %v4259
  %4442 = vmatprep.subr.bf16.mxu0 0
  %4443 = vmatpush1.bf16.msra.mxu0 %v4260
  %4444 = vmatprep.subr.bf16.mxu0 0
  %4445 = vmatpush1.bf16.msra.mxu0 %v4261
  %4446 = vmatprep.subr.bf16.mxu0 0
  %4447 = vmatpush1.bf16.msra.mxu0 %v4262
  %4448 = vmatprep.subr.bf16.mxu0 0
  %4449 = vmatpush1.bf16.msra.mxu0 %v4263
  %4450 = vmatprep.subr.bf16.mxu0 0
  %4451 = vmatpush1.bf16.msra.mxu0 %v4264
  %4452 = vmatprep.subr.bf16.mxu0 0
  %4453 = vmatpush1.bf16.msra.mxu0 %v4265
  %4454 = vmatprep.subr.bf16.mxu0 0
  %4455 = vmatpush1.bf16.msra.mxu0 %v4266
  %4456 = vmatprep.subr.bf16.mxu0 0
  %4457 = vmatpush1.bf16.msra.mxu0 %v4267
  %4458 = vmatprep.subr.bf16.mxu0 0
  %4459 = vmatpush1.bf16.msra.mxu0 %v4268
  %4460 = vmatprep.subr.bf16.mxu0 0
  %4461 = vmatpush1.bf16.msra.mxu0 %v4269
  %4462 = vmatprep.mubr.bf16.mxu0 %v3828
  %4463 = vmatmul.mubr.bf16.gmra.mrb[0].mxu0 %v3827
  %v4464 = vpop.f32.mrb[0].mxu0
  %v4465 = vadd.f32 %v4425, %v4464
  %v4466 = vpop.f32.mrb[0].mxu0
  %v4467 = vpop.f32.mrb[0].mxu0
  %v4468 = vpop.f32.mrb[0].mxu0
  %4469 = vdwg.mxu0
  %4470 = vmatprep.subr.bf16.mxu0 0
  %4471 = vmatpush1.bf16.msra.mxu0 %v4270
  %4472 = vmatprep.subr.bf16.mxu0 0
  %4473 = vmatpush1.bf16.msra.mxu0 %v4271
  %4474 = vmatprep.subr.bf16.mxu0 0
  %4475 = vmatpush1.bf16.msra.mxu0 %v4272
  %4476 = vmatprep.subr.bf16.mxu0 0
  %4477 = vmatpush1.bf16.msra.mxu0 %v4273
  %4478 = vmatprep.subr.bf16.mxu0 0
  %4479 = vmatpush1.bf16.msra.mxu0 %v4274
  %4480 = vmatprep.subr.bf16.mxu0 0
  %4481 = vmatpush1.bf16.msra.mxu0 %v4275
  %4482 = vmatprep.subr.bf16.mxu0 0
  %4483 = vmatpush1.bf16.msra.mxu0 %v4276
  %4484 = vmatprep.subr.bf16.mxu0 0
  %4485 = vmatpush1.bf16.msra.mxu0 %v4277
  %4486 = vmatprep.subr.bf16.mxu0 0
  %4487 = vmatpush1.bf16.msra.mxu0 %v4278
  %4488 = vmatprep.subr.bf16.mxu0 0
  %4489 = vmatpush1.bf16.msra.mxu0 %v4279
  %4490 = vmatprep.subr.bf16.mxu0 0
  %4491 = vmatpush1.bf16.msra.mxu0 %v4280
  %4492 = vmatprep.subr.bf16.mxu0 0
  %4493 = vmatpush1.bf16.msra.mxu0 %v4281
  %4494 = vmatprep.subr.bf16.mxu0 0
  %4495 = vmatpush1.bf16.msra.mxu0 %v4282
  %4496 = vmatprep.subr.bf16.mxu0 0
  %4497 = vmatpush1.bf16.msra.mxu0 %v4283
  %4498 = vmatprep.subr.bf16.mxu0 0
  %4499 = vmatpush1.bf16.msra.mxu0 %v4284
  %4500 = vmatprep.subr.bf16.mxu0 0
  %4501 = vmatpush1.bf16.msra.mxu0 %v4285
  %4502 = vmatprep.mubr.bf16.mxu0 %v3830
  %4503 = vmatmul.mubr.bf16.gmra.mrb[0].mxu0 %v3829
  %v4504 = vpop.f32.mrb[0].mxu0
  %v4505 = vadd.f32 %v4465, %v4504
  %v4506 = vpop.f32.mrb[0].mxu0
  %v4507 = vpop.f32.mrb[0].mxu0
  %v4508 = vpop.f32.mrb[0].mxu0
  %4509 = vdwg.mxu0
  %4510 = vst [vmem:[%s5] sm:$0xff] %v4505
  // Predicated region
  $region22: #{net_forward.3} parent=0 // pred_check
    _
  $region23: #{net_forward.3} parent=0 // pred_check_branch
    %4512 = sbr.rel (0) target = $region25
  $region24: #{net_forward.3} parent=0 // pred_region
    _
  $region25: #{net_forward.3} parent=0 // pred_fallthru
    _
  // Predicated region
  $region26: #{net_forward.3} parent=0 // pred_check
    _
  $region27: #{net_forward.3} parent=0 // pred_check_branch
    %4514 = sbr.rel (0) target = $region29
  $region28: #{net_forward.3} parent=0 // pred_region
    _
  $region29: #{net_forward.3} parent=0 // pred_fallthru
    _

</llo_original>
